<compile_context>
chip_gen: v6e
topology: v6e:2x2x1
jax: 0.10.0
libtpu: 0.0.40
codegen_flags: <defaults>
</compile_context>

<pallas_src>
import jax
import jax.numpy as jnp
from jax.experimental import pallas as pl
from jax.experimental.pallas import tpu as pltpu

# ------------------------- config (small, forward-consistent) -------------------------
NUM_STOCK = 16
D_MARKET  = 4
D_NEWS    = 6
D_HIDDEN  = 8
HIDN_RNN  = 16
HEADS     = 2
HIDN_ATT  = 8
SEQ_LEN   = 5
ALPHA     = 0.2     # LeakyReLU slope
# dropout = 0.0 -> identity (eval semantics); not implemented as a kernel.
# TODO(synk): relation_static adjacency masking (forward is called with None here).


def _full_spec(shape):
    """Whole-array block (grid=(1,))."""
    return pl.BlockSpec(tuple(shape), lambda *_: (0,) * len(shape))


def _elu(x):
    # Safe ELU: clamp before exp so the untaken branch never produces inf.
    return jnp.where(x > 0, x, jnp.exp(jnp.minimum(x, 0.0)) - 1.0)


def _leaky_relu(x):
    return jnp.where(x > 0, x, ALPHA * x)


# --------------------------------- fused kernel ----------------------------------------
def _ad_gat_kernel(xmix_ref, sent_ref, wmix_ref, bt_ref, wgru_ref,
                   wheads_ref, wout_ref, batt_ref, o_ref):
    f32 = jnp.float32
    N, D, H, A = NUM_STOCK, D_HIDDEN, HIDN_RNN, HIDN_ATT
    T = SEQ_LEN * N

    # ---- 1. Graph_Tensor: conv1d(k=1) projections + outer product + bilinear (all matmul) ----
    mix = jnp.dot(xmix_ref[...], wmix_ref[...], preferred_element_type=f32)   # (T, 2*D*D)
    nm = mix[:, :D * D] * mix[:, D * D:]                                      # (T, D*D) outer prod
    x_h = jnp.dot(nm, bt_ref[...], preferred_element_type=f32)                # (T, D)  (bias folded)

    # ---- slab unpacking (static slices) ----
    r0 = N * D                      # 128
    r1 = r0 + N * 2 * H             # 640
    r2 = r1 + N                     # 656
    wx_blk = wgru_ref[0:r0, :]                 # (128, 6H) stacked per-stock input-gate weights
    wh_blk = wgru_ref[r0:r1, :]                # (512, 6H) stacked per-stock hidden-gate weights
    bias_x = wgru_ref[r1:r2, :]                # (16, 6H)  = bx + bh[r,z] + bb@wx
    bias_hn = wgru_ref[r2:r2 + N, 0:2 * H]     # (16, 2H)  = bh[n] (stays inside r*(.))

    # ---- 2. fused GRUs (GRUs_r + GRUs_s in one 6H-wide recurrence) ----
    # 2a. input gates: no recurrence dep -> all timesteps & both GRUs in ONE MXU matmul.
    rows = jax.lax.broadcasted_iota(jnp.int32, (T, N * D), 0)
    cols = jax.lax.broadcasted_iota(jnp.int32, (T, N * D), 1)
    mask_x = jnp.where(jnp.bitwise_and(rows, N - 1) == jnp.right_shift(cols, 3), 1.0, 0.0)
    x_blk = jnp.concatenate([x_h] * N, axis=1) * mask_x                       # (T, 128) block-diag
    gates_x = jnp.dot(x_blk, wx_blk, preferred_element_type=f32)              # (T, 6H)

    # 2b. serial recurrence: one matmul / one sigmoid / one tanh per step for BOTH GRUs.
    hrows = jax.lax.broadcasted_iota(jnp.int32, (N, N * 2 * H), 0)
    hcols = jax.lax.broadcasted_iota(jnp.int32, (N, N * 2 * H), 1)
    mask_h = jnp.where(hrows == jnp.right_shift(hcols, 5), 1.0, 0.0)          # (16, 512)

    h_cat = jnp.zeros((N, 2 * H), f32)                                        # [h_r | h_s]
    for t in range(SEQ_LEN):                                                  # static unroll
        gx_t = gates_x[t * N:(t + 1) * N, :] + bias_x                         # (16, 6H)
        h_blk = jnp.concatenate([h_cat] * N, axis=1) * mask_h                 # (16, 512) block-diag
        gh = jnp.dot(h_blk, wh_blk, preferred_element_type=f32)               # (16, 6H)
        rz = jax.nn.sigmoid(gx_t[:, :4 * H] + gh[:, :4 * H])                  # r|z, both GRUs
        r = rz[:, :2 * H]
        z = rz[:, 2 * H:]
        ng = jnp.tanh(gx_t[:, 4 * H:] + r * (gh[:, 4 * H:] + bias_hn))        # n, both GRUs
        h_cat = ng + z * (h_cat - ng)       # hy = newgate + inputgate*(hidden - newgate)

    x_s = h_cat[:, H:]                                                        # GRUs_s hidden state

    # ---- 3. Graph_Attention: both heads' projections in one matmul on [x_r | x_s] ----
    batt = batt_ref[...]                                                      # (1, 8) small biases
    proj = jnp.dot(h_cat, wheads_ref[...], preferred_element_type=f32)        # (16, 38)
    f1_all = proj[:, 0:2] + batt[:, 0:2]                                      # (16, heads)
    f2_all = proj[:, 2:4] + batt[:, 2:4]
    seq_s_all = proj[:, 4:4 + 2 * A]                                          # (16, heads*A)
    res_all = proj[:, 4 + 2 * A:4 + 4 * A]                                    # (16, heads*A)
    gate_all = jax.nn.sigmoid(proj[:, 4 + 4 * A:]
                              + sent_ref[...] * batt[:, 6:8] + batt[:, 4:6])  # (16, heads)

    head_outs = []
    for hd in range(HEADS):
        f1 = f1_all[:, hd:hd + 1]
        f2 = f2_all[:, hd:hd + 1]
        ones_col = jnp.ones_like(f1)
        # pairwise logits f1_i + f2_j via an A @ B^T contraction (no in-kernel transpose)
        logits = jnp.einsum('nk,mk->nm',
                            jnp.concatenate([f1, ones_col], axis=1),
                            jnp.concatenate([ones_col, f2], axis=1),
                            preferred_element_type=f32)                       # (N, N)
        e = _leaky_relu(logits)
        e = e - jnp.max(e, axis=-1, keepdims=True)
        p = jnp.exp(e)
        attn = p * pl.reciprocal(jnp.sum(p, axis=-1, keepdims=True), approx=True)
        val = gate_all[:, hd:hd + 1] * seq_s_all[:, hd * A:(hd + 1) * A]      # gated values
        agg = jnp.dot(attn, val, preferred_element_type=f32)
        head_outs.append(_elu(agg + res_all[:, hd * A:(hd + 1) * A]))         # residual + ELU

    att_cat = jnp.concatenate(head_outs, axis=1)                              # (N, heads*A)

    # ---- 4. Graph_Linear (per-stock) + ELU + softmax over the 2 classes ----
    fin = HEADS * A + H                                                       # 32
    wout = wout_ref[...]                                                      # (16, 2*fin + 2)
    feat = jnp.concatenate([att_cat, x_s], axis=1)                            # (N, fin)
    y0 = jnp.sum(feat * wout[:, 0:fin], axis=1, keepdims=True)
    y1 = jnp.sum(feat * wout[:, fin:2 * fin], axis=1, keepdims=True)
    y = _elu(jnp.concatenate([y0, y1], axis=1) + wout[:, 2 * fin:2 * fin + 2])
    y = y - jnp.max(y, axis=-1, keepdims=True)
    py = jnp.exp(y)
    o_ref[...] = py * pl.reciprocal(jnp.sum(py, axis=-1, keepdims=True), approx=False)


# ------------------------------------ full forward --------------------------------------
def ad_gat_forward(packed, x_market, x_news, sentiment_scores):
    T = SEQ_LEN * NUM_STOCK
    xm = x_market.reshape(T, D_MARKET)
    xn = x_news.reshape(T, D_NEWS)
    x_mix = jnp.concatenate([xm, xn], axis=1)                                 # (T, d_market+d_news)

    inputs = (x_mix, sentiment_scores,
              packed["w_mix"], packed["bt"], packed["w_gru"],
              packed["w_heads"], packed["w_out"], packed["b_att"])

    return pl.pallas_call(
        _ad_gat_kernel,
        grid=(1,),
        in_specs=[_full_spec(x.shape) for x in inputs],
        out_specs=_full_spec((NUM_STOCK, 2)),
        out_shape=jax.ShapeDtypeStruct((NUM_STOCK, 2), jnp.float32),
        compiler_params=pltpu.CompilerParams(dimension_semantics=("arbitrary",)),
    )(*inputs)


# ------------------------------------ parameters -----------------------------------------
def init_params(seed=42):
    keys = iter(jax.random.split(jax.random.PRNGKey(seed), 64))

    def init(shape, scale=0.2):
        return (scale * jax.random.normal(next(keys), shape)).astype(jnp.float32)

    tensor = dict(
        wm=init((D_MARKET, D_HIDDEN)),
        wn=init((D_NEWS, D_HIDDEN)),
        # bilinear weight flattened: bt[i*D_HIDDEN + j, k] = B[k, i, j]
        bt=init((D_HIDDEN * D_HIDDEN, D_HIDDEN)),
        bb=init((1, D_HIDDEN)),
    )

    def gru():
        return dict(
            wx=init((NUM_STOCK, D_HIDDEN, 3 * HIDN_RNN)),
            wh=init((NUM_STOCK, HIDN_RNN, 3 * HIDN_RNN)),
            bx=init((NUM_STOCK, 3 * HIDN_RNN)),
            bh=init((NUM_STOCK, 3 * HIDN_RNN)),
        )

    att = dict(
        wr=init((HEADS, HIDN_RNN, HIDN_ATT)),
        ws=init((HEADS, HIDN_RNN, HIDN_ATT)),
        wres=init((HEADS, HIDN_RNN, HIDN_ATT)),
        a1=init((HEADS, HIDN_ATT, 1)), b1=init((HEADS, 1, 1)),
        a2=init((HEADS, HIDN_ATT, 1)), b2=init((HEADS, 1, 1)),
        wg=init((HEADS, HIDN_RNN, 1)), wsent=init((HEADS, 1, 1)), bg=init((HEADS, 1, 1)),
    )

    f_in = HEADS * HIDN_ATT + HIDN_RNN
    out = dict(w=init((NUM_STOCK, f_in, 2)), b=init((NUM_STOCK, 2)))

    return dict(tensor=tensor, gru_r=gru(), gru_s=gru(), att=att, out=out)


def pack_params(p):
    """Fold / re-layout raw per-module parameters into a few lane-dense slabs.

    All transformations are exact linear-algebra refactorings of the forward pass:
      * conv1d(k=1) weights expanded with the outer-product repeat/tile selectors,
      * Graph_Tensor bias bb folded into the GRU input-gate bias (x_h only feeds the GRUs),
      * both GRUs interleaved gate-wise ([r_r|r_s|z_r|z_s|n_r|n_s]) and per-stock weights
        stacked for the block-diagonal MXU matmuls,
      * seq_transformation_r folded into the f1/f2 attention vectors,
      * both heads' attention weights stacked column-wise,
      * output linear split into per-class lane-dense halves.
    """
    t = p["tensor"]; gr = p["gru_r"]; gs = p["gru_s"]; a = p["att"]; o = p["out"]
    N, D, H, A = NUM_STOCK, D_HIDDEN, HIDN_RNN, HIDN_ATT

    # Graph_Tensor projection weights, outer-product-expanded (m_rep / n_rep layout).
    wm_exp = jnp.tile(t["wm"], (1, D))            # col i*D+j <- wm[:, j]
    wn_exp = jnp.repeat(t["wn"], D, axis=1)       # col i*D+j <- wn[:, i]
    w_mix = jnp.zeros((D_MARKET + D_NEWS, 2 * D * D), jnp.float32)
    w_mix = w_mix.at[:D_MARKET, :D * D].set(wm_exp)
    w_mix = w_mix.at[D_MARKET:, D * D:].set(wn_exp)

    # GRU gate interleave: (..., 3H) x2 -> (..., 6H) = [r_r|r_s|z_r|z_s|n_r|n_s]
    def interleave(ar, as_):
        return jnp.concatenate([ar[..., 0:H], as_[..., 0:H],
                                ar[..., H:2 * H], as_[..., H:2 * H],
                                ar[..., 2 * H:3 * H], as_[..., 2 * H:3 * H]], axis=-1)

    wx_blk = interleave(gr["wx"], gs["wx"]).reshape(N * D, 6 * H)            # (128, 96)

    wh_cat = jnp.zeros((N, 2 * H, 6 * H), jnp.float32)
    wh_cat = wh_cat.at[:, 0:H, 0:H].set(gr["wh"][:, :, 0:H])
    wh_cat = wh_cat.at[:, 0:H, 2 * H:3 * H].set(gr["wh"][:, :, H:2 * H])
    wh_cat = wh_cat.at[:, 0:H, 4 * H:5 * H].set(gr["wh"][:, :, 2 * H:3 * H])
    wh_cat = wh_cat.at[:, H:, H:2 * H].set(gs["wh"][:, :, 0:H])
    wh_cat = wh_cat.at[:, H:, 3 * H:4 * H].set(gs["wh"][:, :, H:2 * H])
    wh_cat = wh_cat.at[:, H:, 5 * H:6 * H].set(gs["wh"][:, :, 2 * H:3 * H])
    wh_blk = wh_cat.reshape(N * 2 * H, 6 * H)                                # (512, 96)

    # x_h = nm @ bt + bb and x_h only feeds the GRU input gates -> fold bb @ wx host-side.
    fold_r = jnp.einsum("d,ndg->ng", t["bb"][0], gr["wx"])                   # (N, 3H)
    fold_s = jnp.einsum("d,ndg->ng", t["bb"][0], gs["wx"])
    bias_x = interleave(gr["bx"] + fold_r, gs["bx"] + fold_s)                # (N, 6H)
    bh_cat = interleave(gr["bh"], gs["bh"])
    bias_x = bias_x.at[:, 0:4 * H].add(bh_cat[:, 0:4 * H])                   # hidden bias (r,z) pre-added
    bias_hn = bh_cat[:, 4 * H:]                                              # hidden bias (n): inside r*(.)

    w_gru = jnp.zeros((N * D + N * 2 * H + 2 * N, 6 * H), jnp.float32)       # (672, 96)
    w_gru = w_gru.at[0:N * D, :].set(wx_blk)
    w_gru = w_gru.at[N * D:N * D + N * 2 * H, :].set(wh_blk)
    w_gru = w_gru.at[N * D + N * 2 * H:N * D + N * 2 * H + N, :].set(bias_x)
    w_gru = w_gru.at[N * D + N * 2 * H + N:, 0:2 * H].set(bias_hn)

    # attention: one (2H, 38) weight acting on [x_r | x_s]
    a1_fold = jnp.einsum("hij,hj->ih", a["wr"], a["a1"][:, :, 0])            # seq_r folded into f1
    a2_fold = jnp.einsum("hij,hj->ih", a["wr"], a["a2"][:, :, 0])            # seq_r folded into f2
    w_heads = jnp.zeros((2 * H, 4 + 4 * A + 2), jnp.float32)                 # (32, 38)
    w_heads = w_heads.at[0:H, 0:2].set(a1_fold)
    w_heads = w_heads.at[0:H, 2:4].set(a2_fold)
    w_heads = w_heads.at[H:, 4:4 + A].set(a["ws"][0])
    w_heads = w_heads.at[H:, 4 + A:4 + 2 * A].set(a["ws"][1])
    w_heads = w_heads.at[H:, 4 + 2 * A:4 + 3 * A].set(a["wres"][0])
    w_heads = w_heads.at[H:, 4 + 3 * A:4 + 4 * A].set(a["wres"][1])
    w_heads = w_heads.at[H:, 4 + 4 * A].set(a["wg"][0, :, 0])
    w_heads = w_heads.at[H:, 4 + 4 * A + 1].set(a["wg"][1, :, 0])

    b_att = jnp.stack([a["b1"][0, 0, 0], a["b1"][1, 0, 0],
                       a["b2"][0, 0, 0], a["b2"][1, 0, 0],
                       a["bg"][0, 0, 0], a["bg"][1, 0, 0],
                       a["wsent"][0, 0, 0], a["wsent"][1, 0, 0]]).reshape(1, 8)

    # per-stock output linear: [wo_class0 | wo_class1 | bias]
    w_out = jnp.concatenate([o["w"][:, :, 0], o["w"][:, :, 1], o["b"]], axis=1)   # (16, 66)

    return dict(w_mix=w_mix, bt=t["bt"], w_gru=w_gru,
                w_heads=w_heads, w_out=w_out, b_att=b_att)


# ------------------------------ pure-JAX reference ----------------------------------------
def ad_gat_ref(p, x_market, x_news, sentiment_scores):
    N, D, H = NUM_STOCK, D_HIDDEN, HIDN_RNN
    xm = x_market.reshape(SEQ_LEN * N, D_MARKET)
    xn = x_news.reshape(SEQ_LEN * N, D_NEWS)
    t = p["tensor"]
    m = xm @ t["wm"]
    n = xn @ t["wn"]
    nm = (n[:, :, None] * m[:, None, :]).reshape(SEQ_LEN * N, D * D)
    x_h = nm @ t["bt"] + t["bb"]

    def gru(g):
        h = jnp.zeros((N, H), jnp.float32)
        for s in range(SEQ_LEN):
            x_t = x_h[s * N:(s + 1) * N]
            gx = jnp.einsum("nd,ndg->ng", x_t, g["wx"]) + g["bx"]
            gh = jnp.einsum("nh,nhg->ng", h, g["wh"]) + g["bh"]
            r = jax.nn.sigmoid(gx[:, :H] + gh[:, :H])
            z = jax.nn.sigmoid(gx[:, H:2 * H] + gh[:, H:2 * H])
            ng = jnp.tanh(gx[:, 2 * H:] + r * gh[:, 2 * H:])
            h = ng + z * (h - ng)
        return h

    x_r = gru(p["gru_r"])
    x_s = gru(p["gru_s"])

    a = p["att"]
    heads = []
    for hd in range(HEADS):
        seq_r = x_r @ a["wr"][hd]
        f1 = seq_r @ a["a1"][hd] + a["b1"][hd]
        f2 = seq_r @ a["a2"][hd] + a["b2"][hd]
        e = f1 + f2.T
        e = jnp.where(e > 0, e, ALPHA * e)
        attn = jax.nn.softmax(e, axis=-1)
        gate = jax.nn.sigmoid(x_s @ a["wg"][hd]
                              + sentiment_scores * a["wsent"][hd, 0, 0] + a["bg"][hd, 0, 0])
        seq_s = x_s @ a["ws"][hd]
        agg = attn @ (gate * seq_s)
        heads.append(jax.nn.elu(agg + x_s @ a["wres"][hd]))

    feat = jnp.concatenate(heads + [x_s], axis=1)
    y = jnp.einsum("nf,nfc->nc", feat, p["out"]["w"]) + p["out"]["b"]
    y = jax.nn.elu(y)
    return jax.nn.softmax(y, axis=1)


# --------------------------------------- main ---------------------------------------------
if __name__ == "__main__":
    raw = init_params(42)
    packed = pack_params(raw)

    k1, k2, k3 = jax.random.split(jax.random.PRNGKey(0), 3)
    x_market = jax.random.normal(k1, (SEQ_LEN, NUM_STOCK, D_MARKET), jnp.float32)
    x_news = jax.random.normal(k2, (SEQ_LEN, NUM_STOCK, D_NEWS), jnp.float32)
    sentiment_scores = jax.random.uniform(k3, (NUM_STOCK, 1), jnp.float32, -1.0, 1.0)

    fwd = jax.jit(ad_gat_forward)
    out = jax.block_until_ready(fwd(packed, x_market, x_news, sentiment_scores))

    ref = ad_gat_ref(raw, x_market, x_news, sentiment_scores)

    assert out.shape == (NUM_STOCK, 2), out.shape
    assert bool(jnp.all(jnp.isfinite(out)))
    # rows of the final softmax must sum to 1 (final reciprocal is exact)
    assert bool(jnp.allclose(jnp.sum(out, axis=1), 1.0, atol=1e-5))
    # tolerance-check against the pure-JAX reference (attention uses approx reciprocal)
    assert bool(jnp.allclose(out, ref, atol=1e-2, rtol=1e-2)), float(jnp.max(jnp.abs(out - ref)))

    print("KERNEL_OK")
</pallas_src>

<mosaic_0001>
module attributes {stable_mosaic.version = 11 : i64} {
  func.func @_ad_gat_kernel(%arg0: i32, %arg1: memref<80x10xf32, #tpu.memory_space<vmem>>, %arg2: memref<16x1xf32, #tpu.memory_space<vmem>>, %arg3: memref<10x128xf32, #tpu.memory_space<vmem>>, %arg4: memref<64x8xf32, #tpu.memory_space<vmem>>, %arg5: memref<672x96xf32, #tpu.memory_space<vmem>>, %arg6: memref<32x38xf32, #tpu.memory_space<vmem>>, %arg7: memref<16x66xf32, #tpu.memory_space<vmem>>, %arg8: memref<1x8xf32, #tpu.memory_space<vmem>>, %arg9: memref<16x2xf32, #tpu.memory_space<vmem>>) attributes {dimension_semantics = [#tpu.dimension_semantics<arbitrary>], iteration_bounds = array<i64: 1>, scalar_prefetch = 0 : i64, scratch_operands = 0 : i64, tpu.core_type = #tpu.core_type<tc>, window_params = [{pipeline_mode = #tpu.pipeline_mode<synchronous>, transform_indices = @transform_0, window_bounds = array<i64: 80, 10>}, {pipeline_mode = #tpu.pipeline_mode<synchronous>, transform_indices = @transform_1, window_bounds = array<i64: 16, 1>}, {pipeline_mode = #tpu.pipeline_mode<synchronous>, transform_indices = @transform_2, window_bounds = array<i64: 10, 128>}, {pipeline_mode = #tpu.pipeline_mode<synchronous>, transform_indices = @transform_3, window_bounds = array<i64: 64, 8>}, {pipeline_mode = #tpu.pipeline_mode<synchronous>, transform_indices = @transform_4, window_bounds = array<i64: 672, 96>}, {pipeline_mode = #tpu.pipeline_mode<synchronous>, transform_indices = @transform_5, window_bounds = array<i64: 32, 38>}, {pipeline_mode = #tpu.pipeline_mode<synchronous>, transform_indices = @transform_6, window_bounds = array<i64: 16, 66>}, {pipeline_mode = #tpu.pipeline_mode<synchronous>, transform_indices = @transform_7, window_bounds = array<i64: 1, 8>}, {pipeline_mode = #tpu.pipeline_mode<synchronous>, transform_indices = @transform_8, window_bounds = array<i64: 16, 2>}]} {
    %c0 = arith.constant 0 : index
    %c0_0 = arith.constant 0 : index
    %0 = vector.load %arg1[%c0, %c0_0] : memref<80x10xf32, #tpu.memory_space<vmem>>, vector<80x10xf32>
    %c0_1 = arith.constant 0 : index
    %c0_2 = arith.constant 0 : index
    %1 = vector.load %arg3[%c0_1, %c0_2] : memref<10x128xf32, #tpu.memory_space<vmem>>, vector<10x128xf32>
    %cst = arith.constant dense<0.000000e+00> : vector<80x128xf32>
    %2 = tpu.matmul %0, %1, %cst {dimension_numbers = #tpu.dot_dimension_numbers<[1], [0], [0], [1], [0, 0, 1, 1], [], []>} : vector<80x10xf32>, vector<10x128xf32>, vector<80x128xf32> -> vector<80x128xf32>
    %3 = vector.extract_strided_slice %2 {offsets = [0, 0], sizes = [80, 64], strides = [1, 1]} : vector<80x128xf32> to vector<80x64xf32>
    %4 = vector.extract_strided_slice %2 {offsets = [0, 64], sizes = [80, 64], strides = [1, 1]} : vector<80x128xf32> to vector<80x64xf32>
    %5 = arith.mulf %3, %4 : vector<80x64xf32>
    %c0_3 = arith.constant 0 : index
    %c0_4 = arith.constant 0 : index
    %6 = vector.load %arg4[%c0_3, %c0_4] : memref<64x8xf32, #tpu.memory_space<vmem>>, vector<64x8xf32>
    %cst_5 = arith.constant dense<0.000000e+00> : vector<80x8xf32>
    %7 = tpu.matmul %5, %6, %cst_5 {dimension_numbers = #tpu.dot_dimension_numbers<[1], [0], [0], [1], [0, 0, 1, 1], [], []>} : vector<80x64xf32>, vector<64x8xf32>, vector<80x8xf32> -> vector<80x8xf32>
    %c0_6 = arith.constant 0 : index
    %c0_7 = arith.constant 0 : index
    %8 = vector.load %arg5[%c0_6, %c0_7] : memref<672x96xf32, #tpu.memory_space<vmem>>, vector<128x96xf32>
    %c128 = arith.constant 128 : index
    %c0_8 = arith.constant 0 : index
    %9 = vector.load %arg5[%c128, %c0_8] : memref<672x96xf32, #tpu.memory_space<vmem>>, vector<512x96xf32>
    %c640 = arith.constant 640 : index
    %c0_9 = arith.constant 0 : index
    %10 = vector.load %arg5[%c640, %c0_9] : memref<672x96xf32, #tpu.memory_space<vmem>>, vector<16x96xf32>
    %c656 = arith.constant 656 : index
    %c0_10 = arith.constant 0 : index
    %11 = vector.load %arg5[%c656, %c0_10] : memref<672x96xf32, #tpu.memory_space<vmem>>, vector<16x32xf32>
    %12 = tpu.iota {dimensions = array<i32: 0>} : vector<80x128xi32>
    %13 = tpu.iota {dimensions = array<i32: 1>} : vector<80x128xi32>
    %c15_i32 = arith.constant 15 : i32
    %14 = vector.broadcast %c15_i32 : i32 to vector<80x128xi32>
    %15 = arith.andi %12, %14 : vector<80x128xi32>
    %c3_i32 = arith.constant 3 : i32
    %16 = vector.broadcast %c3_i32 : i32 to vector<80x128xi32>
    %17 = arith.shrsi %13, %16 : vector<80x128xi32>
    %18 = arith.cmpi eq, %15, %17 : vector<80x128xi32>
    %cst_11 = arith.constant 1.000000e+00 : f32
    %cst_12 = arith.constant 0.000000e+00 : f32
    %19 = vector.broadcast %cst_11 : f32 to vector<80x128xf32>
    %20 = vector.broadcast %cst_12 : f32 to vector<80x128xf32>
    %21 = arith.select %18, %19, %20 : vector<80x128xi1>, vector<80x128xf32>
    %22 = tpu.concatenate %7, %7, %7, %7, %7, %7, %7, %7, %7, %7, %7, %7, %7, %7, %7, %7 in 1 : vector<80x8xf32>, vector<80x8xf32>, vector<80x8xf32>, vector<80x8xf32>, vector<80x8xf32>, vector<80x8xf32>, vector<80x8xf32>, vector<80x8xf32>, vector<80x8xf32>, vector<80x8xf32>, vector<80x8xf32>, vector<80x8xf32>, vector<80x8xf32>, vector<80x8xf32>, vector<80x8xf32>, vector<80x8xf32> -> vector<80x128xf32>
    %23 = arith.mulf %22, %21 : vector<80x128xf32>
    %cst_13 = arith.constant dense<0.000000e+00> : vector<80x96xf32>
    %24 = tpu.matmul %23, %8, %cst_13 {dimension_numbers = #tpu.dot_dimension_numbers<[1], [0], [0], [1], [0, 0, 1, 1], [], []>} : vector<80x128xf32>, vector<128x96xf32>, vector<80x96xf32> -> vector<80x96xf32>
    %25 = tpu.iota {dimensions = array<i32: 0>} : vector<16x512xi32>
    %26 = tpu.iota {dimensions = array<i32: 1>} : vector<16x512xi32>
    %c5_i32 = arith.constant 5 : i32
    %27 = vector.broadcast %c5_i32 : i32 to vector<16x512xi32>
    %28 = arith.shrsi %26, %27 : vector<16x512xi32>
    %29 = arith.cmpi eq, %25, %28 : vector<16x512xi32>
    %cst_14 = arith.constant 1.000000e+00 : f32
    %cst_15 = arith.constant 0.000000e+00 : f32
    %30 = vector.broadcast %cst_14 : f32 to vector<16x512xf32>
    %31 = vector.broadcast %cst_15 : f32 to vector<16x512xf32>
    %32 = arith.select %29, %30, %31 : vector<16x512xi1>, vector<16x512xf32>
    %cst_16 = arith.constant 0.000000e+00 : f32
    %33 = vector.broadcast %cst_16 : f32 to vector<16x32xf32>
    %34 = vector.extract_strided_slice %24 {offsets = [0, 0], sizes = [16, 96], strides = [1, 1]} : vector<80x96xf32> to vector<16x96xf32>
    %35 = arith.addf %34, %10 : vector<16x96xf32>
    %36 = tpu.concatenate %33, %33, %33, %33, %33, %33, %33, %33, %33, %33, %33, %33, %33, %33, %33, %33 in 1 : vector<16x32xf32>, vector<16x32xf32>, vector<16x32xf32>, vector<16x32xf32>, vector<16x32xf32>, vector<16x32xf32>, vector<16x32xf32>, vector<16x32xf32>, vector<16x32xf32>, vector<16x32xf32>, vector<16x32xf32>, vector<16x32xf32>, vector<16x32xf32>, vector<16x32xf32>, vector<16x32xf32>, vector<16x32xf32> -> vector<16x512xf32>
    %37 = arith.mulf %36, %32 : vector<16x512xf32>
    %cst_17 = arith.constant dense<0.000000e+00> : vector<16x96xf32>
    %38 = tpu.matmul %37, %9, %cst_17 {dimension_numbers = #tpu.dot_dimension_numbers<[1], [0], [0], [1], [0, 0, 1, 1], [], []>} : vector<16x512xf32>, vector<512x96xf32>, vector<16x96xf32> -> vector<16x96xf32>
    %39 = vector.extract_strided_slice %35 {offsets = [0, 0], sizes = [16, 64], strides = [1, 1]} : vector<16x96xf32> to vector<16x64xf32>
    %40 = vector.extract_strided_slice %38 {offsets = [0, 0], sizes = [16, 64], strides = [1, 1]} : vector<16x96xf32> to vector<16x64xf32>
    %41 = arith.addf %39, %40 : vector<16x64xf32>
    %42 = arith.negf %41 : vector<16x64xf32>
    %43 = math.exp %42 : vector<16x64xf32>
    %cst_18 = arith.constant 1.000000e+00 : f32
    %44 = vector.broadcast %cst_18 : f32 to vector<16x64xf32>
    %45 = arith.addf %44, %43 : vector<16x64xf32>
    %46 = arith.divf %44, %45 : vector<16x64xf32>
    %47 = vector.extract_strided_slice %46 {offsets = [0, 0], sizes = [16, 32], strides = [1, 1]} : vector<16x64xf32> to vector<16x32xf32>
    %48 = vector.extract_strided_slice %46 {offsets = [0, 32], sizes = [16, 32], strides = [1, 1]} : vector<16x64xf32> to vector<16x32xf32>
    %49 = vector.extract_strided_slice %35 {offsets = [0, 64], sizes = [16, 32], strides = [1, 1]} : vector<16x96xf32> to vector<16x32xf32>
    %50 = vector.extract_strided_slice %38 {offsets = [0, 64], sizes = [16, 32], strides = [1, 1]} : vector<16x96xf32> to vector<16x32xf32>
    %51 = arith.addf %50, %11 : vector<16x32xf32>
    %52 = arith.mulf %47, %51 : vector<16x32xf32>
    %53 = arith.addf %49, %52 : vector<16x32xf32>
    %54 = math.tanh %53 : vector<16x32xf32>
    %55 = arith.subf %33, %54 : vector<16x32xf32>
    %56 = arith.mulf %48, %55 : vector<16x32xf32>
    %57 = arith.addf %54, %56 : vector<16x32xf32>
    %58 = vector.extract_strided_slice %24 {offsets = [16, 0], sizes = [16, 96], strides = [1, 1]} : vector<80x96xf32> to vector<16x96xf32>
    %59 = arith.addf %58, %10 : vector<16x96xf32>
    %60 = tpu.concatenate %57, %57, %57, %57, %57, %57, %57, %57, %57, %57, %57, %57, %57, %57, %57, %57 in 1 : vector<16x32xf32>, vector<16x32xf32>, vector<16x32xf32>, vector<16x32xf32>, vector<16x32xf32>, vector<16x32xf32>, vector<16x32xf32>, vector<16x32xf32>, vector<16x32xf32>, vector<16x32xf32>, vector<16x32xf32>, vector<16x32xf32>, vector<16x32xf32>, vector<16x32xf32>, vector<16x32xf32>, vector<16x32xf32> -> vector<16x512xf32>
    %61 = arith.mulf %60, %32 : vector<16x512xf32>
    %cst_19 = arith.constant dense<0.000000e+00> : vector<16x96xf32>
    %62 = tpu.matmul %61, %9, %cst_19 {dimension_numbers = #tpu.dot_dimension_numbers<[1], [0], [0], [1], [0, 0, 1, 1], [], []>} : vector<16x512xf32>, vector<512x96xf32>, vector<16x96xf32> -> vector<16x96xf32>
    %63 = vector.extract_strided_slice %59 {offsets = [0, 0], sizes = [16, 64], strides = [1, 1]} : vector<16x96xf32> to vector<16x64xf32>
    %64 = vector.extract_strided_slice %62 {offsets = [0, 0], sizes = [16, 64], strides = [1, 1]} : vector<16x96xf32> to vector<16x64xf32>
    %65 = arith.addf %63, %64 : vector<16x64xf32>
    %66 = arith.negf %65 : vector<16x64xf32>
    %67 = math.exp %66 : vector<16x64xf32>
    %cst_20 = arith.constant 1.000000e+00 : f32
    %68 = vector.broadcast %cst_20 : f32 to vector<16x64xf32>
    %69 = arith.addf %68, %67 : vector<16x64xf32>
    %70 = arith.divf %68, %69 : vector<16x64xf32>
    %71 = vector.extract_strided_slice %70 {offsets = [0, 0], sizes = [16, 32], strides = [1, 1]} : vector<16x64xf32> to vector<16x32xf32>
    %72 = vector.extract_strided_slice %70 {offsets = [0, 32], sizes = [16, 32], strides = [1, 1]} : vector<16x64xf32> to vector<16x32xf32>
    %73 = vector.extract_strided_slice %59 {offsets = [0, 64], sizes = [16, 32], strides = [1, 1]} : vector<16x96xf32> to vector<16x32xf32>
    %74 = vector.extract_strided_slice %62 {offsets = [0, 64], sizes = [16, 32], strides = [1, 1]} : vector<16x96xf32> to vector<16x32xf32>
    %75 = arith.addf %74, %11 : vector<16x32xf32>
    %76 = arith.mulf %71, %75 : vector<16x32xf32>
    %77 = arith.addf %73, %76 : vector<16x32xf32>
    %78 = math.tanh %77 : vector<16x32xf32>
    %79 = arith.subf %57, %78 : vector<16x32xf32>
    %80 = arith.mulf %72, %79 : vector<16x32xf32>
    %81 = arith.addf %78, %80 : vector<16x32xf32>
    %82 = vector.extract_strided_slice %24 {offsets = [32, 0], sizes = [16, 96], strides = [1, 1]} : vector<80x96xf32> to vector<16x96xf32>
    %83 = arith.addf %82, %10 : vector<16x96xf32>
    %84 = tpu.concatenate %81, %81, %81, %81, %81, %81, %81, %81, %81, %81, %81, %81, %81, %81, %81, %81 in 1 : vector<16x32xf32>, vector<16x32xf32>, vector<16x32xf32>, vector<16x32xf32>, vector<16x32xf32>, vector<16x32xf32>, vector<16x32xf32>, vector<16x32xf32>, vector<16x32xf32>, vector<16x32xf32>, vector<16x32xf32>, vector<16x32xf32>, vector<16x32xf32>, vector<16x32xf32>, vector<16x32xf32>, vector<16x32xf32> -> vector<16x512xf32>
    %85 = arith.mulf %84, %32 : vector<16x512xf32>
    %cst_21 = arith.constant dense<0.000000e+00> : vector<16x96xf32>
    %86 = tpu.matmul %85, %9, %cst_21 {dimension_numbers = #tpu.dot_dimension_numbers<[1], [0], [0], [1], [0, 0, 1, 1], [], []>} : vector<16x512xf32>, vector<512x96xf32>, vector<16x96xf32> -> vector<16x96xf32>
    %87 = vector.extract_strided_slice %83 {offsets = [0, 0], sizes = [16, 64], strides = [1, 1]} : vector<16x96xf32> to vector<16x64xf32>
    %88 = vector.extract_strided_slice %86 {offsets = [0, 0], sizes = [16, 64], strides = [1, 1]} : vector<16x96xf32> to vector<16x64xf32>
    %89 = arith.addf %87, %88 : vector<16x64xf32>
    %90 = arith.negf %89 : vector<16x64xf32>
    %91 = math.exp %90 : vector<16x64xf32>
    %cst_22 = arith.constant 1.000000e+00 : f32
    %92 = vector.broadcast %cst_22 : f32 to vector<16x64xf32>
    %93 = arith.addf %92, %91 : vector<16x64xf32>
    %94 = arith.divf %92, %93 : vector<16x64xf32>
    %95 = vector.extract_strided_slice %94 {offsets = [0, 0], sizes = [16, 32], strides = [1, 1]} : vector<16x64xf32> to vector<16x32xf32>
    %96 = vector.extract_strided_slice %94 {offsets = [0, 32], sizes = [16, 32], strides = [1, 1]} : vector<16x64xf32> to vector<16x32xf32>
    %97 = vector.extract_strided_slice %83 {offsets = [0, 64], sizes = [16, 32], strides = [1, 1]} : vector<16x96xf32> to vector<16x32xf32>
    %98 = vector.extract_strided_slice %86 {offsets = [0, 64], sizes = [16, 32], strides = [1, 1]} : vector<16x96xf32> to vector<16x32xf32>
    %99 = arith.addf %98, %11 : vector<16x32xf32>
    %100 = arith.mulf %95, %99 : vector<16x32xf32>
    %101 = arith.addf %97, %100 : vector<16x32xf32>
    %102 = math.tanh %101 : vector<16x32xf32>
    %103 = arith.subf %81, %102 : vector<16x32xf32>
    %104 = arith.mulf %96, %103 : vector<16x32xf32>
    %105 = arith.addf %102, %104 : vector<16x32xf32>
    %106 = vector.extract_strided_slice %24 {offsets = [48, 0], sizes = [16, 96], strides = [1, 1]} : vector<80x96xf32> to vector<16x96xf32>
    %107 = arith.addf %106, %10 : vector<16x96xf32>
    %108 = tpu.concatenate %105, %105, %105, %105, %105, %105, %105, %105, %105, %105, %105, %105, %105, %105, %105, %105 in 1 : vector<16x32xf32>, vector<16x32xf32>, vector<16x32xf32>, vector<16x32xf32>, vector<16x32xf32>, vector<16x32xf32>, vector<16x32xf32>, vector<16x32xf32>, vector<16x32xf32>, vector<16x32xf32>, vector<16x32xf32>, vector<16x32xf32>, vector<16x32xf32>, vector<16x32xf32>, vector<16x32xf32>, vector<16x32xf32> -> vector<16x512xf32>
    %109 = arith.mulf %108, %32 : vector<16x512xf32>
    %cst_23 = arith.constant dense<0.000000e+00> : vector<16x96xf32>
    %110 = tpu.matmul %109, %9, %cst_23 {dimension_numbers = #tpu.dot_dimension_numbers<[1], [0], [0], [1], [0, 0, 1, 1], [], []>} : vector<16x512xf32>, vector<512x96xf32>, vector<16x96xf32> -> vector<16x96xf32>
    %111 = vector.extract_strided_slice %107 {offsets = [0, 0], sizes = [16, 64], strides = [1, 1]} : vector<16x96xf32> to vector<16x64xf32>
    %112 = vector.extract_strided_slice %110 {offsets = [0, 0], sizes = [16, 64], strides = [1, 1]} : vector<16x96xf32> to vector<16x64xf32>
    %113 = arith.addf %111, %112 : vector<16x64xf32>
    %114 = arith.negf %113 : vector<16x64xf32>
    %115 = math.exp %114 : vector<16x64xf32>
    %cst_24 = arith.constant 1.000000e+00 : f32
    %116 = vector.broadcast %cst_24 : f32 to vector<16x64xf32>
    %117 = arith.addf %116, %115 : vector<16x64xf32>
    %118 = arith.divf %116, %117 : vector<16x64xf32>
    %119 = vector.extract_strided_slice %118 {offsets = [0, 0], sizes = [16, 32], strides = [1, 1]} : vector<16x64xf32> to vector<16x32xf32>
    %120 = vector.extract_strided_slice %118 {offsets = [0, 32], sizes = [16, 32], strides = [1, 1]} : vector<16x64xf32> to vector<16x32xf32>
    %121 = vector.extract_strided_slice %107 {offsets = [0, 64], sizes = [16, 32], strides = [1, 1]} : vector<16x96xf32> to vector<16x32xf32>
    %122 = vector.extract_strided_slice %110 {offsets = [0, 64], sizes = [16, 32], strides = [1, 1]} : vector<16x96xf32> to vector<16x32xf32>
    %123 = arith.addf %122, %11 : vector<16x32xf32>
    %124 = arith.mulf %119, %123 : vector<16x32xf32>
    %125 = arith.addf %121, %124 : vector<16x32xf32>
    %126 = math.tanh %125 : vector<16x32xf32>
    %127 = arith.subf %105, %126 : vector<16x32xf32>
    %128 = arith.mulf %120, %127 : vector<16x32xf32>
    %129 = arith.addf %126, %128 : vector<16x32xf32>
    %130 = vector.extract_strided_slice %24 {offsets = [64, 0], sizes = [16, 96], strides = [1, 1]} : vector<80x96xf32> to vector<16x96xf32>
    %131 = arith.addf %130, %10 : vector<16x96xf32>
    %132 = tpu.concatenate %129, %129, %129, %129, %129, %129, %129, %129, %129, %129, %129, %129, %129, %129, %129, %129 in 1 : vector<16x32xf32>, vector<16x32xf32>, vector<16x32xf32>, vector<16x32xf32>, vector<16x32xf32>, vector<16x32xf32>, vector<16x32xf32>, vector<16x32xf32>, vector<16x32xf32>, vector<16x32xf32>, vector<16x32xf32>, vector<16x32xf32>, vector<16x32xf32>, vector<16x32xf32>, vector<16x32xf32>, vector<16x32xf32> -> vector<16x512xf32>
    %133 = arith.mulf %132, %32 : vector<16x512xf32>
    %cst_25 = arith.constant dense<0.000000e+00> : vector<16x96xf32>
    %134 = tpu.matmul %133, %9, %cst_25 {dimension_numbers = #tpu.dot_dimension_numbers<[1], [0], [0], [1], [0, 0, 1, 1], [], []>} : vector<16x512xf32>, vector<512x96xf32>, vector<16x96xf32> -> vector<16x96xf32>
    %135 = vector.extract_strided_slice %131 {offsets = [0, 0], sizes = [16, 64], strides = [1, 1]} : vector<16x96xf32> to vector<16x64xf32>
    %136 = vector.extract_strided_slice %134 {offsets = [0, 0], sizes = [16, 64], strides = [1, 1]} : vector<16x96xf32> to vector<16x64xf32>
    %137 = arith.addf %135, %136 : vector<16x64xf32>
    %138 = arith.negf %137 : vector<16x64xf32>
    %139 = math.exp %138 : vector<16x64xf32>
    %cst_26 = arith.constant 1.000000e+00 : f32
    %140 = vector.broadcast %cst_26 : f32 to vector<16x64xf32>
    %141 = arith.addf %140, %139 : vector<16x64xf32>
    %142 = arith.divf %140, %141 : vector<16x64xf32>
    %143 = vector.extract_strided_slice %142 {offsets = [0, 0], sizes = [16, 32], strides = [1, 1]} : vector<16x64xf32> to vector<16x32xf32>
    %144 = vector.extract_strided_slice %142 {offsets = [0, 32], sizes = [16, 32], strides = [1, 1]} : vector<16x64xf32> to vector<16x32xf32>
    %145 = vector.extract_strided_slice %131 {offsets = [0, 64], sizes = [16, 32], strides = [1, 1]} : vector<16x96xf32> to vector<16x32xf32>
    %146 = vector.extract_strided_slice %134 {offsets = [0, 64], sizes = [16, 32], strides = [1, 1]} : vector<16x96xf32> to vector<16x32xf32>
    %147 = arith.addf %146, %11 : vector<16x32xf32>
    %148 = arith.mulf %143, %147 : vector<16x32xf32>
    %149 = arith.addf %145, %148 : vector<16x32xf32>
    %150 = math.tanh %149 : vector<16x32xf32>
    %151 = arith.subf %129, %150 : vector<16x32xf32>
    %152 = arith.mulf %144, %151 : vector<16x32xf32>
    %153 = arith.addf %150, %152 : vector<16x32xf32>
    %154 = vector.extract_strided_slice %153 {offsets = [0, 16], sizes = [16, 16], strides = [1, 1]} : vector<16x32xf32> to vector<16x16xf32>
    %c0_27 = arith.constant 0 : index
    %c0_28 = arith.constant 0 : index
    %155 = vector.load %arg8[%c0_27, %c0_28] : memref<1x8xf32, #tpu.memory_space<vmem>>, vector<1x8xf32>
    %c0_29 = arith.constant 0 : index
    %c0_30 = arith.constant 0 : index
    %156 = vector.load %arg6[%c0_29, %c0_30] : memref<32x38xf32, #tpu.memory_space<vmem>>, vector<32x38xf32>
    %cst_31 = arith.constant dense<0.000000e+00> : vector<16x38xf32>
    %157 = tpu.matmul %153, %156, %cst_31 {dimension_numbers = #tpu.dot_dimension_numbers<[1], [0], [0], [1], [0, 0, 1, 1], [], []>} : vector<16x32xf32>, vector<32x38xf32>, vector<16x38xf32> -> vector<16x38xf32>
    %158 = vector.extract_strided_slice %157 {offsets = [0, 0], sizes = [16, 2], strides = [1, 1]} : vector<16x38xf32> to vector<16x2xf32>
    %159 = vector.extract_strided_slice %155 {offsets = [0, 0], sizes = [1, 2], strides = [1, 1]} : vector<1x8xf32> to vector<1x2xf32>
    %160 = vector.broadcast %159 : vector<1x2xf32> to vector<16x2xf32>
    %161 = arith.addf %158, %160 : vector<16x2xf32>
    %162 = vector.extract_strided_slice %157 {offsets = [0, 2], sizes = [16, 2], strides = [1, 1]} : vector<16x38xf32> to vector<16x2xf32>
    %163 = vector.extract_strided_slice %155 {offsets = [0, 2], sizes = [1, 2], strides = [1, 1]} : vector<1x8xf32> to vector<1x2xf32>
    %164 = vector.broadcast %163 : vector<1x2xf32> to vector<16x2xf32>
    %165 = arith.addf %162, %164 : vector<16x2xf32>
    %166 = vector.extract_strided_slice %157 {offsets = [0, 4], sizes = [16, 16], strides = [1, 1]} : vector<16x38xf32> to vector<16x16xf32>
    %167 = vector.extract_strided_slice %157 {offsets = [0, 20], sizes = [16, 16], strides = [1, 1]} : vector<16x38xf32> to vector<16x16xf32>
    %168 = vector.extract_strided_slice %157 {offsets = [0, 36], sizes = [16, 2], strides = [1, 1]} : vector<16x38xf32> to vector<16x2xf32>
    %c0_32 = arith.constant 0 : index
    %c0_33 = arith.constant 0 : index
    %169 = vector.load %arg2[%c0_32, %c0_33] : memref<16x1xf32, #tpu.memory_space<vmem>>, vector<16x1xf32>
    %170 = vector.extract_strided_slice %155 {offsets = [0, 6], sizes = [1, 2], strides = [1, 1]} : vector<1x8xf32> to vector<1x2xf32>
    %171 = vector.broadcast %169 : vector<16x1xf32> to vector<16x2xf32>
    %172 = vector.broadcast %170 : vector<1x2xf32> to vector<16x2xf32>
    %173 = arith.mulf %171, %172 : vector<16x2xf32>
    %174 = arith.addf %168, %173 : vector<16x2xf32>
    %175 = vector.extract_strided_slice %155 {offsets = [0, 4], sizes = [1, 2], strides = [1, 1]} : vector<1x8xf32> to vector<1x2xf32>
    %176 = vector.broadcast %175 : vector<1x2xf32> to vector<16x2xf32>
    %177 = arith.addf %174, %176 : vector<16x2xf32>
    %178 = arith.negf %177 : vector<16x2xf32>
    %179 = math.exp %178 : vector<16x2xf32>
    %cst_34 = arith.constant 1.000000e+00 : f32
    %180 = vector.broadcast %cst_34 : f32 to vector<16x2xf32>
    %181 = arith.addf %180, %179 : vector<16x2xf32>
    %182 = arith.divf %180, %181 : vector<16x2xf32>
    %183 = vector.extract_strided_slice %161 {offsets = [0, 0], sizes = [16, 1], strides = [1, 1]} : vector<16x2xf32> to vector<16x1xf32>
    %184 = vector.extract_strided_slice %165 {offsets = [0, 0], sizes = [16, 1], strides = [1, 1]} : vector<16x2xf32> to vector<16x1xf32>
    %cst_35 = arith.constant 1.000000e+00 : f32
    %185 = vector.broadcast %cst_35 : f32 to vector<16x1xf32>
    %186 = tpu.concatenate %183, %185 in 1 : vector<16x1xf32>, vector<16x1xf32> -> vector<16x2xf32>
    %187 = tpu.concatenate %185, %184 in 1 : vector<16x1xf32>, vector<16x1xf32> -> vector<16x2xf32>
    "tpu.trace_start"() <{level = 10 : i32, message = "nk,mk->nm"}> : () -> ()
    %cst_36 = arith.constant dense<0.000000e+00> : vector<16x16xf32>
    %188 = tpu.matmul %186, %187, %cst_36 {dimension_numbers = #tpu.dot_dimension_numbers<[1], [1], [0], [0], [0, 0, 1, 0], [], []>} : vector<16x2xf32>, vector<16x2xf32>, vector<16x16xf32> -> vector<16x16xf32>
    %cst_37 = arith.constant 0.000000e+00 : f32
    "tpu.trace_stop"() : () -> ()
    %189 = vector.broadcast %cst_37 : f32 to vector<16x16xf32>
    %190 = arith.cmpf ogt, %188, %189 : vector<16x16xf32>
    %cst_38 = arith.constant 2.000000e-01 : f32
    %191 = vector.broadcast %cst_38 : f32 to vector<16x16xf32>
    %192 = arith.mulf %191, %188 : vector<16x16xf32>
    %193 = arith.select %190, %188, %192 : vector<16x16xi1>, vector<16x16xf32>
    %cst_39 = arith.constant dense<0xFF800000> : vector<16xf32>
    %194 = vector.multi_reduction <maximumf>, %193, %cst_39 [1] : vector<16x16xf32> to vector<16xf32>
    %195 = vector.shape_cast %194 : vector<16xf32> to vector<16x1xf32>
    %196 = vector.broadcast %195 : vector<16x1xf32> to vector<16x16xf32>
    %197 = arith.subf %193, %196 : vector<16x16xf32>
    %198 = math.exp %197 : vector<16x16xf32>
    %cst_40 = arith.constant dense<0.000000e+00> : vector<16xf32>
    %199 = vector.multi_reduction <add>, %198, %cst_40 [1] : vector<16x16xf32> to vector<16xf32>
    %200 = vector.shape_cast %199 : vector<16xf32> to vector<16x1xf32>
    %201 = tpu.reciprocal %200 {approx = true} : vector<16x1xf32> -> vector<16x1xf32>
    %202 = vector.broadcast %201 : vector<16x1xf32> to vector<16x16xf32>
    %203 = arith.mulf %198, %202 : vector<16x16xf32>
    %204 = vector.extract_strided_slice %182 {offsets = [0, 0], sizes = [16, 1], strides = [1, 1]} : vector<16x2xf32> to vector<16x1xf32>
    %205 = vector.extract_strided_slice %166 {offsets = [0, 0], sizes = [16, 8], strides = [1, 1]} : vector<16x16xf32> to vector<16x8xf32>
    %206 = vector.broadcast %204 : vector<16x1xf32> to vector<16x8xf32>
    %207 = arith.mulf %206, %205 : vector<16x8xf32>
    %cst_41 = arith.constant dense<0.000000e+00> : vector<16x8xf32>
    %208 = tpu.matmul %203, %207, %cst_41 {dimension_numbers = #tpu.dot_dimension_numbers<[1], [0], [0], [1], [0, 0, 1, 1], [], []>} : vector<16x16xf32>, vector<16x8xf32>, vector<16x8xf32> -> vector<16x8xf32>
    %209 = vector.extract_strided_slice %167 {offsets = [0, 0], sizes = [16, 8], strides = [1, 1]} : vector<16x16xf32> to vector<16x8xf32>
    %210 = arith.addf %208, %209 : vector<16x8xf32>
    %cst_42 = arith.constant 0.000000e+00 : f32
    %211 = vector.broadcast %cst_42 : f32 to vector<16x8xf32>
    %212 = arith.cmpf ogt, %210, %211 : vector<16x8xf32>
    %cst_43 = arith.constant 0.000000e+00 : f32
    %213 = vector.broadcast %cst_43 : f32 to vector<16x8xf32>
    %214 = arith.minimumf %210, %213 : vector<16x8xf32>
    %215 = math.exp %214 : vector<16x8xf32>
    %cst_44 = arith.constant 1.000000e+00 : f32
    %216 = vector.broadcast %cst_44 : f32 to vector<16x8xf32>
    %217 = arith.subf %215, %216 : vector<16x8xf32>
    %218 = arith.select %212, %210, %217 : vector<16x8xi1>, vector<16x8xf32>
    %219 = vector.extract_strided_slice %161 {offsets = [0, 1], sizes = [16, 1], strides = [1, 1]} : vector<16x2xf32> to vector<16x1xf32>
    %220 = vector.extract_strided_slice %165 {offsets = [0, 1], sizes = [16, 1], strides = [1, 1]} : vector<16x2xf32> to vector<16x1xf32>
    %cst_45 = arith.constant 1.000000e+00 : f32
    %221 = vector.broadcast %cst_45 : f32 to vector<16x1xf32>
    %222 = tpu.concatenate %219, %221 in 1 : vector<16x1xf32>, vector<16x1xf32> -> vector<16x2xf32>
    %223 = tpu.concatenate %221, %220 in 1 : vector<16x1xf32>, vector<16x1xf32> -> vector<16x2xf32>
    "tpu.trace_start"() <{level = 10 : i32, message = "nk,mk->nm"}> : () -> ()
    %cst_46 = arith.constant dense<0.000000e+00> : vector<16x16xf32>
    %224 = tpu.matmul %222, %223, %cst_46 {dimension_numbers = #tpu.dot_dimension_numbers<[1], [1], [0], [0], [0, 0, 1, 0], [], []>} : vector<16x2xf32>, vector<16x2xf32>, vector<16x16xf32> -> vector<16x16xf32>
    %cst_47 = arith.constant 0.000000e+00 : f32
    "tpu.trace_stop"() : () -> ()
    %225 = vector.broadcast %cst_47 : f32 to vector<16x16xf32>
    %226 = arith.cmpf ogt, %224, %225 : vector<16x16xf32>
    %cst_48 = arith.constant 2.000000e-01 : f32
    %227 = vector.broadcast %cst_48 : f32 to vector<16x16xf32>
    %228 = arith.mulf %227, %224 : vector<16x16xf32>
    %229 = arith.select %226, %224, %228 : vector<16x16xi1>, vector<16x16xf32>
    %cst_49 = arith.constant dense<0xFF800000> : vector<16xf32>
    %230 = vector.multi_reduction <maximumf>, %229, %cst_49 [1] : vector<16x16xf32> to vector<16xf32>
    %231 = vector.shape_cast %230 : vector<16xf32> to vector<16x1xf32>
    %232 = vector.broadcast %231 : vector<16x1xf32> to vector<16x16xf32>
    %233 = arith.subf %229, %232 : vector<16x16xf32>
    %234 = math.exp %233 : vector<16x16xf32>
    %cst_50 = arith.constant dense<0.000000e+00> : vector<16xf32>
    %235 = vector.multi_reduction <add>, %234, %cst_50 [1] : vector<16x16xf32> to vector<16xf32>
    %236 = vector.shape_cast %235 : vector<16xf32> to vector<16x1xf32>
    %237 = tpu.reciprocal %236 {approx = true} : vector<16x1xf32> -> vector<16x1xf32>
    %238 = vector.broadcast %237 : vector<16x1xf32> to vector<16x16xf32>
    %239 = arith.mulf %234, %238 : vector<16x16xf32>
    %240 = vector.extract_strided_slice %182 {offsets = [0, 1], sizes = [16, 1], strides = [1, 1]} : vector<16x2xf32> to vector<16x1xf32>
    %241 = vector.extract_strided_slice %166 {offsets = [0, 8], sizes = [16, 8], strides = [1, 1]} : vector<16x16xf32> to vector<16x8xf32>
    %242 = vector.broadcast %240 : vector<16x1xf32> to vector<16x8xf32>
    %243 = arith.mulf %242, %241 : vector<16x8xf32>
    %cst_51 = arith.constant dense<0.000000e+00> : vector<16x8xf32>
    %244 = tpu.matmul %239, %243, %cst_51 {dimension_numbers = #tpu.dot_dimension_numbers<[1], [0], [0], [1], [0, 0, 1, 1], [], []>} : vector<16x16xf32>, vector<16x8xf32>, vector<16x8xf32> -> vector<16x8xf32>
    %245 = vector.extract_strided_slice %167 {offsets = [0, 8], sizes = [16, 8], strides = [1, 1]} : vector<16x16xf32> to vector<16x8xf32>
    %246 = arith.addf %244, %245 : vector<16x8xf32>
    %cst_52 = arith.constant 0.000000e+00 : f32
    %247 = vector.broadcast %cst_52 : f32 to vector<16x8xf32>
    %248 = arith.cmpf ogt, %246, %247 : vector<16x8xf32>
    %cst_53 = arith.constant 0.000000e+00 : f32
    %249 = vector.broadcast %cst_53 : f32 to vector<16x8xf32>
    %250 = arith.minimumf %246, %249 : vector<16x8xf32>
    %251 = math.exp %250 : vector<16x8xf32>
    %cst_54 = arith.constant 1.000000e+00 : f32
    %252 = vector.broadcast %cst_54 : f32 to vector<16x8xf32>
    %253 = arith.subf %251, %252 : vector<16x8xf32>
    %254 = arith.select %248, %246, %253 : vector<16x8xi1>, vector<16x8xf32>
    %255 = tpu.concatenate %218, %254 in 1 : vector<16x8xf32>, vector<16x8xf32> -> vector<16x16xf32>
    %c0_55 = arith.constant 0 : index
    %c0_56 = arith.constant 0 : index
    %256 = vector.load %arg7[%c0_55, %c0_56] : memref<16x66xf32, #tpu.memory_space<vmem>>, vector<16x66xf32>
    %257 = tpu.concatenate %255, %154 in 1 : vector<16x16xf32>, vector<16x16xf32> -> vector<16x32xf32>
    %258 = vector.extract_strided_slice %256 {offsets = [0, 0], sizes = [16, 32], strides = [1, 1]} : vector<16x66xf32> to vector<16x32xf32>
    %259 = arith.mulf %257, %258 : vector<16x32xf32>
    %cst_57 = arith.constant dense<0.000000e+00> : vector<16xf32>
    %260 = vector.multi_reduction <add>, %259, %cst_57 [1] : vector<16x32xf32> to vector<16xf32>
    %261 = vector.shape_cast %260 : vector<16xf32> to vector<16x1xf32>
    %262 = vector.extract_strided_slice %256 {offsets = [0, 32], sizes = [16, 32], strides = [1, 1]} : vector<16x66xf32> to vector<16x32xf32>
    %263 = arith.mulf %257, %262 : vector<16x32xf32>
    %cst_58 = arith.constant dense<0.000000e+00> : vector<16xf32>
    %264 = vector.multi_reduction <add>, %263, %cst_58 [1] : vector<16x32xf32> to vector<16xf32>
    %265 = vector.shape_cast %264 : vector<16xf32> to vector<16x1xf32>
    %266 = tpu.concatenate %261, %265 in 1 : vector<16x1xf32>, vector<16x1xf32> -> vector<16x2xf32>
    %267 = vector.extract_strided_slice %256 {offsets = [0, 64], sizes = [16, 2], strides = [1, 1]} : vector<16x66xf32> to vector<16x2xf32>
    %268 = arith.addf %266, %267 : vector<16x2xf32>
    %cst_59 = arith.constant 0.000000e+00 : f32
    %269 = vector.broadcast %cst_59 : f32 to vector<16x2xf32>
    %270 = arith.cmpf ogt, %268, %269 : vector<16x2xf32>
    %cst_60 = arith.constant 0.000000e+00 : f32
    %271 = vector.broadcast %cst_60 : f32 to vector<16x2xf32>
    %272 = arith.minimumf %268, %271 : vector<16x2xf32>
    %273 = math.exp %272 : vector<16x2xf32>
    %cst_61 = arith.constant 1.000000e+00 : f32
    %274 = vector.broadcast %cst_61 : f32 to vector<16x2xf32>
    %275 = arith.subf %273, %274 : vector<16x2xf32>
    %276 = arith.select %270, %268, %275 : vector<16x2xi1>, vector<16x2xf32>
    %cst_62 = arith.constant dense<0xFF800000> : vector<16xf32>
    %277 = vector.multi_reduction <maximumf>, %276, %cst_62 [1] : vector<16x2xf32> to vector<16xf32>
    %278 = vector.shape_cast %277 : vector<16xf32> to vector<16x1xf32>
    %279 = vector.broadcast %278 : vector<16x1xf32> to vector<16x2xf32>
    %280 = arith.subf %276, %279 : vector<16x2xf32>
    %281 = math.exp %280 : vector<16x2xf32>
    %cst_63 = arith.constant dense<0.000000e+00> : vector<16xf32>
    %282 = vector.multi_reduction <add>, %281, %cst_63 [1] : vector<16x2xf32> to vector<16xf32>
    %283 = vector.shape_cast %282 : vector<16xf32> to vector<16x1xf32>
    %284 = tpu.reciprocal %283 : vector<16x1xf32> -> vector<16x1xf32>
    %285 = vector.broadcast %284 : vector<16x1xf32> to vector<16x2xf32>
    %286 = arith.mulf %281, %285 : vector<16x2xf32>
    %c0_64 = arith.constant 0 : index
    %c0_65 = arith.constant 0 : index
    %287 = vector.load %arg9[%c0_64, %c0_65] : memref<16x2xf32, #tpu.memory_space<vmem>>, vector<16x2xf32>
    tpu.vector_store %arg9[%c0_64, %c0_65], %286 {strides = array<i32>} : memref<16x2xf32, #tpu.memory_space<vmem>>, vector<16x2xf32>,
    return
  }
  func.func @transform_0(%arg0: i32) -> (i32, i32) {
    %c0_i32 = arith.constant 0 : i32
    %c0_i32_0 = arith.constant 0 : i32
    %c0_i32_1 = arith.constant 0 : i32
    return %c0_i32, %c0_i32_0 : i32, i32
  }
  func.func @transform_1(%arg0: i32) -> (i32, i32) {
    %c0_i32 = arith.constant 0 : i32
    %c0_i32_0 = arith.constant 0 : i32
    %c0_i32_1 = arith.constant 0 : i32
    return %c0_i32, %c0_i32_0 : i32, i32
  }
  func.func @transform_2(%arg0: i32) -> (i32, i32) {
    %c0_i32 = arith.constant 0 : i32
    %c0_i32_0 = arith.constant 0 : i32
    %c0_i32_1 = arith.constant 0 : i32
    return %c0_i32, %c0_i32_0 : i32, i32
  }
  func.func @transform_3(%arg0: i32) -> (i32, i32) {
    %c0_i32 = arith.constant 0 : i32
    %c0_i32_0 = arith.constant 0 : i32
    %c0_i32_1 = arith.constant 0 : i32
    return %c0_i32, %c0_i32_0 : i32, i32
  }
  func.func @transform_4(%arg0: i32) -> (i32, i32) {
    %c0_i32 = arith.constant 0 : i32
    %c0_i32_0 = arith.constant 0 : i32
    %c0_i32_1 = arith.constant 0 : i32
    return %c0_i32, %c0_i32_0 : i32, i32
  }
  func.func @transform_5(%arg0: i32) -> (i32, i32) {
    %c0_i32 = arith.constant 0 : i32
    %c0_i32_0 = arith.constant 0 : i32
    %c0_i32_1 = arith.constant 0 : i32
    return %c0_i32, %c0_i32_0 : i32, i32
  }
  func.func @transform_6(%arg0: i32) -> (i32, i32) {
    %c0_i32 = arith.constant 0 : i32
    %c0_i32_0 = arith.constant 0 : i32
    %c0_i32_1 = arith.constant 0 : i32
    return %c0_i32, %c0_i32_0 : i32, i32
  }
  func.func @transform_7(%arg0: i32) -> (i32, i32) {
    %c0_i32 = arith.constant 0 : i32
    %c0_i32_0 = arith.constant 0 : i32
    %c0_i32_1 = arith.constant 0 : i32
    return %c0_i32, %c0_i32_0 : i32, i32
  }
  func.func @transform_8(%arg0: i32) -> (i32, i32) {
    %c0_i32 = arith.constant 0 : i32
    %c0_i32_0 = arith.constant 0 : i32
    %c0_i32_1 = arith.constant 0 : i32
    return %c0_i32, %c0_i32_0 : i32, i32
  }
}

</mosaic_0001>

<llo_original>
// kernel: ad_gat_forward.1
$region0: #{ad_gat_forward.1}
  #allocation0 [shape = 'u32[]', space=smem, size = 0x4, offset = 0x4, fixed_abs, tag = 'smem constant byte address 0x4 - core index']
  #allocation1 [shape = 'u32[144,128]{1,0:T(1,128)}', space=vmem, size = 0x12000, scoped, tag = 'internal scratch']
  %s0 = inlined_call_operand.vmem [shape: f32[80,10], index: 0, kind: input, shape index: {}]
  %s1 = inlined_call_operand.vmem [shape: f32[16,1], index: 1, kind: input, shape index: {}]
  %s2 = inlined_call_operand.vmem [shape: f32[10,128], index: 2, kind: input, shape index: {}]
  %s3 = inlined_call_operand.vmem [shape: f32[64,8], index: 3, kind: input, shape index: {}]
  %s4 = inlined_call_operand.vmem [shape: f32[672,96], index: 4, kind: input, shape index: {}]
  %s5 = inlined_call_operand.vmem [shape: f32[32,38], index: 5, kind: input, shape index: {}]
  %s6 = inlined_call_operand.vmem [shape: f32[16,66], index: 6, kind: input, shape index: {}]
  %s7 = inlined_call_operand.vmem [shape: f32[1,8], index: 7, kind: input, shape index: {}]
  %s8 = inlined_call_operand.vmem [shape: f32[16,2], index: 8, kind: output, shape index: {}]
  %s9 = sld [smem:[#allocation0]]
  $region42: #{ad_gat_forward.1} parent=0
    _
  %s11 = ssub.s32 1, %s9
  %s12 = scalar_select 0, %s11, %s9
  // Predicated region
  $region2: #{ad_gat_forward.1} parent=0 // pred_check
    _
  $region3: #{ad_gat_forward.1} parent=0 // pred_check_branch
    %14 = sbr.rel (0) target = $region5
  $region4: #{ad_gat_forward.1} parent=0 // pred_region
    _
  $region5: #{ad_gat_forward.1} parent=0 // pred_fallthru
    _
  // Predicated region
  $region6: #{ad_gat_forward.1} parent=0 // pred_check
    _
  $region7: #{ad_gat_forward.1} parent=0 // pred_check_branch
    %16 = sbr.rel (0) target = $region9
  $region8: #{ad_gat_forward.1} parent=0 // pred_region
    _
  $region9: #{ad_gat_forward.1} parent=0 // pred_fallthru
    _
  // Predicated region
  $region10: #{ad_gat_forward.1} parent=0 // pred_check
    _
  $region11: #{ad_gat_forward.1} parent=0 // pred_check_branch
    %18 = sbr.rel (0) target = $region13
  $region12: #{ad_gat_forward.1} parent=0 // pred_region
    _
  $region13: #{ad_gat_forward.1} parent=0 // pred_fallthru
    _
  // Predicated region
  $region14: #{ad_gat_forward.1} parent=0 // pred_check
    _
  $region15: #{ad_gat_forward.1} parent=0 // pred_check_branch
    %20 = sbr.rel (0) target = $region17
  $region16: #{ad_gat_forward.1} parent=0 // pred_region
    _
  $region17: #{ad_gat_forward.1} parent=0 // pred_fallthru
    _
  // Predicated region
  $region18: #{ad_gat_forward.1} parent=0 // pred_check
    _
  $region19: #{ad_gat_forward.1} parent=0 // pred_check_branch
    %22 = sbr.rel (0) target = $region21
  $region20: #{ad_gat_forward.1} parent=0 // pred_region
    _
  $region21: #{ad_gat_forward.1} parent=0 // pred_fallthru
    _
  // Predicated region
  $region22: #{ad_gat_forward.1} parent=0 // pred_check
    _
  $region23: #{ad_gat_forward.1} parent=0 // pred_check_branch
    %24 = sbr.rel (0) target = $region25
  $region24: #{ad_gat_forward.1} parent=0 // pred_region
    _
  $region25: #{ad_gat_forward.1} parent=0 // pred_fallthru
    _
  // Predicated region
  $region26: #{ad_gat_forward.1} parent=0 // pred_check
    _
  $region27: #{ad_gat_forward.1} parent=0 // pred_check_branch
    %26 = sbr.rel (0) target = $region29
  $region28: #{ad_gat_forward.1} parent=0 // pred_region
    _
  $region29: #{ad_gat_forward.1} parent=0 // pred_fallthru
    _
  // Predicated region
  $region30: #{ad_gat_forward.1} parent=0 // pred_check
    _
  $region31: #{ad_gat_forward.1} parent=0 // pred_check_branch
    %28 = sbr.rel (0) target = $region33
  $region32: #{ad_gat_forward.1} parent=0 // pred_region
    _
  $region33: #{ad_gat_forward.1} parent=0 // pred_fallthru
    _
  %v29 = vld [vmem:[%s0] sm:$0xff]
  %v30 = vld [vmem:[%s0 + $0x8] sm:$0xff]
  %v31 = vld [vmem:[%s0 + $0x10] sm:$0xff]
  %v32 = vld [vmem:[%s0 + $0x18] sm:$0xff]
  %v33 = vld [vmem:[%s0 + $0x20] sm:$0xff]
  %v34 = vld [vmem:[%s0 + $0x28] sm:$0xff]
  %v35 = vld [vmem:[%s0 + $0x30] sm:$0xff]
  %v36 = vld [vmem:[%s0 + $0x38] sm:$0xff]
  %v37 = vld [vmem:[%s0 + $0x40] sm:$0xff]
  %v38 = vld [vmem:[%s0 + $0x48] sm:$0xff]
  %v39 = vld [vmem:[%s2] sm:$0xff]
  %v40 = vld [vmem:[%s2 + $0x8] sm:$0x3]
  %vm41 = vcmask 80896
  %v43 = vsel %vm41, %v29, 0
  %v46 = vsel %vm41, %v30, 0
  %v49 = vsel %vm41, %v31, 0
  %v52 = vsel %vm41, %v32, 0
  %v55 = vsel %vm41, %v33, 0
  %v58 = vsel %vm41, %v34, 0
  %v61 = vsel %vm41, %v35, 0
  %v64 = vsel %vm41, %v36, 0
  %v67 = vsel %vm41, %v37, 0
  %v70 = vsel %vm41, %v38, 0
  %vm72 = vcmask 1041408
  %v74 = vsel %vm72, %v40, 0
  %76 = vmatprep.subr.mxu0 0.0
  %77 = vmatpush1.msra.mxu0 0.0
  %78 = vmatprep.subr.mxu0 0.0
  %79 = vmatpush1.msra.mxu0 0.0
  %80 = vmatprep.subr.mxu0 0.0
  %81 = vmatpush1.msra.mxu0 0.0
  %82 = vmatprep.subr.mxu0 0.0
  %83 = vmatpush1.msra.mxu0 0.0
  %84 = vmatprep.subr.mxu0 0.0
  %85 = vmatpush1.msra.mxu0 0.0
  %86 = vmatprep.subr.mxu0 0.0
  %87 = vmatpush1.msra.mxu0 0.0
  %88 = vmatprep.subr.mxu0 0.0
  %89 = vmatpush1.msra.mxu0 0.0
  %90 = vmatprep.subr.mxu0 0.0
  %91 = vmatpush1.msra.mxu0 0.0
  %92 = vmatprep.subr.mxu0 0.0
  %93 = vmatpush1.msra.mxu0 0.0
  %94 = vmatprep.subr.mxu0 0.0
  %95 = vmatpush1.msra.mxu0 0.0
  %96 = vmatprep.subr.mxu0 0.0
  %97 = vmatpush1.msra.mxu0 0.0
  %98 = vmatprep.subr.mxu0 0.0
  %99 = vmatpush1.msra.mxu0 0.0
  %100 = vmatprep.subr.mxu0 0.0
  %101 = vmatpush1.msra.mxu0 0.0
  %102 = vmatprep.subr.mxu0 0.0
  %103 = vmatpush1.msra.mxu0 0.0
  %104 = vmatprep.subr.mxu0 0.0
  %105 = vmatpush1.msra.mxu0 %v74
  %106 = vmatprep.subr.mxu0 0.0
  %107 = vmatpush1.msra.mxu0 %v39
  %108 = vmatprep.subr.mxu0 0.0
  %109 = vmatpush2.msra.mxu0 0.0
  %110 = vmatprep.subr.mxu0 0.0
  %111 = vmatpush2.msra.mxu0 0.0
  %112 = vmatprep.subr.mxu0 0.0
  %113 = vmatpush2.msra.mxu0 0.0
  %114 = vmatprep.subr.mxu0 0.0
  %115 = vmatpush2.msra.mxu0 0.0
  %116 = vmatprep.subr.mxu0 0.0
  %117 = vmatpush2.msra.mxu0 0.0
  %118 = vmatprep.subr.mxu0 0.0
  %119 = vmatpush2.msra.mxu0 0.0
  %120 = vmatprep.subr.mxu0 0.0
  %121 = vmatpush2.msra.mxu0 0.0
  %122 = vmatprep.subr.mxu0 0.0
  %123 = vmatpush2.msra.mxu0 0.0
  %124 = vmatprep.subr.mxu0 0.0
  %125 = vmatpush2.msra.mxu0 0.0
  %126 = vmatprep.subr.mxu0 0.0
  %127 = vmatpush2.msra.mxu0 0.0
  %128 = vmatprep.subr.mxu0 0.0
  %129 = vmatpush2.msra.mxu0 0.0
  %130 = vmatprep.subr.mxu0 0.0
  %131 = vmatpush2.msra.mxu0 0.0
  %132 = vmatprep.subr.mxu0 0.0
  %133 = vmatpush2.msra.mxu0 0.0
  %134 = vmatprep.subr.mxu0 0.0
  %135 = vmatpush2.msra.mxu0 0.0
  %136 = vmatprep.subr.mxu0 0.0
  %137 = vmatpush2.msra.mxu0 0.0
  %138 = vmatprep.subr.mxu0 0.0
  %139 = vmatpush2.msra.mxu0 0.0
  %140 = vmatprep.mubr.f32.mxu0 0.0
  %141 = vmatmul.mubr.f32.gmra.mxu0 %v43
  %v142 = vpop.f32.mrf.mxu0
  %v143 = vadd.f32 0.0, %v142
  %v144 = vpop.f32.mrf.mxu0
  %145 = vmatprep.mubr.f32.mxu0 0.0
  %146 = vmatmul.mubr.f32.gmra.mxu0 %v46
  %v147 = vpop.f32.mrf.mxu0
  %v148 = vadd.f32 0.0, %v147
  %v149 = vpop.f32.mrf.mxu0
  %150 = vmatprep.mubr.f32.mxu0 0.0
  %151 = vmatmul.mubr.f32.gmra.mxu0 %v49
  %v152 = vpop.f32.mrf.mxu0
  %v153 = vadd.f32 0.0, %v152
  %v154 = vpop.f32.mrf.mxu0
  %155 = vmatprep.mubr.f32.mxu0 0.0
  %156 = vmatmul.mubr.f32.gmra.mxu0 %v52
  %v157 = vpop.f32.mrf.mxu0
  %v158 = vadd.f32 0.0, %v157
  %v159 = vpop.f32.mrf.mxu0
  %160 = vmatprep.mubr.f32.mxu0 0.0
  %161 = vmatmul.mubr.f32.gmra.mxu0 %v55
  %v162 = vpop.f32.mrf.mxu0
  %v163 = vadd.f32 0.0, %v162
  %v164 = vpop.f32.mrf.mxu0
  %165 = vmatprep.mubr.f32.mxu0 0.0
  %166 = vmatmul.mubr.f32.gmra.mxu0 %v58
  %v167 = vpop.f32.mrf.mxu0
  %v168 = vadd.f32 0.0, %v167
  %v169 = vpop.f32.mrf.mxu0
  %170 = vmatprep.mubr.f32.mxu0 0.0
  %171 = vmatmul.mubr.f32.gmra.mxu0 %v61
  %v172 = vpop.f32.mrf.mxu0
  %v173 = vadd.f32 0.0, %v172
  %v174 = vpop.f32.mrf.mxu0
  %175 = vmatprep.mubr.f32.mxu0 0.0
  %176 = vmatmul.mubr.f32.gmra.mxu0 %v64
  %v177 = vpop.f32.mrf.mxu0
  %v178 = vadd.f32 0.0, %v177
  %v179 = vpop.f32.mrf.mxu0
  %180 = vmatprep.mubr.f32.mxu0 0.0
  %181 = vmatmul.mubr.f32.gmra.mxu0 %v67
  %v182 = vpop.f32.mrf.mxu0
  %v183 = vadd.f32 0.0, %v182
  %v184 = vpop.f32.mrf.mxu0
  %185 = vmatprep.mubr.f32.mxu0 0.0
  %186 = vmatmul.mubr.f32.gmra.mxu0 %v70
  %v187 = vpop.f32.mrf.mxu0
  %v188 = vadd.f32 0.0, %v187
  %v189 = vpop.f32.mrf.mxu0
  %190 = vdwg.mxu0
  %201 = vrot.lane.b32.xlu0 %v143, 64
  %v202 = vpop.permute.xlu0 %201
  %203 = vrot.lane.b32.xlu0 %v148, 64
  %v204 = vpop.permute.xlu0 %203
  %205 = vrot.lane.b32.xlu0 %v153, 64
  %v206 = vpop.permute.xlu0 %205
  %207 = vrot.lane.b32.xlu0 %v158, 64
  %v208 = vpop.permute.xlu0 %207
  %209 = vrot.lane.b32.xlu0 %v163, 64
  %v210 = vpop.permute.xlu0 %209
  %211 = vrot.lane.b32.xlu0 %v168, 64
  %v212 = vpop.permute.xlu0 %211
  %213 = vrot.lane.b32.xlu0 %v173, 64
  %v214 = vpop.permute.xlu0 %213
  %215 = vrot.lane.b32.xlu0 %v178, 64
  %v216 = vpop.permute.xlu0 %215
  %217 = vrot.lane.b32.xlu0 %v183, 64
  %v218 = vpop.permute.xlu0 %217
  %219 = vrot.lane.b32.xlu0 %v188, 64
  %v220 = vpop.permute.xlu0 %219
  %v231 = vmul.f32 %v143, %v202
  %v232 = vmul.f32 %v148, %v204
  %v233 = vmul.f32 %v153, %v206
  %v234 = vmul.f32 %v158, %v208
  %v235 = vmul.f32 %v163, %v210
  %v236 = vmul.f32 %v168, %v212
  %v237 = vmul.f32 %v173, %v214
  %v238 = vmul.f32 %v178, %v216
  %v239 = vmul.f32 %v183, %v218
  %v240 = vmul.f32 %v188, %v220
  %v241 = vld [vmem:[%s3] sm:$0xff]
  %v242 = vld [vmem:[%s3 + $0x8] sm:$0xff]
  %v243 = vld [vmem:[%s3 + $0x10] sm:$0xff]
  %v244 = vld [vmem:[%s3 + $0x18] sm:$0xff]
  %v245 = vld [vmem:[%s3 + $0x20] sm:$0xff]
  %v246 = vld [vmem:[%s3 + $0x28] sm:$0xff]
  %v247 = vld [vmem:[%s3 + $0x30] sm:$0xff]
  %v248 = vld [vmem:[%s3 + $0x38] sm:$0xff]
  %vm249 = vcmask 523264
  %v251 = vsel %vm249, %v231, 0
  %v254 = vsel %vm249, %v232, 0
  %v257 = vsel %vm249, %v233, 0
  %v260 = vsel %vm249, %v234, 0
  %v263 = vsel %vm249, %v235, 0
  %v266 = vsel %vm249, %v236, 0
  %v269 = vsel %vm249, %v237, 0
  %v272 = vsel %vm249, %v238, 0
  %v275 = vsel %vm249, %v239, 0
  %v278 = vsel %vm249, %v240, 0
  %280 = vmatprep.subr.mxu0 0.0
  %281 = vmatpush1.msra.mxu0 0.0
  %282 = vmatprep.subr.mxu0 0.0
  %283 = vmatpush1.msra.mxu0 0.0
  %284 = vmatprep.subr.mxu0 0.0
  %285 = vmatpush1.msra.mxu0 0.0
  %286 = vmatprep.subr.mxu0 0.0
  %287 = vmatpush1.msra.mxu0 0.0
  %288 = vmatprep.subr.mxu0 0.0
  %289 = vmatpush1.msra.mxu0 0.0
  %290 = vmatprep.subr.mxu0 0.0
  %291 = vmatpush1.msra.mxu0 0.0
  %292 = vmatprep.subr.mxu0 0.0
  %293 = vmatpush1.msra.mxu0 0.0
  %294 = vmatprep.subr.mxu0 0.0
  %295 = vmatpush1.msra.mxu0 0.0
  %296 = vmatprep.subr.mxu0 0.0
  %297 = vmatpush1.msra.mxu0 %v248
  %298 = vmatprep.subr.mxu0 0.0
  %299 = vmatpush1.msra.mxu0 %v247
  %300 = vmatprep.subr.mxu0 0.0
  %301 = vmatpush1.msra.mxu0 %v246
  %302 = vmatprep.subr.mxu0 0.0
  %303 = vmatpush1.msra.mxu0 %v245
  %304 = vmatprep.subr.mxu0 0.0
  %305 = vmatpush1.msra.mxu0 %v244
  %306 = vmatprep.subr.mxu0 0.0
  %307 = vmatpush1.msra.mxu0 %v243
  %308 = vmatprep.subr.mxu0 0.0
  %309 = vmatpush1.msra.mxu0 %v242
  %310 = vmatprep.subr.mxu0 0.0
  %311 = vmatpush1.msra.mxu0 %v241
  %312 = vmatprep.subr.mxu0 0.0
  %313 = vmatpush2.msra.mxu0 0.0
  %314 = vmatprep.subr.mxu0 0.0
  %315 = vmatpush2.msra.mxu0 0.0
  %316 = vmatprep.subr.mxu0 0.0
  %317 = vmatpush2.msra.mxu0 0.0
  %318 = vmatprep.subr.mxu0 0.0
  %319 = vmatpush2.msra.mxu0 0.0
  %320 = vmatprep.subr.mxu0 0.0
  %321 = vmatpush2.msra.mxu0 0.0
  %322 = vmatprep.subr.mxu0 0.0
  %323 = vmatpush2.msra.mxu0 0.0
  %324 = vmatprep.subr.mxu0 0.0
  %325 = vmatpush2.msra.mxu0 0.0
  %326 = vmatprep.subr.mxu0 0.0
  %327 = vmatpush2.msra.mxu0 0.0
  %328 = vmatprep.subr.mxu0 0.0
  %329 = vmatpush2.msra.mxu0 0.0
  %330 = vmatprep.subr.mxu0 0.0
  %331 = vmatpush2.msra.mxu0 0.0
  %332 = vmatprep.subr.mxu0 0.0
  %333 = vmatpush2.msra.mxu0 0.0
  %334 = vmatprep.subr.mxu0 0.0
  %335 = vmatpush2.msra.mxu0 0.0
  %336 = vmatprep.subr.mxu0 0.0
  %337 = vmatpush2.msra.mxu0 0.0
  %338 = vmatprep.subr.mxu0 0.0
  %339 = vmatpush2.msra.mxu0 0.0
  %340 = vmatprep.subr.mxu0 0.0
  %341 = vmatpush2.msra.mxu0 0.0
  %342 = vmatprep.subr.mxu0 0.0
  %343 = vmatpush2.msra.mxu0 0.0
  %344 = vmatprep.mubr.f32.mxu0 0.0
  %345 = vmatmul.mubr.f32.gmra.mxu0 %v251
  %v346 = vpop.f32.mrf.mxu0
  %v347 = vadd.f32 0.0, %v346
  %v348 = vpop.f32.mrf.mxu0
  %349 = vmatprep.mubr.f32.mxu0 0.0
  %350 = vmatmul.mubr.f32.gmra.mxu0 %v254
  %v351 = vpop.f32.mrf.mxu0
  %v352 = vadd.f32 0.0, %v351
  %v353 = vpop.f32.mrf.mxu0
  %354 = vmatprep.mubr.f32.mxu0 0.0
  %355 = vmatmul.mubr.f32.gmra.mxu0 %v257
  %v356 = vpop.f32.mrf.mxu0
  %v357 = vadd.f32 0.0, %v356
  %v358 = vpop.f32.mrf.mxu0
  %359 = vmatprep.mubr.f32.mxu0 0.0
  %360 = vmatmul.mubr.f32.gmra.mxu0 %v260
  %v361 = vpop.f32.mrf.mxu0
  %v362 = vadd.f32 0.0, %v361
  %v363 = vpop.f32.mrf.mxu0
  %364 = vmatprep.mubr.f32.mxu0 0.0
  %365 = vmatmul.mubr.f32.gmra.mxu0 %v263
  %v366 = vpop.f32.mrf.mxu0
  %v367 = vadd.f32 0.0, %v366
  %v368 = vpop.f32.mrf.mxu0
  %369 = vmatprep.mubr.f32.mxu0 0.0
  %370 = vmatmul.mubr.f32.gmra.mxu0 %v266
  %v371 = vpop.f32.mrf.mxu0
  %v372 = vadd.f32 0.0, %v371
  %v373 = vpop.f32.mrf.mxu0
  %374 = vmatprep.mubr.f32.mxu0 0.0
  %375 = vmatmul.mubr.f32.gmra.mxu0 %v269
  %v376 = vpop.f32.mrf.mxu0
  %v377 = vadd.f32 0.0, %v376
  %v378 = vpop.f32.mrf.mxu0
  %379 = vmatprep.mubr.f32.mxu0 0.0
  %380 = vmatmul.mubr.f32.gmra.mxu0 %v272
  %v381 = vpop.f32.mrf.mxu0
  %v382 = vadd.f32 0.0, %v381
  %v383 = vpop.f32.mrf.mxu0
  %384 = vmatprep.mubr.f32.mxu0 0.0
  %385 = vmatmul.mubr.f32.gmra.mxu0 %v275
  %v386 = vpop.f32.mrf.mxu0
  %v387 = vadd.f32 0.0, %v386
  %v388 = vpop.f32.mrf.mxu0
  %389 = vmatprep.mubr.f32.mxu0 0.0
  %390 = vmatmul.mubr.f32.gmra.mxu0 %v278
  %v391 = vpop.f32.mrf.mxu0
  %v392 = vadd.f32 0.0, %v391
  %v393 = vpop.f32.mrf.mxu0
  %394 = vdwg.mxu0
  %v395 = vld [vmem:[%s4] sm:$0xff]
  %v396 = vld [vmem:[%s4 + $0x8] sm:$0xff]
  %v397 = vld [vmem:[%s4 + $0x10] sm:$0xff]
  %v398 = vld [vmem:[%s4 + $0x18] sm:$0xff]
  %v399 = vld [vmem:[%s4 + $0x20] sm:$0xff]
  %v400 = vld [vmem:[%s4 + $0x28] sm:$0xff]
  %v401 = vld [vmem:[%s4 + $0x30] sm:$0xff]
  %v402 = vld [vmem:[%s4 + $0x38] sm:$0xff]
  %v403 = vld [vmem:[%s4 + $0x40] sm:$0xff]
  %v404 = vld [vmem:[%s4 + $0x48] sm:$0xff]
  %v405 = vld [vmem:[%s4 + $0x50] sm:$0xff]
  %v406 = vld [vmem:[%s4 + $0x58] sm:$0xff]
  %v407 = vld [vmem:[%s4 + $0x60] sm:$0xff]
  %v408 = vld [vmem:[%s4 + $0x68] sm:$0xff]
  %v409 = vld [vmem:[%s4 + $0x70] sm:$0xff]
  %v410 = vld [vmem:[%s4 + $0x78] sm:$0xff]
  %v411 = vld [vmem:[%s4 + $0x80] sm:$0xff]
  %v412 = vld [vmem:[%s4 + $0x88] sm:$0xff]
  %v413 = vld [vmem:[%s4 + $0x90] sm:$0xff]
  %v414 = vld [vmem:[%s4 + $0x98] sm:$0xff]
  %v415 = vld [vmem:[%s4 + $0xa0] sm:$0xff]
  %v416 = vld [vmem:[%s4 + $0xa8] sm:$0xff]
  %v417 = vld [vmem:[%s4 + $0xb0] sm:$0xff]
  %v418 = vld [vmem:[%s4 + $0xb8] sm:$0xff]
  %v419 = vld [vmem:[%s4 + $0xc0] sm:$0xff]
  %v420 = vld [vmem:[%s4 + $0xc8] sm:$0xff]
  %v421 = vld [vmem:[%s4 + $0xd0] sm:$0xff]
  %v422 = vld [vmem:[%s4 + $0xd8] sm:$0xff]
  %v423 = vld [vmem:[%s4 + $0xe0] sm:$0xff]
  %v424 = vld [vmem:[%s4 + $0xe8] sm:$0xff]
  %v425 = vld [vmem:[%s4 + $0xf0] sm:$0xff]
  %v426 = vld [vmem:[%s4 + $0xf8] sm:$0xff]
  %v427 = vld [vmem:[%s4 + $0x100] sm:$0xff]
  %v428 = vld [vmem:[%s4 + $0x108] sm:$0xff]
  %v429 = vld [vmem:[%s4 + $0x110] sm:$0xff]
  %v430 = vld [vmem:[%s4 + $0x118] sm:$0xff]
  %v431 = vld [vmem:[%s4 + $0x120] sm:$0xff]
  %v432 = vld [vmem:[%s4 + $0x128] sm:$0xff]
  %v433 = vld [vmem:[%s4 + $0x130] sm:$0xff]
  %v434 = vld [vmem:[%s4 + $0x138] sm:$0xff]
  %v435 = vld [vmem:[%s4 + $0x140] sm:$0xff]
  %v436 = vld [vmem:[%s4 + $0x148] sm:$0xff]
  %v437 = vld [vmem:[%s4 + $0x150] sm:$0xff]
  %v438 = vld [vmem:[%s4 + $0x158] sm:$0xff]
  %v439 = vld [vmem:[%s4 + $0x160] sm:$0xff]
  %v440 = vld [vmem:[%s4 + $0x168] sm:$0xff]
  %v441 = vld [vmem:[%s4 + $0x170] sm:$0xff]
  %v442 = vld [vmem:[%s4 + $0x178] sm:$0xff]
  %v443 = vld [vmem:[%s4 + $0x180] sm:$0xff]
  %v444 = vld [vmem:[%s4 + $0x188] sm:$0xff]
  %v445 = vld [vmem:[%s4 + $0x190] sm:$0xff]
  %v446 = vld [vmem:[%s4 + $0x198] sm:$0xff]
  %v447 = vld [vmem:[%s4 + $0x1a0] sm:$0xff]
  %v448 = vld [vmem:[%s4 + $0x1a8] sm:$0xff]
  %v449 = vld [vmem:[%s4 + $0x1b0] sm:$0xff]
  %v450 = vld [vmem:[%s4 + $0x1b8] sm:$0xff]
  %v451 = vld [vmem:[%s4 + $0x1c0] sm:$0xff]
  %v452 = vld [vmem:[%s4 + $0x1c8] sm:$0xff]
  %v453 = vld [vmem:[%s4 + $0x1d0] sm:$0xff]
  %v454 = vld [vmem:[%s4 + $0x1d8] sm:$0xff]
  %v455 = vld [vmem:[%s4 + $0x1e0] sm:$0xff]
  %v456 = vld [vmem:[%s4 + $0x1e8] sm:$0xff]
  %v457 = vld [vmem:[%s4 + $0x1f0] sm:$0xff]
  %v458 = vld [vmem:[%s4 + $0x1f8] sm:$0xff]
  %v459 = vld [vmem:[%s4 + $0x200] sm:$0xff]
  %v460 = vld [vmem:[%s4 + $0x208] sm:$0xff]
  %v461 = vld [vmem:[%s4 + $0x210] sm:$0xff]
  %v462 = vld [vmem:[%s4 + $0x218] sm:$0xff]
  %v463 = vld [vmem:[%s4 + $0x220] sm:$0xff]
  %v464 = vld [vmem:[%s4 + $0x228] sm:$0xff]
  %v465 = vld [vmem:[%s4 + $0x230] sm:$0xff]
  %v466 = vld [vmem:[%s4 + $0x238] sm:$0xff]
  %v467 = vld [vmem:[%s4 + $0x240] sm:$0xff]
  %v468 = vld [vmem:[%s4 + $0x248] sm:$0xff]
  %v469 = vld [vmem:[%s4 + $0x250] sm:$0xff]
  %v470 = vld [vmem:[%s4 + $0x258] sm:$0xff]
  %v471 = vld [vmem:[%s4 + $0x260] sm:$0xff]
  %v472 = vld [vmem:[%s4 + $0x268] sm:$0xff]
  %v473 = vld [vmem:[%s4 + $0x270] sm:$0xff]
  %v474 = vld [vmem:[%s4 + $0x278] sm:$0xff]
  %v475 = vld [vmem:[%s4 + $0x280] sm:$0xff]
  %v476 = vld [vmem:[%s4 + $0x288] sm:$0xff]
  %v477 = vld [vmem:[%s4 + $0x290] sm:$0xff]
  %v478 = vld [vmem:[%s4 + $0x298] sm:$0xff]
  %v479 = vlaneseq
  %v480 = vshrl.u32 %v479, 7
  %v481 = vadd.s32 %v480, 8
  %v482 = vadd.s32 %v480, 16
  %v483 = vadd.s32 %v480, 24
  %v484 = vadd.s32 %v480, 32
  %v485 = vadd.s32 %v480, 40
  %v486 = vadd.s32 %v480, 48
  %v487 = vadd.s32 %v480, 56
  %v488 = vadd.s32 %v480, 64
  %v489 = vadd.s32 %v480, 72
  %v490 = vlaneseq
  %v491 = vand.u32 %v490, 127
  %v492 = vand.u32 %v480, 15
  %v493 = vand.u32 %v481, 15
  %v494 = vand.u32 %v482, 15
  %v495 = vand.u32 %v483, 15
  %v496 = vand.u32 %v484, 15
  %v497 = vand.u32 %v485, 15
  %v498 = vand.u32 %v486, 15
  %v499 = vand.u32 %v487, 15
  %v500 = vand.u32 %v488, 15
  %v501 = vand.u32 %v489, 15
  %v502 = vshra.s32 %v491, 3
  %vm503 = vcmp.eq.s32.totalorder %v492, %v502
  %vm504 = vcmp.eq.s32.totalorder %v493, %v502
  %vm505 = vcmp.eq.s32.totalorder %v494, %v502
  %vm506 = vcmp.eq.s32.totalorder %v495, %v502
  %vm507 = vcmp.eq.s32.totalorder %v496, %v502
  %vm508 = vcmp.eq.s32.totalorder %v497, %v502
  %vm509 = vcmp.eq.s32.totalorder %v498, %v502
  %vm510 = vcmp.eq.s32.totalorder %v499, %v502
  %vm511 = vcmp.eq.s32.totalorder %v500, %v502
  %vm512 = vcmp.eq.s32.totalorder %v501, %v502
  %v513 = vsel %vm503, 1.0, 0.0
  %v514 = vsel %vm504, 1.0, 0.0
  %v515 = vsel %vm505, 1.0, 0.0
  %v516 = vsel %vm506, 1.0, 0.0
  %v517 = vsel %vm507, 1.0, 0.0
  %v518 = vsel %vm508, 1.0, 0.0
  %v519 = vsel %vm509, 1.0, 0.0
  %v520 = vsel %vm510, 1.0, 0.0
  %v521 = vsel %vm511, 1.0, 0.0
  %v522 = vsel %vm512, 1.0, 0.0
  %533 = vrot.lane.b32.xlu0 %v347, 8
  %v534 = vpop.permute.xlu0 %533
  %535 = vrot.lane.b32.xlu0 %v352, 8
  %v536 = vpop.permute.xlu0 %535
  %537 = vrot.lane.b32.xlu0 %v357, 8
  %v538 = vpop.permute.xlu0 %537
  %539 = vrot.lane.b32.xlu0 %v362, 8
  %v540 = vpop.permute.xlu0 %539
  %541 = vrot.lane.b32.xlu0 %v367, 8
  %v542 = vpop.permute.xlu0 %541
  %543 = vrot.lane.b32.xlu0 %v372, 8
  %v544 = vpop.permute.xlu0 %543
  %545 = vrot.lane.b32.xlu0 %v377, 8
  %v546 = vpop.permute.xlu0 %545
  %547 = vrot.lane.b32.xlu0 %v382, 8
  %v548 = vpop.permute.xlu0 %547
  %549 = vrot.lane.b32.xlu0 %v387, 8
  %v550 = vpop.permute.xlu0 %549
  %551 = vrot.lane.b32.xlu0 %v392, 8
  %v552 = vpop.permute.xlu0 %551
  %563 = vrot.lane.b32.xlu0 %v347, 16
  %v564 = vpop.permute.xlu0 %563
  %565 = vrot.lane.b32.xlu0 %v352, 16
  %v566 = vpop.permute.xlu0 %565
  %567 = vrot.lane.b32.xlu0 %v357, 16
  %v568 = vpop.permute.xlu0 %567
  %569 = vrot.lane.b32.xlu0 %v362, 16
  %v570 = vpop.permute.xlu0 %569
  %571 = vrot.lane.b32.xlu0 %v367, 16
  %v572 = vpop.permute.xlu0 %571
  %573 = vrot.lane.b32.xlu0 %v372, 16
  %v574 = vpop.permute.xlu0 %573
  %575 = vrot.lane.b32.xlu0 %v377, 16
  %v576 = vpop.permute.xlu0 %575
  %577 = vrot.lane.b32.xlu0 %v382, 16
  %v578 = vpop.permute.xlu0 %577
  %579 = vrot.lane.b32.xlu0 %v387, 16
  %v580 = vpop.permute.xlu0 %579
  %581 = vrot.lane.b32.xlu0 %v392, 16
  %v582 = vpop.permute.xlu0 %581
  %593 = vrot.lane.b32.xlu0 %v347, 24
  %v594 = vpop.permute.xlu0 %593
  %595 = vrot.lane.b32.xlu0 %v352, 24
  %v596 = vpop.permute.xlu0 %595
  %597 = vrot.lane.b32.xlu0 %v357, 24
  %v598 = vpop.permute.xlu0 %597
  %599 = vrot.lane.b32.xlu0 %v362, 24
  %v600 = vpop.permute.xlu0 %599
  %601 = vrot.lane.b32.xlu0 %v367, 24
  %v602 = vpop.permute.xlu0 %601
  %603 = vrot.lane.b32.xlu0 %v372, 24
  %v604 = vpop.permute.xlu0 %603
  %605 = vrot.lane.b32.xlu0 %v377, 24
  %v606 = vpop.permute.xlu0 %605
  %607 = vrot.lane.b32.xlu0 %v382, 24
  %v608 = vpop.permute.xlu0 %607
  %609 = vrot.lane.b32.xlu0 %v387, 24
  %v610 = vpop.permute.xlu0 %609
  %611 = vrot.lane.b32.xlu0 %v392, 24
  %v612 = vpop.permute.xlu0 %611
  %623 = vrot.lane.b32.xlu0 %v347, 32
  %v624 = vpop.permute.xlu0 %623
  %625 = vrot.lane.b32.xlu0 %v352, 32
  %v626 = vpop.permute.xlu0 %625
  %627 = vrot.lane.b32.xlu0 %v357, 32
  %v628 = vpop.permute.xlu0 %627
  %629 = vrot.lane.b32.xlu0 %v362, 32
  %v630 = vpop.permute.xlu0 %629
  %631 = vrot.lane.b32.xlu0 %v367, 32
  %v632 = vpop.permute.xlu0 %631
  %633 = vrot.lane.b32.xlu0 %v372, 32
  %v634 = vpop.permute.xlu0 %633
  %635 = vrot.lane.b32.xlu0 %v377, 32
  %v636 = vpop.permute.xlu0 %635
  %637 = vrot.lane.b32.xlu0 %v382, 32
  %v638 = vpop.permute.xlu0 %637
  %639 = vrot.lane.b32.xlu0 %v387, 32
  %v640 = vpop.permute.xlu0 %639
  %641 = vrot.lane.b32.xlu0 %v392, 32
  %v642 = vpop.permute.xlu0 %641
  %653 = vrot.lane.b32.xlu0 %v347, 40
  %v654 = vpop.permute.xlu0 %653
  %655 = vrot.lane.b32.xlu0 %v352, 40
  %v656 = vpop.permute.xlu0 %655
  %657 = vrot.lane.b32.xlu0 %v357, 40
  %v658 = vpop.permute.xlu0 %657
  %659 = vrot.lane.b32.xlu0 %v362, 40
  %v660 = vpop.permute.xlu0 %659
  %661 = vrot.lane.b32.xlu0 %v367, 40
  %v662 = vpop.permute.xlu0 %661
  %663 = vrot.lane.b32.xlu0 %v372, 40
  %v664 = vpop.permute.xlu0 %663
  %665 = vrot.lane.b32.xlu0 %v377, 40
  %v666 = vpop.permute.xlu0 %665
  %667 = vrot.lane.b32.xlu0 %v382, 40
  %v668 = vpop.permute.xlu0 %667
  %669 = vrot.lane.b32.xlu0 %v387, 40
  %v670 = vpop.permute.xlu0 %669
  %671 = vrot.lane.b32.xlu0 %v392, 40
  %v672 = vpop.permute.xlu0 %671
  %683 = vrot.lane.b32.xlu0 %v347, 48
  %v684 = vpop.permute.xlu0 %683
  %685 = vrot.lane.b32.xlu0 %v352, 48
  %v686 = vpop.permute.xlu0 %685
  %687 = vrot.lane.b32.xlu0 %v357, 48
  %v688 = vpop.permute.xlu0 %687
  %689 = vrot.lane.b32.xlu0 %v362, 48
  %v690 = vpop.permute.xlu0 %689
  %691 = vrot.lane.b32.xlu0 %v367, 48
  %v692 = vpop.permute.xlu0 %691
  %693 = vrot.lane.b32.xlu0 %v372, 48
  %v694 = vpop.permute.xlu0 %693
  %695 = vrot.lane.b32.xlu0 %v377, 48
  %v696 = vpop.permute.xlu0 %695
  %697 = vrot.lane.b32.xlu0 %v382, 48
  %v698 = vpop.permute.xlu0 %697
  %699 = vrot.lane.b32.xlu0 %v387, 48
  %v700 = vpop.permute.xlu0 %699
  %701 = vrot.lane.b32.xlu0 %v392, 48
  %v702 = vpop.permute.xlu0 %701
  %713 = vrot.lane.b32.xlu0 %v347, 56
  %v714 = vpop.permute.xlu0 %713
  %715 = vrot.lane.b32.xlu0 %v352, 56
  %v716 = vpop.permute.xlu0 %715
  %717 = vrot.lane.b32.xlu0 %v357, 56
  %v718 = vpop.permute.xlu0 %717
  %719 = vrot.lane.b32.xlu0 %v362, 56
  %v720 = vpop.permute.xlu0 %719
  %721 = vrot.lane.b32.xlu0 %v367, 56
  %v722 = vpop.permute.xlu0 %721
  %723 = vrot.lane.b32.xlu0 %v372, 56
  %v724 = vpop.permute.xlu0 %723
  %725 = vrot.lane.b32.xlu0 %v377, 56
  %v726 = vpop.permute.xlu0 %725
  %727 = vrot.lane.b32.xlu0 %v382, 56
  %v728 = vpop.permute.xlu0 %727
  %729 = vrot.lane.b32.xlu0 %v387, 56
  %v730 = vpop.permute.xlu0 %729
  %731 = vrot.lane.b32.xlu0 %v392, 56
  %v732 = vpop.permute.xlu0 %731
  %743 = vrot.lane.b32.xlu0 %v347, 64
  %v744 = vpop.permute.xlu0 %743
  %745 = vrot.lane.b32.xlu0 %v352, 64
  %v746 = vpop.permute.xlu0 %745
  %747 = vrot.lane.b32.xlu0 %v357, 64
  %v748 = vpop.permute.xlu0 %747
  %749 = vrot.lane.b32.xlu0 %v362, 64
  %v750 = vpop.permute.xlu0 %749
  %751 = vrot.lane.b32.xlu0 %v367, 64
  %v752 = vpop.permute.xlu0 %751
  %753 = vrot.lane.b32.xlu0 %v372, 64
  %v754 = vpop.permute.xlu0 %753
  %755 = vrot.lane.b32.xlu0 %v377, 64
  %v756 = vpop.permute.xlu0 %755
  %757 = vrot.lane.b32.xlu0 %v382, 64
  %v758 = vpop.permute.xlu0 %757
  %759 = vrot.lane.b32.xlu0 %v387, 64
  %v760 = vpop.permute.xlu0 %759
  %761 = vrot.lane.b32.xlu0 %v392, 64
  %v762 = vpop.permute.xlu0 %761
  %773 = vrot.lane.b32.xlu0 %v347, 72
  %v774 = vpop.permute.xlu0 %773
  %775 = vrot.lane.b32.xlu0 %v352, 72
  %v776 = vpop.permute.xlu0 %775
  %777 = vrot.lane.b32.xlu0 %v357, 72
  %v778 = vpop.permute.xlu0 %777
  %779 = vrot.lane.b32.xlu0 %v362, 72
  %v780 = vpop.permute.xlu0 %779
  %781 = vrot.lane.b32.xlu0 %v367, 72
  %v782 = vpop.permute.xlu0 %781
  %783 = vrot.lane.b32.xlu0 %v372, 72
  %v784 = vpop.permute.xlu0 %783
  %785 = vrot.lane.b32.xlu0 %v377, 72
  %v786 = vpop.permute.xlu0 %785
  %787 = vrot.lane.b32.xlu0 %v382, 72
  %v788 = vpop.permute.xlu0 %787
  %789 = vrot.lane.b32.xlu0 %v387, 72
  %v790 = vpop.permute.xlu0 %789
  %791 = vrot.lane.b32.xlu0 %v392, 72
  %v792 = vpop.permute.xlu0 %791
  %803 = vrot.lane.b32.xlu0 %v347, 80
  %v804 = vpop.permute.xlu0 %803
  %805 = vrot.lane.b32.xlu0 %v352, 80
  %v806 = vpop.permute.xlu0 %805
  %807 = vrot.lane.b32.xlu0 %v357, 80
  %v808 = vpop.permute.xlu0 %807
  %809 = vrot.lane.b32.xlu0 %v362, 80
  %v810 = vpop.permute.xlu0 %809
  %811 = vrot.lane.b32.xlu0 %v367, 80
  %v812 = vpop.permute.xlu0 %811
  %813 = vrot.lane.b32.xlu0 %v372, 80
  %v814 = vpop.permute.xlu0 %813
  %815 = vrot.lane.b32.xlu0 %v377, 80
  %v816 = vpop.permute.xlu0 %815
  %817 = vrot.lane.b32.xlu0 %v382, 80
  %v818 = vpop.permute.xlu0 %817
  %819 = vrot.lane.b32.xlu0 %v387, 80
  %v820 = vpop.permute.xlu0 %819
  %821 = vrot.lane.b32.xlu0 %v392, 80
  %v822 = vpop.permute.xlu0 %821
  %833 = vrot.lane.b32.xlu0 %v347, 88
  %v834 = vpop.permute.xlu0 %833
  %835 = vrot.lane.b32.xlu0 %v352, 88
  %v836 = vpop.permute.xlu0 %835
  %837 = vrot.lane.b32.xlu0 %v357, 88
  %v838 = vpop.permute.xlu0 %837
  %839 = vrot.lane.b32.xlu0 %v362, 88
  %v840 = vpop.permute.xlu0 %839
  %841 = vrot.lane.b32.xlu0 %v367, 88
  %v842 = vpop.permute.xlu0 %841
  %843 = vrot.lane.b32.xlu0 %v372, 88
  %v844 = vpop.permute.xlu0 %843
  %845 = vrot.lane.b32.xlu0 %v377, 88
  %v846 = vpop.permute.xlu0 %845
  %847 = vrot.lane.b32.xlu0 %v382, 88
  %v848 = vpop.permute.xlu0 %847
  %849 = vrot.lane.b32.xlu0 %v387, 88
  %v850 = vpop.permute.xlu0 %849
  %851 = vrot.lane.b32.xlu0 %v392, 88
  %v852 = vpop.permute.xlu0 %851
  %863 = vrot.lane.b32.xlu0 %v347, 96
  %v864 = vpop.permute.xlu0 %863
  %865 = vrot.lane.b32.xlu0 %v352, 96
  %v866 = vpop.permute.xlu0 %865
  %867 = vrot.lane.b32.xlu0 %v357, 96
  %v868 = vpop.permute.xlu0 %867
  %869 = vrot.lane.b32.xlu0 %v362, 96
  %v870 = vpop.permute.xlu0 %869
  %871 = vrot.lane.b32.xlu0 %v367, 96
  %v872 = vpop.permute.xlu0 %871
  %873 = vrot.lane.b32.xlu0 %v372, 96
  %v874 = vpop.permute.xlu0 %873
  %875 = vrot.lane.b32.xlu0 %v377, 96
  %v876 = vpop.permute.xlu0 %875
  %877 = vrot.lane.b32.xlu0 %v382, 96
  %v878 = vpop.permute.xlu0 %877
  %879 = vrot.lane.b32.xlu0 %v387, 96
  %v880 = vpop.permute.xlu0 %879
  %881 = vrot.lane.b32.xlu0 %v392, 96
  %v882 = vpop.permute.xlu0 %881
  %893 = vrot.lane.b32.xlu0 %v347, 104
  %v894 = vpop.permute.xlu0 %893
  %895 = vrot.lane.b32.xlu0 %v352, 104
  %v896 = vpop.permute.xlu0 %895
  %897 = vrot.lane.b32.xlu0 %v357, 104
  %v898 = vpop.permute.xlu0 %897
  %899 = vrot.lane.b32.xlu0 %v362, 104
  %v900 = vpop.permute.xlu0 %899
  %901 = vrot.lane.b32.xlu0 %v367, 104
  %v902 = vpop.permute.xlu0 %901
  %903 = vrot.lane.b32.xlu0 %v372, 104
  %v904 = vpop.permute.xlu0 %903
  %905 = vrot.lane.b32.xlu0 %v377, 104
  %v906 = vpop.permute.xlu0 %905
  %907 = vrot.lane.b32.xlu0 %v382, 104
  %v908 = vpop.permute.xlu0 %907
  %909 = vrot.lane.b32.xlu0 %v387, 104
  %v910 = vpop.permute.xlu0 %909
  %911 = vrot.lane.b32.xlu0 %v392, 104
  %v912 = vpop.permute.xlu0 %911
  %923 = vrot.lane.b32.xlu0 %v347, 112
  %v924 = vpop.permute.xlu0 %923
  %925 = vrot.lane.b32.xlu0 %v352, 112
  %v926 = vpop.permute.xlu0 %925
  %927 = vrot.lane.b32.xlu0 %v357, 112
  %v928 = vpop.permute.xlu0 %927
  %929 = vrot.lane.b32.xlu0 %v362, 112
  %v930 = vpop.permute.xlu0 %929
  %931 = vrot.lane.b32.xlu0 %v367, 112
  %v932 = vpop.permute.xlu0 %931
  %933 = vrot.lane.b32.xlu0 %v372, 112
  %v934 = vpop.permute.xlu0 %933
  %935 = vrot.lane.b32.xlu0 %v377, 112
  %v936 = vpop.permute.xlu0 %935
  %937 = vrot.lane.b32.xlu0 %v382, 112
  %v938 = vpop.permute.xlu0 %937
  %939 = vrot.lane.b32.xlu0 %v387, 112
  %v940 = vpop.permute.xlu0 %939
  %941 = vrot.lane.b32.xlu0 %v392, 112
  %v942 = vpop.permute.xlu0 %941
  %953 = vrot.lane.b32.xlu0 %v347, 120
  %v954 = vpop.permute.xlu0 %953
  %955 = vrot.lane.b32.xlu0 %v352, 120
  %v956 = vpop.permute.xlu0 %955
  %957 = vrot.lane.b32.xlu0 %v357, 120
  %v958 = vpop.permute.xlu0 %957
  %959 = vrot.lane.b32.xlu0 %v362, 120
  %v960 = vpop.permute.xlu0 %959
  %961 = vrot.lane.b32.xlu0 %v367, 120
  %v962 = vpop.permute.xlu0 %961
  %963 = vrot.lane.b32.xlu0 %v372, 120
  %v964 = vpop.permute.xlu0 %963
  %965 = vrot.lane.b32.xlu0 %v377, 120
  %v966 = vpop.permute.xlu0 %965
  %967 = vrot.lane.b32.xlu0 %v382, 120
  %v968 = vpop.permute.xlu0 %967
  %969 = vrot.lane.b32.xlu0 %v387, 120
  %v970 = vpop.permute.xlu0 %969
  %971 = vrot.lane.b32.xlu0 %v392, 120
  %v972 = vpop.permute.xlu0 %971
  %vm983 = vcmask 64512
  %v984 = vsel %vm983, %v347, %v534
  %v985 = vsel %vm983, %v352, %v536
  %v986 = vsel %vm983, %v357, %v538
  %v987 = vsel %vm983, %v362, %v540
  %v988 = vsel %vm983, %v367, %v542
  %v989 = vsel %vm983, %v372, %v544
  %v990 = vsel %vm983, %v377, %v546
  %v991 = vsel %vm983, %v382, %v548
  %v992 = vsel %vm983, %v387, %v550
  %v993 = vsel %vm983, %v392, %v552
  %vm994 = vcmask 130048
  %v995 = vsel %vm994, %v984, %v564
  %v996 = vsel %vm994, %v985, %v566
  %v997 = vsel %vm994, %v986, %v568
  %v998 = vsel %vm994, %v987, %v570
  %v999 = vsel %vm994, %v988, %v572
  %v1000 = vsel %vm994, %v989, %v574
  %v1001 = vsel %vm994, %v990, %v576
  %v1002 = vsel %vm994, %v991, %v578
  %v1003 = vsel %vm994, %v992, %v580
  %v1004 = vsel %vm994, %v993, %v582
  %vm1005 = vcmask 195584
  %v1006 = vsel %vm1005, %v995, %v594
  %v1007 = vsel %vm1005, %v996, %v596
  %v1008 = vsel %vm1005, %v997, %v598
  %v1009 = vsel %vm1005, %v998, %v600
  %v1010 = vsel %vm1005, %v999, %v602
  %v1011 = vsel %vm1005, %v1000, %v604
  %v1012 = vsel %vm1005, %v1001, %v606
  %v1013 = vsel %vm1005, %v1002, %v608
  %v1014 = vsel %vm1005, %v1003, %v610
  %v1015 = vsel %vm1005, %v1004, %v612
  %vm1016 = vcmask 261120
  %v1017 = vsel %vm1016, %v1006, %v624
  %v1018 = vsel %vm1016, %v1007, %v626
  %v1019 = vsel %vm1016, %v1008, %v628
  %v1020 = vsel %vm1016, %v1009, %v630
  %v1021 = vsel %vm1016, %v1010, %v632
  %v1022 = vsel %vm1016, %v1011, %v634
  %v1023 = vsel %vm1016, %v1012, %v636
  %v1024 = vsel %vm1016, %v1013, %v638
  %v1025 = vsel %vm1016, %v1014, %v640
  %v1026 = vsel %vm1016, %v1015, %v642
  %vm1027 = vcmask 326656
  %v1028 = vsel %vm1027, %v1017, %v654
  %v1029 = vsel %vm1027, %v1018, %v656
  %v1030 = vsel %vm1027, %v1019, %v658
  %v1031 = vsel %vm1027, %v1020, %v660
  %v1032 = vsel %vm1027, %v1021, %v662
  %v1033 = vsel %vm1027, %v1022, %v664
  %v1034 = vsel %vm1027, %v1023, %v666
  %v1035 = vsel %vm1027, %v1024, %v668
  %v1036 = vsel %vm1027, %v1025, %v670
  %v1037 = vsel %vm1027, %v1026, %v672
  %vm1038 = vcmask 392192
  %v1039 = vsel %vm1038, %v1028, %v684
  %v1040 = vsel %vm1038, %v1029, %v686
  %v1041 = vsel %vm1038, %v1030, %v688
  %v1042 = vsel %vm1038, %v1031, %v690
  %v1043 = vsel %vm1038, %v1032, %v692
  %v1044 = vsel %vm1038, %v1033, %v694
  %v1045 = vsel %vm1038, %v1034, %v696
  %v1046 = vsel %vm1038, %v1035, %v698
  %v1047 = vsel %vm1038, %v1036, %v700
  %v1048 = vsel %vm1038, %v1037, %v702
  %vm1049 = vcmask 457728
  %v1050 = vsel %vm1049, %v1039, %v714
  %v1051 = vsel %vm1049, %v1040, %v716
  %v1052 = vsel %vm1049, %v1041, %v718
  %v1053 = vsel %vm1049, %v1042, %v720
  %v1054 = vsel %vm1049, %v1043, %v722
  %v1055 = vsel %vm1049, %v1044, %v724
  %v1056 = vsel %vm1049, %v1045, %v726
  %v1057 = vsel %vm1049, %v1046, %v728
  %v1058 = vsel %vm1049, %v1047, %v730
  %v1059 = vsel %vm1049, %v1048, %v732
  %v1060 = vsel %vm249, %v1050, %v744
  %v1061 = vsel %vm249, %v1051, %v746
  %v1062 = vsel %vm249, %v1052, %v748
  %v1063 = vsel %vm249, %v1053, %v750
  %v1064 = vsel %vm249, %v1054, %v752
  %v1065 = vsel %vm249, %v1055, %v754
  %v1066 = vsel %vm249, %v1056, %v756
  %v1067 = vsel %vm249, %v1057, %v758
  %v1068 = vsel %vm249, %v1058, %v760
  %v1069 = vsel %vm249, %v1059, %v762
  %vm1070 = vcmask 588800
  %v1071 = vsel %vm1070, %v1060, %v774
  %v1072 = vsel %vm1070, %v1061, %v776
  %v1073 = vsel %vm1070, %v1062, %v778
  %v1074 = vsel %vm1070, %v1063, %v780
  %v1075 = vsel %vm1070, %v1064, %v782
  %v1076 = vsel %vm1070, %v1065, %v784
  %v1077 = vsel %vm1070, %v1066, %v786
  %v1078 = vsel %vm1070, %v1067, %v788
  %v1079 = vsel %vm1070, %v1068, %v790
  %v1080 = vsel %vm1070, %v1069, %v792
  %vm1081 = vcmask 654336
  %v1082 = vsel %vm1081, %v1071, %v804
  %v1083 = vsel %vm1081, %v1072, %v806
  %v1084 = vsel %vm1081, %v1073, %v808
  %v1085 = vsel %vm1081, %v1074, %v810
  %v1086 = vsel %vm1081, %v1075, %v812
  %v1087 = vsel %vm1081, %v1076, %v814
  %v1088 = vsel %vm1081, %v1077, %v816
  %v1089 = vsel %vm1081, %v1078, %v818
  %v1090 = vsel %vm1081, %v1079, %v820
  %v1091 = vsel %vm1081, %v1080, %v822
  %vm1092 = vcmask 719872
  %v1093 = vsel %vm1092, %v1082, %v834
  %v1094 = vsel %vm1092, %v1083, %v836
  %v1095 = vsel %vm1092, %v1084, %v838
  %v1096 = vsel %vm1092, %v1085, %v840
  %v1097 = vsel %vm1092, %v1086, %v842
  %v1098 = vsel %vm1092, %v1087, %v844
  %v1099 = vsel %vm1092, %v1088, %v846
  %v1100 = vsel %vm1092, %v1089, %v848
  %v1101 = vsel %vm1092, %v1090, %v850
  %v1102 = vsel %vm1092, %v1091, %v852
  %vm1103 = vcmask 785408
  %v1104 = vsel %vm1103, %v1093, %v864
  %v1105 = vsel %vm1103, %v1094, %v866
  %v1106 = vsel %vm1103, %v1095, %v868
  %v1107 = vsel %vm1103, %v1096, %v870
  %v1108 = vsel %vm1103, %v1097, %v872
  %v1109 = vsel %vm1103, %v1098, %v874
  %v1110 = vsel %vm1103, %v1099, %v876
  %v1111 = vsel %vm1103, %v1100, %v878
  %v1112 = vsel %vm1103, %v1101, %v880
  %v1113 = vsel %vm1103, %v1102, %v882
  %vm1114 = vcmask 850944
  %v1115 = vsel %vm1114, %v1104, %v894
  %v1116 = vsel %vm1114, %v1105, %v896
  %v1117 = vsel %vm1114, %v1106, %v898
  %v1118 = vsel %vm1114, %v1107, %v900
  %v1119 = vsel %vm1114, %v1108, %v902
  %v1120 = vsel %vm1114, %v1109, %v904
  %v1121 = vsel %vm1114, %v1110, %v906
  %v1122 = vsel %vm1114, %v1111, %v908
  %v1123 = vsel %vm1114, %v1112, %v910
  %v1124 = vsel %vm1114, %v1113, %v912
  %vm1125 = vcmask 916480
  %v1126 = vsel %vm1125, %v1115, %v924
  %v1127 = vsel %vm1125, %v1116, %v926
  %v1128 = vsel %vm1125, %v1117, %v928
  %v1129 = vsel %vm1125, %v1118, %v930
  %v1130 = vsel %vm1125, %v1119, %v932
  %v1131 = vsel %vm1125, %v1120, %v934
  %v1132 = vsel %vm1125, %v1121, %v936
  %v1133 = vsel %vm1125, %v1122, %v938
  %v1134 = vsel %vm1125, %v1123, %v940
  %v1135 = vsel %vm1125, %v1124, %v942
  %vm1136 = vcmask 982016
  %v1137 = vsel %vm1136, %v1126, %v954
  %v1138 = vsel %vm1136, %v1127, %v956
  %v1139 = vsel %vm1136, %v1128, %v958
  %v1140 = vsel %vm1136, %v1129, %v960
  %v1141 = vsel %vm1136, %v1130, %v962
  %v1142 = vsel %vm1136, %v1131, %v964
  %v1143 = vsel %vm1136, %v1132, %v966
  %v1144 = vsel %vm1136, %v1133, %v968
  %v1145 = vsel %vm1136, %v1134, %v970
  %v1146 = vsel %vm1136, %v1135, %v972
  %v1147 = vmul.f32 %v1137, %v513
  %v1148 = vmul.f32 %v1138, %v514
  %v1149 = vmul.f32 %v1139, %v515
  %v1150 = vmul.f32 %v1140, %v516
  %v1151 = vmul.f32 %v1141, %v517
  %v1152 = vmul.f32 %v1142, %v518
  %v1153 = vmul.f32 %v1143, %v519
  %v1154 = vmul.f32 %v1144, %v520
  %v1155 = vmul.f32 %v1145, %v521
  %v1156 = vmul.f32 %v1146, %v522
  %1157 = vmatprep.subr.mxu0 0.0
  %1158 = vmatpush1.msra.mxu0 %v410
  %1159 = vmatprep.subr.mxu0 0.0
  %1160 = vmatpush1.msra.mxu0 %v409
  %1161 = vmatprep.subr.mxu0 0.0
  %1162 = vmatpush1.msra.mxu0 %v408
  %1163 = vmatprep.subr.mxu0 0.0
  %1164 = vmatpush1.msra.mxu0 %v407
  %1165 = vmatprep.subr.mxu0 0.0
  %1166 = vmatpush1.msra.mxu0 %v406
  %1167 = vmatprep.subr.mxu0 0.0
  %1168 = vmatpush1.msra.mxu0 %v405
  %1169 = vmatprep.subr.mxu0 0.0
  %1170 = vmatpush1.msra.mxu0 %v404
  %1171 = vmatprep.subr.mxu0 0.0
  %1172 = vmatpush1.msra.mxu0 %v403
  %1173 = vmatprep.subr.mxu0 0.0
  %1174 = vmatpush1.msra.mxu0 %v402
  %1175 = vmatprep.subr.mxu0 0.0
  %1176 = vmatpush1.msra.mxu0 %v401
  %1177 = vmatprep.subr.mxu0 0.0
  %1178 = vmatpush1.msra.mxu0 %v400
  %1179 = vmatprep.subr.mxu0 0.0
  %1180 = vmatpush1.msra.mxu0 %v399
  %1181 = vmatprep.subr.mxu0 0.0
  %1182 = vmatpush1.msra.mxu0 %v398
  %1183 = vmatprep.subr.mxu0 0.0
  %1184 = vmatpush1.msra.mxu0 %v397
  %1185 = vmatprep.subr.mxu0 0.0
  %1186 = vmatpush1.msra.mxu0 %v396
  %1187 = vmatprep.subr.mxu0 0.0
  %1188 = vmatpush1.msra.mxu0 %v395
  %1189 = vmatprep.subr.mxu0 0.0
  %1190 = vmatpush2.msra.mxu0 0.0
  %1191 = vmatprep.subr.mxu0 0.0
  %1192 = vmatpush2.msra.mxu0 0.0
  %1193 = vmatprep.subr.mxu0 0.0
  %1194 = vmatpush2.msra.mxu0 0.0
  %1195 = vmatprep.subr.mxu0 0.0
  %1196 = vmatpush2.msra.mxu0 0.0
  %1197 = vmatprep.subr.mxu0 0.0
  %1198 = vmatpush2.msra.mxu0 0.0
  %1199 = vmatprep.subr.mxu0 0.0
  %1200 = vmatpush2.msra.mxu0 0.0
  %1201 = vmatprep.subr.mxu0 0.0
  %1202 = vmatpush2.msra.mxu0 0.0
  %1203 = vmatprep.subr.mxu0 0.0
  %1204 = vmatpush2.msra.mxu0 0.0
  %1205 = vmatprep.subr.mxu0 0.0
  %1206 = vmatpush2.msra.mxu0 0.0
  %1207 = vmatprep.subr.mxu0 0.0
  %1208 = vmatpush2.msra.mxu0 0.0
  %1209 = vmatprep.subr.mxu0 0.0
  %1210 = vmatpush2.msra.mxu0 0.0
  %1211 = vmatprep.subr.mxu0 0.0
  %1212 = vmatpush2.msra.mxu0 0.0
  %1213 = vmatprep.subr.mxu0 0.0
  %1214 = vmatpush2.msra.mxu0 0.0
  %1215 = vmatprep.subr.mxu0 0.0
  %1216 = vmatpush2.msra.mxu0 0.0
  %1217 = vmatprep.subr.mxu0 0.0
  %1218 = vmatpush2.msra.mxu0 0.0
  %1219 = vmatprep.subr.mxu0 0.0
  %1220 = vmatpush2.msra.mxu0 0.0
  %1221 = vmatprep.mubr.f32.mxu0 0.0
  %1222 = vmatmul.mubr.f32.gmra.mxu0 %v1147
  %v1223 = vpop.f32.mrf.mxu0
  %v1224 = vadd.f32 0.0, %v1223
  %v1225 = vpop.f32.mrf.mxu0
  %1226 = vmatprep.mubr.f32.mxu0 0.0
  %1227 = vmatmul.mubr.f32.gmra.mxu0 %v1148
  %v1228 = vpop.f32.mrf.mxu0
  %v1229 = vadd.f32 0.0, %v1228
  %v1230 = vpop.f32.mrf.mxu0
  %1231 = vmatprep.mubr.f32.mxu0 0.0
  %1232 = vmatmul.mubr.f32.gmra.mxu0 %v1149
  %v1233 = vpop.f32.mrf.mxu0
  %v1234 = vadd.f32 0.0, %v1233
  %v1235 = vpop.f32.mrf.mxu0
  %1236 = vmatprep.mubr.f32.mxu0 0.0
  %1237 = vmatmul.mubr.f32.gmra.mxu0 %v1150
  %v1238 = vpop.f32.mrf.mxu0
  %v1239 = vadd.f32 0.0, %v1238
  %v1240 = vpop.f32.mrf.mxu0
  %1241 = vmatprep.mubr.f32.mxu0 0.0
  %1242 = vmatmul.mubr.f32.gmra.mxu0 %v1151
  %v1243 = vpop.f32.mrf.mxu0
  %v1244 = vadd.f32 0.0, %v1243
  %v1245 = vpop.f32.mrf.mxu0
  %1246 = vmatprep.mubr.f32.mxu0 0.0
  %1247 = vmatmul.mubr.f32.gmra.mxu0 %v1152
  %v1248 = vpop.f32.mrf.mxu0
  %v1249 = vadd.f32 0.0, %v1248
  %v1250 = vpop.f32.mrf.mxu0
  %1251 = vmatprep.mubr.f32.mxu0 0.0
  %1252 = vmatmul.mubr.f32.gmra.mxu0 %v1153
  %v1253 = vpop.f32.mrf.mxu0
  %v1254 = vadd.f32 0.0, %v1253
  %v1255 = vpop.f32.mrf.mxu0
  %1256 = vmatprep.mubr.f32.mxu0 0.0
  %1257 = vmatmul.mubr.f32.gmra.mxu0 %v1154
  %v1258 = vpop.f32.mrf.mxu0
  %v1259 = vadd.f32 0.0, %v1258
  %v1260 = vpop.f32.mrf.mxu0
  %1261 = vmatprep.mubr.f32.mxu0 0.0
  %1262 = vmatmul.mubr.f32.gmra.mxu0 %v1155
  %v1263 = vpop.f32.mrf.mxu0
  %v1264 = vadd.f32 0.0, %v1263
  %v1265 = vpop.f32.mrf.mxu0
  %1266 = vmatprep.mubr.f32.mxu0 0.0
  %1267 = vmatmul.mubr.f32.gmra.mxu0 %v1156
  %v1268 = vpop.f32.mrf.mxu0
  %v1269 = vadd.f32 0.0, %v1268
  %v1270 = vpop.f32.mrf.mxu0
  %1271 = vdwg.mxu0
  %v1272 = vadd.s32 %v491, 128
  %v1273 = vadd.s32 %v491, 256
  %v1274 = vadd.s32 %v491, 384
  %v1275 = vshra.s32 %v491, 5
  %v1276 = vshra.s32 %v1272, 5
  %v1277 = vshra.s32 %v1273, 5
  %v1278 = vshra.s32 %v1274, 5
  %vm1279 = vcmp.eq.s32.totalorder %v480, %v1275
  %vm1280 = vcmp.eq.s32.totalorder %v480, %v1276
  %vm1281 = vcmp.eq.s32.totalorder %v480, %v1277
  %vm1282 = vcmp.eq.s32.totalorder %v480, %v1278
  %vm1283 = vcmp.eq.s32.totalorder %v481, %v1275
  %vm1284 = vcmp.eq.s32.totalorder %v481, %v1276
  %vm1285 = vcmp.eq.s32.totalorder %v481, %v1277
  %vm1286 = vcmp.eq.s32.totalorder %v481, %v1278
  %v1287 = vsel %vm1279, 1.0, 0.0
  %v1288 = vsel %vm1280, 1.0, 0.0
  %v1289 = vsel %vm1281, 1.0, 0.0
  %v1290 = vsel %vm1282, 1.0, 0.0
  %v1291 = vsel %vm1283, 1.0, 0.0
  %v1292 = vsel %vm1284, 1.0, 0.0
  %v1293 = vsel %vm1285, 1.0, 0.0
  %v1294 = vsel %vm1286, 1.0, 0.0
  %v1295 = vadd.f32 %v1224, %v475
  %v1296 = vadd.f32 %v1229, %v476
  %v1297 = vmul.f32 %v1287, 0.0
  %v1298 = vmul.f32 %v1288, 0.0
  %v1299 = vmul.f32 %v1289, 0.0
  %v1300 = vmul.f32 %v1290, 0.0
  %v1301 = vmul.f32 %v1291, 0.0
  %v1302 = vmul.f32 %v1292, 0.0
  %v1303 = vmul.f32 %v1293, 0.0
  %v1304 = vmul.f32 %v1294, 0.0
  %1305 = vmatprep.subr.mxu0 0.0
  %1306 = vmatpush1.msra.mxu0 %v426
  %1307 = vmatprep.subr.mxu0 0.0
  %1308 = vmatpush1.msra.mxu0 %v425
  %1309 = vmatprep.subr.mxu0 0.0
  %1310 = vmatpush1.msra.mxu0 %v424
  %1311 = vmatprep.subr.mxu0 0.0
  %1312 = vmatpush1.msra.mxu0 %v423
  %1313 = vmatprep.subr.mxu0 0.0
  %1314 = vmatpush1.msra.mxu0 %v422
  %1315 = vmatprep.subr.mxu0 0.0
  %1316 = vmatpush1.msra.mxu0 %v421
  %1317 = vmatprep.subr.mxu0 0.0
  %1318 = vmatpush1.msra.mxu0 %v420
  %1319 = vmatprep.subr.mxu0 0.0
  %1320 = vmatpush1.msra.mxu0 %v419
  %1321 = vmatprep.subr.mxu0 0.0
  %1322 = vmatpush1.msra.mxu0 %v418
  %1323 = vmatprep.subr.mxu0 0.0
  %1324 = vmatpush1.msra.mxu0 %v417
  %1325 = vmatprep.subr.mxu0 0.0
  %1326 = vmatpush1.msra.mxu0 %v416
  %1327 = vmatprep.subr.mxu0 0.0
  %1328 = vmatpush1.msra.mxu0 %v415
  %1329 = vmatprep.subr.mxu0 0.0
  %1330 = vmatpush1.msra.mxu0 %v414
  %1331 = vmatprep.subr.mxu0 0.0
  %1332 = vmatpush1.msra.mxu0 %v413
  %1333 = vmatprep.subr.mxu0 0.0
  %1334 = vmatpush1.msra.mxu0 %v412
  %1335 = vmatprep.subr.mxu0 0.0
  %1336 = vmatpush1.msra.mxu0 %v411
  %1337 = vmatprep.subr.mxu0 0.0
  %1338 = vmatpush2.msra.mxu0 %v442
  %1339 = vmatprep.subr.mxu0 0.0
  %1340 = vmatpush2.msra.mxu0 %v441
  %1341 = vmatprep.subr.mxu0 0.0
  %1342 = vmatpush2.msra.mxu0 %v440
  %1343 = vmatprep.subr.mxu0 0.0
  %1344 = vmatpush2.msra.mxu0 %v439
  %1345 = vmatprep.subr.mxu0 0.0
  %1346 = vmatpush2.msra.mxu0 %v438
  %1347 = vmatprep.subr.mxu0 0.0
  %1348 = vmatpush2.msra.mxu0 %v437
  %1349 = vmatprep.subr.mxu0 0.0
  %1350 = vmatpush2.msra.mxu0 %v436
  %1351 = vmatprep.subr.mxu0 0.0
  %1352 = vmatpush2.msra.mxu0 %v435
  %1353 = vmatprep.subr.mxu0 0.0
  %1354 = vmatpush2.msra.mxu0 %v434
  %1355 = vmatprep.subr.mxu0 0.0
  %1356 = vmatpush2.msra.mxu0 %v433
  %1357 = vmatprep.subr.mxu0 0.0
  %1358 = vmatpush2.msra.mxu0 %v432
  %1359 = vmatprep.subr.mxu0 0.0
  %1360 = vmatpush2.msra.mxu0 %v431
  %1361 = vmatprep.subr.mxu0 0.0
  %1362 = vmatpush2.msra.mxu0 %v430
  %1363 = vmatprep.subr.mxu0 0.0
  %1364 = vmatpush2.msra.mxu0 %v429
  %1365 = vmatprep.subr.mxu0 0.0
  %1366 = vmatpush2.msra.mxu0 %v428
  %1367 = vmatprep.subr.mxu0 0.0
  %1368 = vmatpush2.msra.mxu0 %v427
  %1369 = vmatprep.mubr.f32.mxu0 %v1298
  %1370 = vmatmul.mubr.f32.gmra.mxu0 %v1297
  %v1371 = vpop.f32.mrf.mxu0
  %v1372 = vadd.f32 0.0, %v1371
  %v1373 = vpop.f32.mrf.mxu0
  %1374 = vmatprep.mubr.f32.mxu0 %v1302
  %1375 = vmatmul.mubr.f32.gmra.mxu0 %v1301
  %v1376 = vpop.f32.mrf.mxu0
  %v1377 = vadd.f32 0.0, %v1376
  %v1378 = vpop.f32.mrf.mxu0
  %1379 = vdwg.mxu0
  %1380 = vmatprep.subr.mxu0 0.0
  %1381 = vmatpush1.msra.mxu0 %v458
  %1382 = vmatprep.subr.mxu0 0.0
  %1383 = vmatpush1.msra.mxu0 %v457
  %1384 = vmatprep.subr.mxu0 0.0
  %1385 = vmatpush1.msra.mxu0 %v456
  %1386 = vmatprep.subr.mxu0 0.0
  %1387 = vmatpush1.msra.mxu0 %v455
  %1388 = vmatprep.subr.mxu0 0.0
  %1389 = vmatpush1.msra.mxu0 %v454
  %1390 = vmatprep.subr.mxu0 0.0
  %1391 = vmatpush1.msra.mxu0 %v453
  %1392 = vmatprep.subr.mxu0 0.0
  %1393 = vmatpush1.msra.mxu0 %v452
  %1394 = vmatprep.subr.mxu0 0.0
  %1395 = vmatpush1.msra.mxu0 %v451
  %1396 = vmatprep.subr.mxu0 0.0
  %1397 = vmatpush1.msra.mxu0 %v450
  %1398 = vmatprep.subr.mxu0 0.0
  %1399 = vmatpush1.msra.mxu0 %v449
  %1400 = vmatprep.subr.mxu0 0.0
  %1401 = vmatpush1.msra.mxu0 %v448
  %1402 = vmatprep.subr.mxu0 0.0
  %1403 = vmatpush1.msra.mxu0 %v447
  %1404 = vmatprep.subr.mxu0 0.0
  %1405 = vmatpush1.msra.mxu0 %v446
  %1406 = vmatprep.subr.mxu0 0.0
  %1407 = vmatpush1.msra.mxu0 %v445
  %1408 = vmatprep.subr.mxu0 0.0
  %1409 = vmatpush1.msra.mxu0 %v444
  %1410 = vmatprep.subr.mxu0 0.0
  %1411 = vmatpush1.msra.mxu0 %v443
  %1412 = vmatprep.subr.mxu0 0.0
  %1413 = vmatpush2.msra.mxu0 %v474
  %1414 = vmatprep.subr.mxu0 0.0
  %1415 = vmatpush2.msra.mxu0 %v473
  %1416 = vmatprep.subr.mxu0 0.0
  %1417 = vmatpush2.msra.mxu0 %v472
  %1418 = vmatprep.subr.mxu0 0.0
  %1419 = vmatpush2.msra.mxu0 %v471
  %1420 = vmatprep.subr.mxu0 0.0
  %1421 = vmatpush2.msra.mxu0 %v470
  %1422 = vmatprep.subr.mxu0 0.0
  %1423 = vmatpush2.msra.mxu0 %v469
  %1424 = vmatprep.subr.mxu0 0.0
  %1425 = vmatpush2.msra.mxu0 %v468
  %1426 = vmatprep.subr.mxu0 0.0
  %1427 = vmatpush2.msra.mxu0 %v467
  %1428 = vmatprep.subr.mxu0 0.0
  %1429 = vmatpush2.msra.mxu0 %v466
  %1430 = vmatprep.subr.mxu0 0.0
  %1431 = vmatpush2.msra.mxu0 %v465
  %1432 = vmatprep.subr.mxu0 0.0
  %1433 = vmatpush2.msra.mxu0 %v464
  %1434 = vmatprep.subr.mxu0 0.0
  %1435 = vmatpush2.msra.mxu0 %v463
  %1436 = vmatprep.subr.mxu0 0.0
  %1437 = vmatpush2.msra.mxu0 %v462
  %1438 = vmatprep.subr.mxu0 0.0
  %1439 = vmatpush2.msra.mxu0 %v461
  %1440 = vmatprep.subr.mxu0 0.0
  %1441 = vmatpush2.msra.mxu0 %v460
  %1442 = vmatprep.subr.mxu0 0.0
  %1443 = vmatpush2.msra.mxu0 %v459
  %1444 = vmatprep.mubr.f32.mxu0 %v1300
  %1445 = vmatmul.mubr.f32.gmra.mxu0 %v1299
  %v1446 = vpop.f32.mrf.mxu0
  %v1447 = vadd.f32 %v1372, %v1446
  %v1448 = vpop.f32.mrf.mxu0
  %1449 = vmatprep.mubr.f32.mxu0 %v1304
  %1450 = vmatmul.mubr.f32.gmra.mxu0 %v1303
  %v1451 = vpop.f32.mrf.mxu0
  %v1452 = vadd.f32 %v1377, %v1451
  %v1453 = vpop.f32.mrf.mxu0
  %1454 = vdwg.mxu0
  %v1455 = vadd.f32 %v1295, %v1447
  %v1456 = vadd.f32 %v1296, %v1452
  %v1457 = vxor.u32 %v1455, 2147483648
  %v1458 = vxor.u32 %v1456, 2147483648
  %v1459 = vmul.f32 %v1457, 1.442695
  %v1460 = vpow.pop %v1459
  %v1461 = vmul.f32 %v1458, 1.442695
  %v1462 = vpow.pop %v1461
  %v1463 = vadd.f32 %v1460, 1.0
  %v1464 = vadd.f32 %v1462, 1.0
  %v1465 = vrcp.pop %v1463
  %v1466 = vmul.f32 1.0, %v1465
  %v1467 = vrcp.pop %v1464
  %v1468 = vmul.f32 1.0, %v1467
  %1471 = vrot.lane.b32.xlu0 %v477, 64
  %v1472 = vpop.permute.xlu0 %1471
  %1473 = vrot.lane.b32.xlu0 %v478, 64
  %v1474 = vpop.permute.xlu0 %1473
  %v1477 = vadd.f32 %v1447, %v1472
  %v1478 = vadd.f32 %v1452, %v1474
  %1481 = vrot.lane.b32.xlu0 %v1477, 64
  %v1482 = vpop.permute.xlu0 %1481
  %1483 = vrot.lane.b32.xlu0 %v1478, 64
  %v1484 = vpop.permute.xlu0 %1483
  %v1487 = vmul.f32 %v1466, %v1482
  %v1488 = vmul.f32 %v1468, %v1484
  %1491 = vrot.lane.b32.xlu0 %v1487, 64
  %v1492 = vpop.permute.xlu0 %1491
  %1493 = vrot.lane.b32.xlu0 %v1488, 64
  %v1494 = vpop.permute.xlu0 %1493
  %v1497 = vadd.f32 %v1295, %v1492
  %v1498 = vadd.f32 %v1296, %v1494
  %v1499 = vtanh.pop %v1497
  %v1500 = vtanh.pop %v1498
  %v1501 = vsub.f32 0.0, %v1499
  %v1502 = vsub.f32 0.0, %v1500
  %1505 = vrot.lane.b32.xlu0 %v1501, 96
  %v1506 = vpop.permute.xlu0 %1505
  %1507 = vrot.lane.b32.xlu0 %v1502, 96
  %v1508 = vpop.permute.xlu0 %1507
  %v1511 = vmul.f32 %v1466, %v1506
  %v1512 = vmul.f32 %v1468, %v1508
  %1515 = vrot.lane.b32.xlu0 %v1511, 32
  %v1516 = vpop.permute.xlu0 %1515
  %1517 = vrot.lane.b32.xlu0 %v1512, 32
  %v1518 = vpop.permute.xlu0 %1517
  %v1521 = vadd.f32 %v1499, %v1516
  %v1522 = vadd.f32 %v1500, %v1518
  %v1523 = vadd.f32 %v1234, %v475
  %v1524 = vadd.f32 %v1239, %v476
  %1527 = vrot.lane.b32.xlu0 %v1521, 64
  %v1528 = vpop.permute.xlu0 %1527
  %1529 = vrot.lane.b32.xlu0 %v1522, 64
  %v1530 = vpop.permute.xlu0 %1529
  %1533 = vrot.lane.b32.xlu0 %v1521, 96
  %v1534 = vpop.permute.xlu0 %1533
  %1535 = vrot.lane.b32.xlu0 %v1522, 96
  %v1536 = vpop.permute.xlu0 %1535
  %1539 = vrot.lane.b32.xlu0 %v1521, 32
  %v1540 = vpop.permute.xlu0 %1539
  %1541 = vrot.lane.b32.xlu0 %v1522, 32
  %v1542 = vpop.permute.xlu0 %1541
  %v1545 = vsel %vm1016, %v1528, %v1534
  %v1546 = vsel %vm1016, %v1530, %v1536
  %v1547 = vsel %vm249, %v1545, %v1521
  %v1548 = vsel %vm249, %v1546, %v1522
  %v1549 = vsel %vm1103, %v1547, %v1540
  %v1550 = vsel %vm1103, %v1548, %v1542
  %v1551 = vmul.f32 %v1549, %v1287
  %v1552 = vmul.f32 %v1549, %v1288
  %v1553 = vmul.f32 %v1549, %v1289
  %v1554 = vmul.f32 %v1549, %v1290
  %v1555 = vmul.f32 %v1550, %v1291
  %v1556 = vmul.f32 %v1550, %v1292
  %v1557 = vmul.f32 %v1550, %v1293
  %v1558 = vmul.f32 %v1550, %v1294
  %1559 = vmatprep.subr.mxu0 0.0
  %1560 = vmatpush1.msra.mxu0 %v426
  %1561 = vmatprep.subr.mxu0 0.0
  %1562 = vmatpush1.msra.mxu0 %v425
  %1563 = vmatprep.subr.mxu0 0.0
  %1564 = vmatpush1.msra.mxu0 %v424
  %1565 = vmatprep.subr.mxu0 0.0
  %1566 = vmatpush1.msra.mxu0 %v423
  %1567 = vmatprep.subr.mxu0 0.0
  %1568 = vmatpush1.msra.mxu0 %v422
  %1569 = vmatprep.subr.mxu0 0.0
  %1570 = vmatpush1.msra.mxu0 %v421
  %1571 = vmatprep.subr.mxu0 0.0
  %1572 = vmatpush1.msra.mxu0 %v420
  %1573 = vmatprep.subr.mxu0 0.0
  %1574 = vmatpush1.msra.mxu0 %v419
  %1575 = vmatprep.subr.mxu0 0.0
  %1576 = vmatpush1.msra.mxu0 %v418
  %1577 = vmatprep.subr.mxu0 0.0
  %1578 = vmatpush1.msra.mxu0 %v417
  %1579 = vmatprep.subr.mxu0 0.0
  %1580 = vmatpush1.msra.mxu0 %v416
  %1581 = vmatprep.subr.mxu0 0.0
  %1582 = vmatpush1.msra.mxu0 %v415
  %1583 = vmatprep.subr.mxu0 0.0
  %1584 = vmatpush1.msra.mxu0 %v414
  %1585 = vmatprep.subr.mxu0 0.0
  %1586 = vmatpush1.msra.mxu0 %v413
  %1587 = vmatprep.subr.mxu0 0.0
  %1588 = vmatpush1.msra.mxu0 %v412
  %1589 = vmatprep.subr.mxu0 0.0
  %1590 = vmatpush1.msra.mxu0 %v411
  %1591 = vmatprep.subr.mxu0 0.0
  %1592 = vmatpush2.msra.mxu0 %v442
  %1593 = vmatprep.subr.mxu0 0.0
  %1594 = vmatpush2.msra.mxu0 %v441
  %1595 = vmatprep.subr.mxu0 0.0
  %1596 = vmatpush2.msra.mxu0 %v440
  %1597 = vmatprep.subr.mxu0 0.0
  %1598 = vmatpush2.msra.mxu0 %v439
  %1599 = vmatprep.subr.mxu0 0.0
  %1600 = vmatpush2.msra.mxu0 %v438
  %1601 = vmatprep.subr.mxu0 0.0
  %1602 = vmatpush2.msra.mxu0 %v437
  %1603 = vmatprep.subr.mxu0 0.0
  %1604 = vmatpush2.msra.mxu0 %v436
  %1605 = vmatprep.subr.mxu0 0.0
  %1606 = vmatpush2.msra.mxu0 %v435
  %1607 = vmatprep.subr.mxu0 0.0
  %1608 = vmatpush2.msra.mxu0 %v434
  %1609 = vmatprep.subr.mxu0 0.0
  %1610 = vmatpush2.msra.mxu0 %v433
  %1611 = vmatprep.subr.mxu0 0.0
  %1612 = vmatpush2.msra.mxu0 %v432
  %1613 = vmatprep.subr.mxu0 0.0
  %1614 = vmatpush2.msra.mxu0 %v431
  %1615 = vmatprep.subr.mxu0 0.0
  %1616 = vmatpush2.msra.mxu0 %v430
  %1617 = vmatprep.subr.mxu0 0.0
  %1618 = vmatpush2.msra.mxu0 %v429
  %1619 = vmatprep.subr.mxu0 0.0
  %1620 = vmatpush2.msra.mxu0 %v428
  %1621 = vmatprep.subr.mxu0 0.0
  %1622 = vmatpush2.msra.mxu0 %v427
  %1623 = vmatprep.mubr.f32.mxu0 %v1552
  %1624 = vmatmul.mubr.f32.gmra.mxu0 %v1551
  %v1625 = vpop.f32.mrf.mxu0
  %v1626 = vadd.f32 0.0, %v1625
  %v1627 = vpop.f32.mrf.mxu0
  %1628 = vmatprep.mubr.f32.mxu0 %v1556
  %1629 = vmatmul.mubr.f32.gmra.mxu0 %v1555
  %v1630 = vpop.f32.mrf.mxu0
  %v1631 = vadd.f32 0.0, %v1630
  %v1632 = vpop.f32.mrf.mxu0
  %1633 = vdwg.mxu0
  %1634 = vmatprep.subr.mxu0 0.0
  %1635 = vmatpush1.msra.mxu0 %v458
  %1636 = vmatprep.subr.mxu0 0.0
  %1637 = vmatpush1.msra.mxu0 %v457
  %1638 = vmatprep.subr.mxu0 0.0
  %1639 = vmatpush1.msra.mxu0 %v456
  %1640 = vmatprep.subr.mxu0 0.0
  %1641 = vmatpush1.msra.mxu0 %v455
  %1642 = vmatprep.subr.mxu0 0.0
  %1643 = vmatpush1.msra.mxu0 %v454
  %1644 = vmatprep.subr.mxu0 0.0
  %1645 = vmatpush1.msra.mxu0 %v453
  %1646 = vmatprep.subr.mxu0 0.0
  %1647 = vmatpush1.msra.mxu0 %v452
  %1648 = vmatprep.subr.mxu0 0.0
  %1649 = vmatpush1.msra.mxu0 %v451
  %1650 = vmatprep.subr.mxu0 0.0
  %1651 = vmatpush1.msra.mxu0 %v450
  %1652 = vmatprep.subr.mxu0 0.0
  %1653 = vmatpush1.msra.mxu0 %v449
  %1654 = vmatprep.subr.mxu0 0.0
  %1655 = vmatpush1.msra.mxu0 %v448
  %1656 = vmatprep.subr.mxu0 0.0
  %1657 = vmatpush1.msra.mxu0 %v447
  %1658 = vmatprep.subr.mxu0 0.0
  %1659 = vmatpush1.msra.mxu0 %v446
  %1660 = vmatprep.subr.mxu0 0.0
  %1661 = vmatpush1.msra.mxu0 %v445
  %1662 = vmatprep.subr.mxu0 0.0
  %1663 = vmatpush1.msra.mxu0 %v444
  %1664 = vmatprep.subr.mxu0 0.0
  %1665 = vmatpush1.msra.mxu0 %v443
  %1666 = vmatprep.subr.mxu0 0.0
  %1667 = vmatpush2.msra.mxu0 %v474
  %1668 = vmatprep.subr.mxu0 0.0
  %1669 = vmatpush2.msra.mxu0 %v473
  %1670 = vmatprep.subr.mxu0 0.0
  %1671 = vmatpush2.msra.mxu0 %v472
  %1672 = vmatprep.subr.mxu0 0.0
  %1673 = vmatpush2.msra.mxu0 %v471
  %1674 = vmatprep.subr.mxu0 0.0
  %1675 = vmatpush2.msra.mxu0 %v470
  %1676 = vmatprep.subr.mxu0 0.0
  %1677 = vmatpush2.msra.mxu0 %v469
  %1678 = vmatprep.subr.mxu0 0.0
  %1679 = vmatpush2.msra.mxu0 %v468
  %1680 = vmatprep.subr.mxu0 0.0
  %1681 = vmatpush2.msra.mxu0 %v467
  %1682 = vmatprep.subr.mxu0 0.0
  %1683 = vmatpush2.msra.mxu0 %v466
  %1684 = vmatprep.subr.mxu0 0.0
  %1685 = vmatpush2.msra.mxu0 %v465
  %1686 = vmatprep.subr.mxu0 0.0
  %1687 = vmatpush2.msra.mxu0 %v464
  %1688 = vmatprep.subr.mxu0 0.0
  %1689 = vmatpush2.msra.mxu0 %v463
  %1690 = vmatprep.subr.mxu0 0.0
  %1691 = vmatpush2.msra.mxu0 %v462
  %1692 = vmatprep.subr.mxu0 0.0
  %1693 = vmatpush2.msra.mxu0 %v461
  %1694 = vmatprep.subr.mxu0 0.0
  %1695 = vmatpush2.msra.mxu0 %v460
  %1696 = vmatprep.subr.mxu0 0.0
  %1697 = vmatpush2.msra.mxu0 %v459
  %1698 = vmatprep.mubr.f32.mxu0 %v1554
  %1699 = vmatmul.mubr.f32.gmra.mxu0 %v1553
  %v1700 = vpop.f32.mrf.mxu0
  %v1701 = vadd.f32 %v1626, %v1700
  %v1702 = vpop.f32.mrf.mxu0
  %1703 = vmatprep.mubr.f32.mxu0 %v1558
  %1704 = vmatmul.mubr.f32.gmra.mxu0 %v1557
  %v1705 = vpop.f32.mrf.mxu0
  %v1706 = vadd.f32 %v1631, %v1705
  %v1707 = vpop.f32.mrf.mxu0
  %1708 = vdwg.mxu0
  %v1709 = vadd.f32 %v1523, %v1701
  %v1710 = vadd.f32 %v1524, %v1706
  %v1711 = vxor.u32 %v1709, 2147483648
  %v1712 = vxor.u32 %v1710, 2147483648
  %v1713 = vmul.f32 %v1711, 1.442695
  %v1714 = vpow.pop %v1713
  %v1715 = vmul.f32 %v1712, 1.442695
  %v1716 = vpow.pop %v1715
  %v1717 = vadd.f32 %v1714, 1.0
  %v1718 = vadd.f32 %v1716, 1.0
  %v1719 = vrcp.pop %v1717
  %v1720 = vmul.f32 1.0, %v1719
  %v1721 = vrcp.pop %v1718
  %v1722 = vmul.f32 1.0, %v1721
  %v1723 = vadd.f32 %v1701, %v1472
  %v1724 = vadd.f32 %v1706, %v1474
  %1727 = vrot.lane.b32.xlu0 %v1723, 64
  %v1728 = vpop.permute.xlu0 %1727
  %1729 = vrot.lane.b32.xlu0 %v1724, 64
  %v1730 = vpop.permute.xlu0 %1729
  %v1733 = vmul.f32 %v1720, %v1728
  %v1734 = vmul.f32 %v1722, %v1730
  %1737 = vrot.lane.b32.xlu0 %v1733, 64
  %v1738 = vpop.permute.xlu0 %1737
  %1739 = vrot.lane.b32.xlu0 %v1734, 64
  %v1740 = vpop.permute.xlu0 %1739
  %v1743 = vadd.f32 %v1523, %v1738
  %v1744 = vadd.f32 %v1524, %v1740
  %v1745 = vtanh.pop %v1743
  %v1746 = vtanh.pop %v1744
  %v1747 = vsub.f32 %v1521, %v1745
  %v1748 = vsub.f32 %v1522, %v1746
  %1751 = vrot.lane.b32.xlu0 %v1747, 96
  %v1752 = vpop.permute.xlu0 %1751
  %1753 = vrot.lane.b32.xlu0 %v1748, 96
  %v1754 = vpop.permute.xlu0 %1753
  %v1757 = vmul.f32 %v1720, %v1752
  %v1758 = vmul.f32 %v1722, %v1754
  %1761 = vrot.lane.b32.xlu0 %v1757, 32
  %v1762 = vpop.permute.xlu0 %1761
  %1763 = vrot.lane.b32.xlu0 %v1758, 32
  %v1764 = vpop.permute.xlu0 %1763
  %v1767 = vadd.f32 %v1745, %v1762
  %v1768 = vadd.f32 %v1746, %v1764
  %v1769 = vadd.f32 %v1244, %v475
  %v1770 = vadd.f32 %v1249, %v476
  %1773 = vrot.lane.b32.xlu0 %v1767, 64
  %v1774 = vpop.permute.xlu0 %1773
  %1775 = vrot.lane.b32.xlu0 %v1768, 64
  %v1776 = vpop.permute.xlu0 %1775
  %1779 = vrot.lane.b32.xlu0 %v1767, 96
  %v1780 = vpop.permute.xlu0 %1779
  %1781 = vrot.lane.b32.xlu0 %v1768, 96
  %v1782 = vpop.permute.xlu0 %1781
  %1785 = vrot.lane.b32.xlu0 %v1767, 32
  %v1786 = vpop.permute.xlu0 %1785
  %1787 = vrot.lane.b32.xlu0 %v1768, 32
  %v1788 = vpop.permute.xlu0 %1787
  %v1791 = vsel %vm1016, %v1774, %v1780
  %v1792 = vsel %vm1016, %v1776, %v1782
  %v1793 = vsel %vm249, %v1791, %v1767
  %v1794 = vsel %vm249, %v1792, %v1768
  %v1795 = vsel %vm1103, %v1793, %v1786
  %v1796 = vsel %vm1103, %v1794, %v1788
  %v1797 = vmul.f32 %v1795, %v1287
  %v1798 = vmul.f32 %v1795, %v1288
  %v1799 = vmul.f32 %v1795, %v1289
  %v1800 = vmul.f32 %v1795, %v1290
  %v1801 = vmul.f32 %v1796, %v1291
  %v1802 = vmul.f32 %v1796, %v1292
  %v1803 = vmul.f32 %v1796, %v1293
  %v1804 = vmul.f32 %v1796, %v1294
  %1805 = vmatprep.subr.mxu0 0.0
  %1806 = vmatpush1.msra.mxu0 %v426
  %1807 = vmatprep.subr.mxu0 0.0
  %1808 = vmatpush1.msra.mxu0 %v425
  %1809 = vmatprep.subr.mxu0 0.0
  %1810 = vmatpush1.msra.mxu0 %v424
  %1811 = vmatprep.subr.mxu0 0.0
  %1812 = vmatpush1.msra.mxu0 %v423
  %1813 = vmatprep.subr.mxu0 0.0
  %1814 = vmatpush1.msra.mxu0 %v422
  %1815 = vmatprep.subr.mxu0 0.0
  %1816 = vmatpush1.msra.mxu0 %v421
  %1817 = vmatprep.subr.mxu0 0.0
  %1818 = vmatpush1.msra.mxu0 %v420
  %1819 = vmatprep.subr.mxu0 0.0
  %1820 = vmatpush1.msra.mxu0 %v419
  %1821 = vmatprep.subr.mxu0 0.0
  %1822 = vmatpush1.msra.mxu0 %v418
  %1823 = vmatprep.subr.mxu0 0.0
  %1824 = vmatpush1.msra.mxu0 %v417
  %1825 = vmatprep.subr.mxu0 0.0
  %1826 = vmatpush1.msra.mxu0 %v416
  %1827 = vmatprep.subr.mxu0 0.0
  %1828 = vmatpush1.msra.mxu0 %v415
  %1829 = vmatprep.subr.mxu0 0.0
  %1830 = vmatpush1.msra.mxu0 %v414
  %1831 = vmatprep.subr.mxu0 0.0
  %1832 = vmatpush1.msra.mxu0 %v413
  %1833 = vmatprep.subr.mxu0 0.0
  %1834 = vmatpush1.msra.mxu0 %v412
  %1835 = vmatprep.subr.mxu0 0.0
  %1836 = vmatpush1.msra.mxu0 %v411
  %1837 = vmatprep.subr.mxu0 0.0
  %1838 = vmatpush2.msra.mxu0 %v442
  %1839 = vmatprep.subr.mxu0 0.0
  %1840 = vmatpush2.msra.mxu0 %v441
  %1841 = vmatprep.subr.mxu0 0.0
  %1842 = vmatpush2.msra.mxu0 %v440
  %1843 = vmatprep.subr.mxu0 0.0
  %1844 = vmatpush2.msra.mxu0 %v439
  %1845 = vmatprep.subr.mxu0 0.0
  %1846 = vmatpush2.msra.mxu0 %v438
  %1847 = vmatprep.subr.mxu0 0.0
  %1848 = vmatpush2.msra.mxu0 %v437
  %1849 = vmatprep.subr.mxu0 0.0
  %1850 = vmatpush2.msra.mxu0 %v436
  %1851 = vmatprep.subr.mxu0 0.0
  %1852 = vmatpush2.msra.mxu0 %v435
  %1853 = vmatprep.subr.mxu0 0.0
  %1854 = vmatpush2.msra.mxu0 %v434
  %1855 = vmatprep.subr.mxu0 0.0
  %1856 = vmatpush2.msra.mxu0 %v433
  %1857 = vmatprep.subr.mxu0 0.0
  %1858 = vmatpush2.msra.mxu0 %v432
  %1859 = vmatprep.subr.mxu0 0.0
  %1860 = vmatpush2.msra.mxu0 %v431
  %1861 = vmatprep.subr.mxu0 0.0
  %1862 = vmatpush2.msra.mxu0 %v430
  %1863 = vmatprep.subr.mxu0 0.0
  %1864 = vmatpush2.msra.mxu0 %v429
  %1865 = vmatprep.subr.mxu0 0.0
  %1866 = vmatpush2.msra.mxu0 %v428
  %1867 = vmatprep.subr.mxu0 0.0
  %1868 = vmatpush2.msra.mxu0 %v427
  %1869 = vmatprep.mubr.f32.mxu0 %v1798
  %1870 = vmatmul.mubr.f32.gmra.mxu0 %v1797
  %v1871 = vpop.f32.mrf.mxu0
  %v1872 = vadd.f32 0.0, %v1871
  %v1873 = vpop.f32.mrf.mxu0
  %1874 = vmatprep.mubr.f32.mxu0 %v1802
  %1875 = vmatmul.mubr.f32.gmra.mxu0 %v1801
  %v1876 = vpop.f32.mrf.mxu0
  %v1877 = vadd.f32 0.0, %v1876
  %v1878 = vpop.f32.mrf.mxu0
  %1879 = vdwg.mxu0
  %1880 = vmatprep.subr.mxu0 0.0
  %1881 = vmatpush1.msra.mxu0 %v458
  %1882 = vmatprep.subr.mxu0 0.0
  %1883 = vmatpush1.msra.mxu0 %v457
  %1884 = vmatprep.subr.mxu0 0.0
  %1885 = vmatpush1.msra.mxu0 %v456
  %1886 = vmatprep.subr.mxu0 0.0
  %1887 = vmatpush1.msra.mxu0 %v455
  %1888 = vmatprep.subr.mxu0 0.0
  %1889 = vmatpush1.msra.mxu0 %v454
  %1890 = vmatprep.subr.mxu0 0.0
  %1891 = vmatpush1.msra.mxu0 %v453
  %1892 = vmatprep.subr.mxu0 0.0
  %1893 = vmatpush1.msra.mxu0 %v452
  %1894 = vmatprep.subr.mxu0 0.0
  %1895 = vmatpush1.msra.mxu0 %v451
  %1896 = vmatprep.subr.mxu0 0.0
  %1897 = vmatpush1.msra.mxu0 %v450
  %1898 = vmatprep.subr.mxu0 0.0
  %1899 = vmatpush1.msra.mxu0 %v449
  %1900 = vmatprep.subr.mxu0 0.0
  %1901 = vmatpush1.msra.mxu0 %v448
  %1902 = vmatprep.subr.mxu0 0.0
  %1903 = vmatpush1.msra.mxu0 %v447
  %1904 = vmatprep.subr.mxu0 0.0
  %1905 = vmatpush1.msra.mxu0 %v446
  %1906 = vmatprep.subr.mxu0 0.0
  %1907 = vmatpush1.msra.mxu0 %v445
  %1908 = vmatprep.subr.mxu0 0.0
  %1909 = vmatpush1.msra.mxu0 %v444
  %1910 = vmatprep.subr.mxu0 0.0
  %1911 = vmatpush1.msra.mxu0 %v443
  %1912 = vmatprep.subr.mxu0 0.0
  %1913 = vmatpush2.msra.mxu0 %v474
  %1914 = vmatprep.subr.mxu0 0.0
  %1915 = vmatpush2.msra.mxu0 %v473
  %1916 = vmatprep.subr.mxu0 0.0
  %1917 = vmatpush2.msra.mxu0 %v472
  %1918 = vmatprep.subr.mxu0 0.0
  %1919 = vmatpush2.msra.mxu0 %v471
  %1920 = vmatprep.subr.mxu0 0.0
  %1921 = vmatpush2.msra.mxu0 %v470
  %1922 = vmatprep.subr.mxu0 0.0
  %1923 = vmatpush2.msra.mxu0 %v469
  %1924 = vmatprep.subr.mxu0 0.0
  %1925 = vmatpush2.msra.mxu0 %v468
  %1926 = vmatprep.subr.mxu0 0.0
  %1927 = vmatpush2.msra.mxu0 %v467
  %1928 = vmatprep.subr.mxu0 0.0
  %1929 = vmatpush2.msra.mxu0 %v466
  %1930 = vmatprep.subr.mxu0 0.0
  %1931 = vmatpush2.msra.mxu0 %v465
  %1932 = vmatprep.subr.mxu0 0.0
  %1933 = vmatpush2.msra.mxu0 %v464
  %1934 = vmatprep.subr.mxu0 0.0
  %1935 = vmatpush2.msra.mxu0 %v463
  %1936 = vmatprep.subr.mxu0 0.0
  %1937 = vmatpush2.msra.mxu0 %v462
  %1938 = vmatprep.subr.mxu0 0.0
  %1939 = vmatpush2.msra.mxu0 %v461
  %1940 = vmatprep.subr.mxu0 0.0
  %1941 = vmatpush2.msra.mxu0 %v460
  %1942 = vmatprep.subr.mxu0 0.0
  %1943 = vmatpush2.msra.mxu0 %v459
  %1944 = vmatprep.mubr.f32.mxu0 %v1800
  %1945 = vmatmul.mubr.f32.gmra.mxu0 %v1799
  %v1946 = vpop.f32.mrf.mxu0
  %v1947 = vadd.f32 %v1872, %v1946
  %v1948 = vpop.f32.mrf.mxu0
  %1949 = vmatprep.mubr.f32.mxu0 %v1804
  %1950 = vmatmul.mubr.f32.gmra.mxu0 %v1803
  %v1951 = vpop.f32.mrf.mxu0
  %v1952 = vadd.f32 %v1877, %v1951
  %v1953 = vpop.f32.mrf.mxu0
  %1954 = vdwg.mxu0
  %v1955 = vadd.f32 %v1769, %v1947
  %v1956 = vadd.f32 %v1770, %v1952
  %v1957 = vxor.u32 %v1955, 2147483648
  %v1958 = vxor.u32 %v1956, 2147483648
  %v1959 = vmul.f32 %v1957, 1.442695
  %v1960 = vpow.pop %v1959
  %v1961 = vmul.f32 %v1958, 1.442695
  %v1962 = vpow.pop %v1961
  %v1963 = vadd.f32 %v1960, 1.0
  %v1964 = vadd.f32 %v1962, 1.0
  %v1965 = vrcp.pop %v1963
  %v1966 = vmul.f32 1.0, %v1965
  %v1967 = vrcp.pop %v1964
  %v1968 = vmul.f32 1.0, %v1967
  %v1969 = vadd.f32 %v1947, %v1472
  %v1970 = vadd.f32 %v1952, %v1474
  %1973 = vrot.lane.b32.xlu0 %v1969, 64
  %v1974 = vpop.permute.xlu0 %1973
  %1975 = vrot.lane.b32.xlu0 %v1970, 64
  %v1976 = vpop.permute.xlu0 %1975
  %v1979 = vmul.f32 %v1966, %v1974
  %v1980 = vmul.f32 %v1968, %v1976
  %1983 = vrot.lane.b32.xlu0 %v1979, 64
  %v1984 = vpop.permute.xlu0 %1983
  %1985 = vrot.lane.b32.xlu0 %v1980, 64
  %v1986 = vpop.permute.xlu0 %1985
  %v1989 = vadd.f32 %v1769, %v1984
  %v1990 = vadd.f32 %v1770, %v1986
  %v1991 = vtanh.pop %v1989
  %v1992 = vtanh.pop %v1990
  %v1993 = vsub.f32 %v1767, %v1991
  %v1994 = vsub.f32 %v1768, %v1992
  %1997 = vrot.lane.b32.xlu0 %v1993, 96
  %v1998 = vpop.permute.xlu0 %1997
  %1999 = vrot.lane.b32.xlu0 %v1994, 96
  %v2000 = vpop.permute.xlu0 %1999
  %v2003 = vmul.f32 %v1966, %v1998
  %v2004 = vmul.f32 %v1968, %v2000
  %2007 = vrot.lane.b32.xlu0 %v2003, 32
  %v2008 = vpop.permute.xlu0 %2007
  %2009 = vrot.lane.b32.xlu0 %v2004, 32
  %v2010 = vpop.permute.xlu0 %2009
  %v2013 = vadd.f32 %v1991, %v2008
  %v2014 = vadd.f32 %v1992, %v2010
  %v2015 = vadd.f32 %v1254, %v475
  %v2016 = vadd.f32 %v1259, %v476
  %2019 = vrot.lane.b32.xlu0 %v2013, 64
  %v2020 = vpop.permute.xlu0 %2019
  %2021 = vrot.lane.b32.xlu0 %v2014, 64
  %v2022 = vpop.permute.xlu0 %2021
  %2025 = vrot.lane.b32.xlu0 %v2013, 96
  %v2026 = vpop.permute.xlu0 %2025
  %2027 = vrot.lane.b32.xlu0 %v2014, 96
  %v2028 = vpop.permute.xlu0 %2027
  %2031 = vrot.lane.b32.xlu0 %v2013, 32
  %v2032 = vpop.permute.xlu0 %2031
  %2033 = vrot.lane.b32.xlu0 %v2014, 32
  %v2034 = vpop.permute.xlu0 %2033
  %v2037 = vsel %vm1016, %v2020, %v2026
  %v2038 = vsel %vm1016, %v2022, %v2028
  %v2039 = vsel %vm249, %v2037, %v2013
  %v2040 = vsel %vm249, %v2038, %v2014
  %v2041 = vsel %vm1103, %v2039, %v2032
  %v2042 = vsel %vm1103, %v2040, %v2034
  %v2043 = vmul.f32 %v2041, %v1287
  %v2044 = vmul.f32 %v2041, %v1288
  %v2045 = vmul.f32 %v2041, %v1289
  %v2046 = vmul.f32 %v2041, %v1290
  %v2047 = vmul.f32 %v2042, %v1291
  %v2048 = vmul.f32 %v2042, %v1292
  %v2049 = vmul.f32 %v2042, %v1293
  %v2050 = vmul.f32 %v2042, %v1294
  %2051 = vmatprep.subr.mxu0 0.0
  %2052 = vmatpush1.msra.mxu0 %v426
  %2053 = vmatprep.subr.mxu0 0.0
  %2054 = vmatpush1.msra.mxu0 %v425
  %2055 = vmatprep.subr.mxu0 0.0
  %2056 = vmatpush1.msra.mxu0 %v424
  %2057 = vmatprep.subr.mxu0 0.0
  %2058 = vmatpush1.msra.mxu0 %v423
  %2059 = vmatprep.subr.mxu0 0.0
  %2060 = vmatpush1.msra.mxu0 %v422
  %2061 = vmatprep.subr.mxu0 0.0
  %2062 = vmatpush1.msra.mxu0 %v421
  %2063 = vmatprep.subr.mxu0 0.0
  %2064 = vmatpush1.msra.mxu0 %v420
  %2065 = vmatprep.subr.mxu0 0.0
  %2066 = vmatpush1.msra.mxu0 %v419
  %2067 = vmatprep.subr.mxu0 0.0
  %2068 = vmatpush1.msra.mxu0 %v418
  %2069 = vmatprep.subr.mxu0 0.0
  %2070 = vmatpush1.msra.mxu0 %v417
  %2071 = vmatprep.subr.mxu0 0.0
  %2072 = vmatpush1.msra.mxu0 %v416
  %2073 = vmatprep.subr.mxu0 0.0
  %2074 = vmatpush1.msra.mxu0 %v415
  %2075 = vmatprep.subr.mxu0 0.0
  %2076 = vmatpush1.msra.mxu0 %v414
  %2077 = vmatprep.subr.mxu0 0.0
  %2078 = vmatpush1.msra.mxu0 %v413
  %2079 = vmatprep.subr.mxu0 0.0
  %2080 = vmatpush1.msra.mxu0 %v412
  %2081 = vmatprep.subr.mxu0 0.0
  %2082 = vmatpush1.msra.mxu0 %v411
  %2083 = vmatprep.subr.mxu0 0.0
  %2084 = vmatpush2.msra.mxu0 %v442
  %2085 = vmatprep.subr.mxu0 0.0
  %2086 = vmatpush2.msra.mxu0 %v441
  %2087 = vmatprep.subr.mxu0 0.0
  %2088 = vmatpush2.msra.mxu0 %v440
  %2089 = vmatprep.subr.mxu0 0.0
  %2090 = vmatpush2.msra.mxu0 %v439
  %2091 = vmatprep.subr.mxu0 0.0
  %2092 = vmatpush2.msra.mxu0 %v438
  %2093 = vmatprep.subr.mxu0 0.0
  %2094 = vmatpush2.msra.mxu0 %v437
  %2095 = vmatprep.subr.mxu0 0.0
  %2096 = vmatpush2.msra.mxu0 %v436
  %2097 = vmatprep.subr.mxu0 0.0
  %2098 = vmatpush2.msra.mxu0 %v435
  %2099 = vmatprep.subr.mxu0 0.0
  %2100 = vmatpush2.msra.mxu0 %v434
  %2101 = vmatprep.subr.mxu0 0.0
  %2102 = vmatpush2.msra.mxu0 %v433
  %2103 = vmatprep.subr.mxu0 0.0
  %2104 = vmatpush2.msra.mxu0 %v432
  %2105 = vmatprep.subr.mxu0 0.0
  %2106 = vmatpush2.msra.mxu0 %v431
  %2107 = vmatprep.subr.mxu0 0.0
  %2108 = vmatpush2.msra.mxu0 %v430
  %2109 = vmatprep.subr.mxu0 0.0
  %2110 = vmatpush2.msra.mxu0 %v429
  %2111 = vmatprep.subr.mxu0 0.0
  %2112 = vmatpush2.msra.mxu0 %v428
  %2113 = vmatprep.subr.mxu0 0.0
  %2114 = vmatpush2.msra.mxu0 %v427
  %2115 = vmatprep.mubr.f32.mxu0 %v2044
  %2116 = vmatmul.mubr.f32.gmra.mxu0 %v2043
  %v2117 = vpop.f32.mrf.mxu0
  %v2118 = vadd.f32 0.0, %v2117
  %v2119 = vpop.f32.mrf.mxu0
  %2120 = vmatprep.mubr.f32.mxu0 %v2048
  %2121 = vmatmul.mubr.f32.gmra.mxu0 %v2047
  %v2122 = vpop.f32.mrf.mxu0
  %v2123 = vadd.f32 0.0, %v2122
  %v2124 = vpop.f32.mrf.mxu0
  %2125 = vdwg.mxu0
  %2126 = vmatprep.subr.mxu0 0.0
  %2127 = vmatpush1.msra.mxu0 %v458
  %2128 = vmatprep.subr.mxu0 0.0
  %2129 = vmatpush1.msra.mxu0 %v457
  %2130 = vmatprep.subr.mxu0 0.0
  %2131 = vmatpush1.msra.mxu0 %v456
  %2132 = vmatprep.subr.mxu0 0.0
  %2133 = vmatpush1.msra.mxu0 %v455
  %2134 = vmatprep.subr.mxu0 0.0
  %2135 = vmatpush1.msra.mxu0 %v454
  %2136 = vmatprep.subr.mxu0 0.0
  %2137 = vmatpush1.msra.mxu0 %v453
  %2138 = vmatprep.subr.mxu0 0.0
  %2139 = vmatpush1.msra.mxu0 %v452
  %2140 = vmatprep.subr.mxu0 0.0
  %2141 = vmatpush1.msra.mxu0 %v451
  %2142 = vmatprep.subr.mxu0 0.0
  %2143 = vmatpush1.msra.mxu0 %v450
  %2144 = vmatprep.subr.mxu0 0.0
  %2145 = vmatpush1.msra.mxu0 %v449
  %2146 = vmatprep.subr.mxu0 0.0
  %2147 = vmatpush1.msra.mxu0 %v448
  %2148 = vmatprep.subr.mxu0 0.0
  %2149 = vmatpush1.msra.mxu0 %v447
  %2150 = vmatprep.subr.mxu0 0.0
  %2151 = vmatpush1.msra.mxu0 %v446
  %2152 = vmatprep.subr.mxu0 0.0
  %2153 = vmatpush1.msra.mxu0 %v445
  %2154 = vmatprep.subr.mxu0 0.0
  %2155 = vmatpush1.msra.mxu0 %v444
  %2156 = vmatprep.subr.mxu0 0.0
  %2157 = vmatpush1.msra.mxu0 %v443
  %2158 = vmatprep.subr.mxu0 0.0
  %2159 = vmatpush2.msra.mxu0 %v474
  %2160 = vmatprep.subr.mxu0 0.0
  %2161 = vmatpush2.msra.mxu0 %v473
  %2162 = vmatprep.subr.mxu0 0.0
  %2163 = vmatpush2.msra.mxu0 %v472
  %2164 = vmatprep.subr.mxu0 0.0
  %2165 = vmatpush2.msra.mxu0 %v471
  %2166 = vmatprep.subr.mxu0 0.0
  %2167 = vmatpush2.msra.mxu0 %v470
  %2168 = vmatprep.subr.mxu0 0.0
  %2169 = vmatpush2.msra.mxu0 %v469
  %2170 = vmatprep.subr.mxu0 0.0
  %2171 = vmatpush2.msra.mxu0 %v468
  %2172 = vmatprep.subr.mxu0 0.0
  %2173 = vmatpush2.msra.mxu0 %v467
  %2174 = vmatprep.subr.mxu0 0.0
  %2175 = vmatpush2.msra.mxu0 %v466
  %2176 = vmatprep.subr.mxu0 0.0
  %2177 = vmatpush2.msra.mxu0 %v465
  %2178 = vmatprep.subr.mxu0 0.0
  %2179 = vmatpush2.msra.mxu0 %v464
  %2180 = vmatprep.subr.mxu0 0.0
  %2181 = vmatpush2.msra.mxu0 %v463
  %2182 = vmatprep.subr.mxu0 0.0
  %2183 = vmatpush2.msra.mxu0 %v462
  %2184 = vmatprep.subr.mxu0 0.0
  %2185 = vmatpush2.msra.mxu0 %v461
  %2186 = vmatprep.subr.mxu0 0.0
  %2187 = vmatpush2.msra.mxu0 %v460
  %2188 = vmatprep.subr.mxu0 0.0
  %2189 = vmatpush2.msra.mxu0 %v459
  %2190 = vmatprep.mubr.f32.mxu0 %v2046
  %2191 = vmatmul.mubr.f32.gmra.mxu0 %v2045
  %v2192 = vpop.f32.mrf.mxu0
  %v2193 = vadd.f32 %v2118, %v2192
  %v2194 = vpop.f32.mrf.mxu0
  %2195 = vmatprep.mubr.f32.mxu0 %v2050
  %2196 = vmatmul.mubr.f32.gmra.mxu0 %v2049
  %v2197 = vpop.f32.mrf.mxu0
  %v2198 = vadd.f32 %v2123, %v2197
  %v2199 = vpop.f32.mrf.mxu0
  %2200 = vdwg.mxu0
  %v2201 = vadd.f32 %v2015, %v2193
  %v2202 = vadd.f32 %v2016, %v2198
  %v2203 = vxor.u32 %v2201, 2147483648
  %v2204 = vxor.u32 %v2202, 2147483648
  %v2205 = vmul.f32 %v2203, 1.442695
  %v2206 = vpow.pop %v2205
  %v2207 = vmul.f32 %v2204, 1.442695
  %v2208 = vpow.pop %v2207
  %v2209 = vadd.f32 %v2206, 1.0
  %v2210 = vadd.f32 %v2208, 1.0
  %v2211 = vrcp.pop %v2209
  %v2212 = vmul.f32 1.0, %v2211
  %v2213 = vrcp.pop %v2210
  %v2214 = vmul.f32 1.0, %v2213
  %v2215 = vadd.f32 %v2193, %v1472
  %v2216 = vadd.f32 %v2198, %v1474
  %2219 = vrot.lane.b32.xlu0 %v2215, 64
  %v2220 = vpop.permute.xlu0 %2219
  %2221 = vrot.lane.b32.xlu0 %v2216, 64
  %v2222 = vpop.permute.xlu0 %2221
  %v2225 = vmul.f32 %v2212, %v2220
  %v2226 = vmul.f32 %v2214, %v2222
  %2229 = vrot.lane.b32.xlu0 %v2225, 64
  %v2230 = vpop.permute.xlu0 %2229
  %2231 = vrot.lane.b32.xlu0 %v2226, 64
  %v2232 = vpop.permute.xlu0 %2231
  %v2235 = vadd.f32 %v2015, %v2230
  %v2236 = vadd.f32 %v2016, %v2232
  %v2237 = vtanh.pop %v2235
  %v2238 = vtanh.pop %v2236
  %v2239 = vsub.f32 %v2013, %v2237
  %v2240 = vsub.f32 %v2014, %v2238
  %2243 = vrot.lane.b32.xlu0 %v2239, 96
  %v2244 = vpop.permute.xlu0 %2243
  %2245 = vrot.lane.b32.xlu0 %v2240, 96
  %v2246 = vpop.permute.xlu0 %2245
  %v2249 = vmul.f32 %v2212, %v2244
  %v2250 = vmul.f32 %v2214, %v2246
  %2253 = vrot.lane.b32.xlu0 %v2249, 32
  %v2254 = vpop.permute.xlu0 %2253
  %2255 = vrot.lane.b32.xlu0 %v2250, 32
  %v2256 = vpop.permute.xlu0 %2255
  %v2259 = vadd.f32 %v2237, %v2254
  %v2260 = vadd.f32 %v2238, %v2256
  %v2261 = vadd.f32 %v1264, %v475
  %v2262 = vadd.f32 %v1269, %v476
  %2265 = vrot.lane.b32.xlu0 %v2259, 64
  %v2266 = vpop.permute.xlu0 %2265
  %2267 = vrot.lane.b32.xlu0 %v2260, 64
  %v2268 = vpop.permute.xlu0 %2267
  %2271 = vrot.lane.b32.xlu0 %v2259, 96
  %v2272 = vpop.permute.xlu0 %2271
  %2273 = vrot.lane.b32.xlu0 %v2260, 96
  %v2274 = vpop.permute.xlu0 %2273
  %2277 = vrot.lane.b32.xlu0 %v2259, 32
  %v2278 = vpop.permute.xlu0 %2277
  %2279 = vrot.lane.b32.xlu0 %v2260, 32
  %v2280 = vpop.permute.xlu0 %2279
  %v2283 = vsel %vm1016, %v2266, %v2272
  %v2284 = vsel %vm1016, %v2268, %v2274
  %v2285 = vsel %vm249, %v2283, %v2259
  %v2286 = vsel %vm249, %v2284, %v2260
  %v2287 = vsel %vm1103, %v2285, %v2278
  %v2288 = vsel %vm1103, %v2286, %v2280
  %v2289 = vmul.f32 %v2287, %v1287
  %v2290 = vmul.f32 %v2287, %v1288
  %v2291 = vmul.f32 %v2287, %v1289
  %v2292 = vmul.f32 %v2287, %v1290
  %v2293 = vmul.f32 %v2288, %v1291
  %v2294 = vmul.f32 %v2288, %v1292
  %v2295 = vmul.f32 %v2288, %v1293
  %v2296 = vmul.f32 %v2288, %v1294
  %2297 = vmatprep.subr.mxu0 0.0
  %2298 = vmatpush1.msra.mxu0 %v426
  %2299 = vmatprep.subr.mxu0 0.0
  %2300 = vmatpush1.msra.mxu0 %v425
  %2301 = vmatprep.subr.mxu0 0.0
  %2302 = vmatpush1.msra.mxu0 %v424
  %2303 = vmatprep.subr.mxu0 0.0
  %2304 = vmatpush1.msra.mxu0 %v423
  %2305 = vmatprep.subr.mxu0 0.0
  %2306 = vmatpush1.msra.mxu0 %v422
  %2307 = vmatprep.subr.mxu0 0.0
  %2308 = vmatpush1.msra.mxu0 %v421
  %2309 = vmatprep.subr.mxu0 0.0
  %2310 = vmatpush1.msra.mxu0 %v420
  %2311 = vmatprep.subr.mxu0 0.0
  %2312 = vmatpush1.msra.mxu0 %v419
  %2313 = vmatprep.subr.mxu0 0.0
  %2314 = vmatpush1.msra.mxu0 %v418
  %2315 = vmatprep.subr.mxu0 0.0
  %2316 = vmatpush1.msra.mxu0 %v417
  %2317 = vmatprep.subr.mxu0 0.0
  %2318 = vmatpush1.msra.mxu0 %v416
  %2319 = vmatprep.subr.mxu0 0.0
  %2320 = vmatpush1.msra.mxu0 %v415
  %2321 = vmatprep.subr.mxu0 0.0
  %2322 = vmatpush1.msra.mxu0 %v414
  %2323 = vmatprep.subr.mxu0 0.0
  %2324 = vmatpush1.msra.mxu0 %v413
  %2325 = vmatprep.subr.mxu0 0.0
  %2326 = vmatpush1.msra.mxu0 %v412
  %2327 = vmatprep.subr.mxu0 0.0
  %2328 = vmatpush1.msra.mxu0 %v411
  %2329 = vmatprep.subr.mxu0 0.0
  %2330 = vmatpush2.msra.mxu0 %v442
  %2331 = vmatprep.subr.mxu0 0.0
  %2332 = vmatpush2.msra.mxu0 %v441
  %2333 = vmatprep.subr.mxu0 0.0
  %2334 = vmatpush2.msra.mxu0 %v440
  %2335 = vmatprep.subr.mxu0 0.0
  %2336 = vmatpush2.msra.mxu0 %v439
  %2337 = vmatprep.subr.mxu0 0.0
  %2338 = vmatpush2.msra.mxu0 %v438
  %2339 = vmatprep.subr.mxu0 0.0
  %2340 = vmatpush2.msra.mxu0 %v437
  %2341 = vmatprep.subr.mxu0 0.0
  %2342 = vmatpush2.msra.mxu0 %v436
  %2343 = vmatprep.subr.mxu0 0.0
  %2344 = vmatpush2.msra.mxu0 %v435
  %2345 = vmatprep.subr.mxu0 0.0
  %2346 = vmatpush2.msra.mxu0 %v434
  %2347 = vmatprep.subr.mxu0 0.0
  %2348 = vmatpush2.msra.mxu0 %v433
  %2349 = vmatprep.subr.mxu0 0.0
  %2350 = vmatpush2.msra.mxu0 %v432
  %2351 = vmatprep.subr.mxu0 0.0
  %2352 = vmatpush2.msra.mxu0 %v431
  %2353 = vmatprep.subr.mxu0 0.0
  %2354 = vmatpush2.msra.mxu0 %v430
  %2355 = vmatprep.subr.mxu0 0.0
  %2356 = vmatpush2.msra.mxu0 %v429
  %2357 = vmatprep.subr.mxu0 0.0
  %2358 = vmatpush2.msra.mxu0 %v428
  %2359 = vmatprep.subr.mxu0 0.0
  %2360 = vmatpush2.msra.mxu0 %v427
  %2361 = vmatprep.mubr.f32.mxu0 %v2290
  %2362 = vmatmul.mubr.f32.gmra.mxu0 %v2289
  %v2363 = vpop.f32.mrf.mxu0
  %v2364 = vadd.f32 0.0, %v2363
  %v2365 = vpop.f32.mrf.mxu0
  %2366 = vmatprep.mubr.f32.mxu0 %v2294
  %2367 = vmatmul.mubr.f32.gmra.mxu0 %v2293
  %v2368 = vpop.f32.mrf.mxu0
  %v2369 = vadd.f32 0.0, %v2368
  %v2370 = vpop.f32.mrf.mxu0
  %2371 = vdwg.mxu0
  %2372 = vmatprep.subr.mxu0 0.0
  %2373 = vmatpush1.msra.mxu0 %v458
  %2374 = vmatprep.subr.mxu0 0.0
  %2375 = vmatpush1.msra.mxu0 %v457
  %2376 = vmatprep.subr.mxu0 0.0
  %2377 = vmatpush1.msra.mxu0 %v456
  %2378 = vmatprep.subr.mxu0 0.0
  %2379 = vmatpush1.msra.mxu0 %v455
  %2380 = vmatprep.subr.mxu0 0.0
  %2381 = vmatpush1.msra.mxu0 %v454
  %2382 = vmatprep.subr.mxu0 0.0
  %2383 = vmatpush1.msra.mxu0 %v453
  %2384 = vmatprep.subr.mxu0 0.0
  %2385 = vmatpush1.msra.mxu0 %v452
  %2386 = vmatprep.subr.mxu0 0.0
  %2387 = vmatpush1.msra.mxu0 %v451
  %2388 = vmatprep.subr.mxu0 0.0
  %2389 = vmatpush1.msra.mxu0 %v450
  %2390 = vmatprep.subr.mxu0 0.0
  %2391 = vmatpush1.msra.mxu0 %v449
  %2392 = vmatprep.subr.mxu0 0.0
  %2393 = vmatpush1.msra.mxu0 %v448
  %2394 = vmatprep.subr.mxu0 0.0
  %2395 = vmatpush1.msra.mxu0 %v447
  %2396 = vmatprep.subr.mxu0 0.0
  %2397 = vmatpush1.msra.mxu0 %v446
  %2398 = vmatprep.subr.mxu0 0.0
  %2399 = vmatpush1.msra.mxu0 %v445
  %2400 = vmatprep.subr.mxu0 0.0
  %2401 = vmatpush1.msra.mxu0 %v444
  %2402 = vmatprep.subr.mxu0 0.0
  %2403 = vmatpush1.msra.mxu0 %v443
  %2404 = vmatprep.subr.mxu0 0.0
  %2405 = vmatpush2.msra.mxu0 %v474
  %2406 = vmatprep.subr.mxu0 0.0
  %2407 = vmatpush2.msra.mxu0 %v473
  %2408 = vmatprep.subr.mxu0 0.0
  %2409 = vmatpush2.msra.mxu0 %v472
  %2410 = vmatprep.subr.mxu0 0.0
  %2411 = vmatpush2.msra.mxu0 %v471
  %2412 = vmatprep.subr.mxu0 0.0
  %2413 = vmatpush2.msra.mxu0 %v470
  %2414 = vmatprep.subr.mxu0 0.0
  %2415 = vmatpush2.msra.mxu0 %v469
  %2416 = vmatprep.subr.mxu0 0.0
  %2417 = vmatpush2.msra.mxu0 %v468
  %2418 = vmatprep.subr.mxu0 0.0
  %2419 = vmatpush2.msra.mxu0 %v467
  %2420 = vmatprep.subr.mxu0 0.0
  %2421 = vmatpush2.msra.mxu0 %v466
  %2422 = vmatprep.subr.mxu0 0.0
  %2423 = vmatpush2.msra.mxu0 %v465
  %2424 = vmatprep.subr.mxu0 0.0
  %2425 = vmatpush2.msra.mxu0 %v464
  %2426 = vmatprep.subr.mxu0 0.0
  %2427 = vmatpush2.msra.mxu0 %v463
  %2428 = vmatprep.subr.mxu0 0.0
  %2429 = vmatpush2.msra.mxu0 %v462
  %2430 = vmatprep.subr.mxu0 0.0
  %2431 = vmatpush2.msra.mxu0 %v461
  %2432 = vmatprep.subr.mxu0 0.0
  %2433 = vmatpush2.msra.mxu0 %v460
  %2434 = vmatprep.subr.mxu0 0.0
  %2435 = vmatpush2.msra.mxu0 %v459
  %2436 = vmatprep.mubr.f32.mxu0 %v2292
  %2437 = vmatmul.mubr.f32.gmra.mxu0 %v2291
  %v2438 = vpop.f32.mrf.mxu0
  %v2439 = vadd.f32 %v2364, %v2438
  %v2440 = vpop.f32.mrf.mxu0
  %2441 = vmatprep.mubr.f32.mxu0 %v2296
  %2442 = vmatmul.mubr.f32.gmra.mxu0 %v2295
  %v2443 = vpop.f32.mrf.mxu0
  %v2444 = vadd.f32 %v2369, %v2443
  %v2445 = vpop.f32.mrf.mxu0
  %2446 = vdwg.mxu0
  %v2447 = vadd.f32 %v2261, %v2439
  %v2448 = vadd.f32 %v2262, %v2444
  %v2449 = vxor.u32 %v2447, 2147483648
  %v2450 = vxor.u32 %v2448, 2147483648
  %v2451 = vmul.f32 %v2449, 1.442695
  %v2452 = vpow.pop %v2451
  %v2453 = vmul.f32 %v2450, 1.442695
  %v2454 = vpow.pop %v2453
  %v2455 = vadd.f32 %v2452, 1.0
  %v2456 = vadd.f32 %v2454, 1.0
  %v2457 = vrcp.pop %v2455
  %v2458 = vmul.f32 1.0, %v2457
  %v2459 = vrcp.pop %v2456
  %v2460 = vmul.f32 1.0, %v2459
  %v2461 = vadd.f32 %v2439, %v1472
  %v2462 = vadd.f32 %v2444, %v1474
  %2465 = vrot.lane.b32.xlu0 %v2461, 64
  %v2466 = vpop.permute.xlu0 %2465
  %2467 = vrot.lane.b32.xlu0 %v2462, 64
  %v2468 = vpop.permute.xlu0 %2467
  %v2471 = vmul.f32 %v2458, %v2466
  %v2472 = vmul.f32 %v2460, %v2468
  %2475 = vrot.lane.b32.xlu0 %v2471, 64
  %v2476 = vpop.permute.xlu0 %2475
  %2477 = vrot.lane.b32.xlu0 %v2472, 64
  %v2478 = vpop.permute.xlu0 %2477
  %v2481 = vadd.f32 %v2261, %v2476
  %v2482 = vadd.f32 %v2262, %v2478
  %v2483 = vtanh.pop %v2481
  %v2484 = vtanh.pop %v2482
  %v2485 = vsub.f32 %v2259, %v2483
  %v2486 = vsub.f32 %v2260, %v2484
  %2489 = vrot.lane.b32.xlu0 %v2485, 96
  %v2490 = vpop.permute.xlu0 %2489
  %2491 = vrot.lane.b32.xlu0 %v2486, 96
  %v2492 = vpop.permute.xlu0 %2491
  %v2495 = vmul.f32 %v2458, %v2490
  %v2496 = vmul.f32 %v2460, %v2492
  %2499 = vrot.lane.b32.xlu0 %v2495, 32
  %v2500 = vpop.permute.xlu0 %2499
  %2501 = vrot.lane.b32.xlu0 %v2496, 32
  %v2502 = vpop.permute.xlu0 %2501
  %v2505 = vadd.f32 %v2483, %v2500
  %v2506 = vadd.f32 %v2484, %v2502
  %v2507 = vld [vmem:[%s7] sm:$0x1]
  %v2508 = vld [vmem:[%s5] sm:$0xff]
  %v2509 = vld [vmem:[%s5 + $0x8] sm:$0xff]
  %v2510 = vld [vmem:[%s5 + $0x10] sm:$0xff]
  %v2511 = vld [vmem:[%s5 + $0x18] sm:$0xff]
  %2514 = vrot.lane.b32.xlu0 %v2505, 64
  %v2515 = vpop.permute.xlu0 %2514
  %2516 = vrot.lane.b32.xlu0 %v2506, 64
  %v2517 = vpop.permute.xlu0 %2516
  %v2518 = vsel %vm1016, %v2515, 0
  %v2520 = vsel %vm1016, %v2517, 0
  %2522 = vmatprep.subr.mxu0 0.0
  %2523 = vmatpush1.msra.mxu0 0.0
  %2524 = vmatprep.subr.mxu0 0.0
  %2525 = vmatpush1.msra.mxu0 0.0
  %2526 = vmatprep.subr.mxu0 0.0
  %2527 = vmatpush1.msra.mxu0 0.0
  %2528 = vmatprep.subr.mxu0 0.0
  %2529 = vmatpush1.msra.mxu0 0.0
  %2530 = vmatprep.subr.mxu0 0.0
  %2531 = vmatpush1.msra.mxu0 0.0
  %2532 = vmatprep.subr.mxu0 0.0
  %2533 = vmatpush1.msra.mxu0 0.0
  %2534 = vmatprep.subr.mxu0 0.0
  %2535 = vmatpush1.msra.mxu0 0.0
  %2536 = vmatprep.subr.mxu0 0.0
  %2537 = vmatpush1.msra.mxu0 0.0
  %2538 = vmatprep.subr.mxu0 0.0
  %2539 = vmatpush1.msra.mxu0 0.0
  %2540 = vmatprep.subr.mxu0 0.0
  %2541 = vmatpush1.msra.mxu0 0.0
  %2542 = vmatprep.subr.mxu0 0.0
  %2543 = vmatpush1.msra.mxu0 0.0
  %2544 = vmatprep.subr.mxu0 0.0
  %2545 = vmatpush1.msra.mxu0 0.0
  %2546 = vmatprep.subr.mxu0 0.0
  %2547 = vmatpush1.msra.mxu0 %v2511
  %2548 = vmatprep.subr.mxu0 0.0
  %2549 = vmatpush1.msra.mxu0 %v2510
  %2550 = vmatprep.subr.mxu0 0.0
  %2551 = vmatpush1.msra.mxu0 %v2509
  %2552 = vmatprep.subr.mxu0 0.0
  %2553 = vmatpush1.msra.mxu0 %v2508
  %2554 = vmatprep.subr.mxu0 0.0
  %2555 = vmatpush2.msra.mxu0 0.0
  %2556 = vmatprep.subr.mxu0 0.0
  %2557 = vmatpush2.msra.mxu0 0.0
  %2558 = vmatprep.subr.mxu0 0.0
  %2559 = vmatpush2.msra.mxu0 0.0
  %2560 = vmatprep.subr.mxu0 0.0
  %2561 = vmatpush2.msra.mxu0 0.0
  %2562 = vmatprep.subr.mxu0 0.0
  %2563 = vmatpush2.msra.mxu0 0.0
  %2564 = vmatprep.subr.mxu0 0.0
  %2565 = vmatpush2.msra.mxu0 0.0
  %2566 = vmatprep.subr.mxu0 0.0
  %2567 = vmatpush2.msra.mxu0 0.0
  %2568 = vmatprep.subr.mxu0 0.0
  %2569 = vmatpush2.msra.mxu0 0.0
  %2570 = vmatprep.subr.mxu0 0.0
  %2571 = vmatpush2.msra.mxu0 0.0
  %2572 = vmatprep.subr.mxu0 0.0
  %2573 = vmatpush2.msra.mxu0 0.0
  %2574 = vmatprep.subr.mxu0 0.0
  %2575 = vmatpush2.msra.mxu0 0.0
  %2576 = vmatprep.subr.mxu0 0.0
  %2577 = vmatpush2.msra.mxu0 0.0
  %2578 = vmatprep.subr.mxu0 0.0
  %2579 = vmatpush2.msra.mxu0 0.0
  %2580 = vmatprep.subr.mxu0 0.0
  %2581 = vmatpush2.msra.mxu0 0.0
  %2582 = vmatprep.subr.mxu0 0.0
  %2583 = vmatpush2.msra.mxu0 0.0
  %2584 = vmatprep.subr.mxu0 0.0
  %2585 = vmatpush2.msra.mxu0 0.0
  %2586 = vmatprep.mubr.f32.mxu0 0.0
  %2587 = vmatmul.mubr.f32.gmra.mxu0 %v2518
  %v2588 = vpop.f32.mrf.mxu0
  %v2589 = vadd.f32 0.0, %v2588
  %v2590 = vpop.f32.mrf.mxu0
  %2591 = vmatprep.mubr.f32.mxu0 0.0
  %2592 = vmatmul.mubr.f32.gmra.mxu0 %v2520
  %v2593 = vpop.f32.mrf.mxu0
  %v2594 = vadd.f32 0.0, %v2593
  %v2595 = vpop.f32.mrf.mxu0
  %2596 = vdwg.mxu0
  %v2598 = vlaneseq
  %v2599 = vshrl.u32 %v2598, 7
  %v2600 = vsub.s32 0, %v2599
  %v2601 = vrot.slane %v2507, %v2600
  %v2603 = vadd.f32 %v2589, %v2601
  %v2604 = vadd.f32 %v2594, %v2601
  %v2605 = vld [vmem:[%s1] sm:$0xff]
  %v2606 = vld [vmem:[%s1 + $0x8] sm:$0xff]
  %2608 = vset.pattern.permute.xlu0 0
  %2609 = vperm.xlu0 %2608, %v2605
  %v2610 = vpop.permute.xlu0 %2609
  %2613 = vset.pattern.permute.xlu0 0
  %2614 = vperm.xlu0 %2613, %v2606
  %v2615 = vpop.permute.xlu0 %2614
  %v2617 = vmul.f32 %v2610, %v2601
  %v2618 = vmul.f32 %v2615, %v2601
  %2621 = vrot.lane.b32.xlu0 %v2617, 30
  %v2622 = vpop.permute.xlu0 %2621
  %2623 = vrot.lane.b32.xlu0 %v2618, 30
  %v2624 = vpop.permute.xlu0 %2623
  %v2627 = vadd.f32 %v2589, %v2622
  %v2628 = vadd.f32 %v2594, %v2624
  %2629 = vrot.lane.b32.xlu0 %v2601, 32
  %v2630 = vpop.permute.xlu0 %2629
  %v2632 = vadd.f32 %v2627, %v2630
  %v2633 = vadd.f32 %v2628, %v2630
  %v2634 = vxor.u32 %v2632, 2147483648
  %v2635 = vxor.u32 %v2633, 2147483648
  %v2636 = vmul.f32 %v2634, 1.442695
  %v2637 = vpow.pop %v2636
  %v2638 = vmul.f32 %v2635, 1.442695
  %v2639 = vpow.pop %v2638
  %v2640 = vadd.f32 %v2637, 1.0
  %v2641 = vadd.f32 %v2639, 1.0
  %v2642 = vrcp.pop %v2640
  %v2643 = vmul.f32 1.0, %v2642
  %v2644 = vrcp.pop %v2641
  %v2645 = vmul.f32 1.0, %v2644
  %vm2646 = vcmask 7168
  %v2647 = vsel %vm2646, %v2603, 1.0
  %v2648 = vsel %vm2646, %v2604, 1.0
  %2651 = vrot.lane.b32.xlu0 %v2603, 127
  %v2652 = vpop.permute.xlu0 %2651
  %2653 = vrot.lane.b32.xlu0 %v2604, 127
  %v2654 = vpop.permute.xlu0 %2653
  %v2657 = vsel %vm2646, 1.0, %v2652
  %v2658 = vsel %vm2646, 1.0, %v2654
  %vm2659 = vcmask 15360
  %v2661 = vsel %vm2659, %v2647, 0
  %v2664 = vsel %vm2659, %v2648, 0
  %v2667 = vsel %vm2659, %v2657, 0
  %v2670 = vsel %vm2659, %v2658, 0
  %2672 = vmatprep.subr.mxu0 0.0
  %2673 = vmatpush1.xpose.msra.mxu0 0.0
  %2674 = vmatprep.subr.mxu0 0.0
  %2675 = vmatpush1.xpose.msra.mxu0 0.0
  %2676 = vmatprep.subr.mxu0 0.0
  %2677 = vmatpush1.xpose.msra.mxu0 0.0
  %2678 = vmatprep.subr.mxu0 0.0
  %2679 = vmatpush1.xpose.msra.mxu0 0.0
  %2680 = vmatprep.subr.mxu0 0.0
  %2681 = vmatpush1.xpose.msra.mxu0 0.0
  %2682 = vmatprep.subr.mxu0 0.0
  %2683 = vmatpush1.xpose.msra.mxu0 0.0
  %2684 = vmatprep.subr.mxu0 0.0
  %2685 = vmatpush1.xpose.msra.mxu0 0.0
  %2686 = vmatprep.subr.mxu0 0.0
  %2687 = vmatpush1.xpose.msra.mxu0 0.0
  %2688 = vmatprep.subr.mxu0 0.0
  %2689 = vmatpush1.xpose.msra.mxu0 0.0
  %2690 = vmatprep.subr.mxu0 0.0
  %2691 = vmatpush1.xpose.msra.mxu0 0.0
  %2692 = vmatprep.subr.mxu0 0.0
  %2693 = vmatpush1.xpose.msra.mxu0 0.0
  %2694 = vmatprep.subr.mxu0 0.0
  %2695 = vmatpush1.xpose.msra.mxu0 0.0
  %2696 = vmatprep.subr.mxu0 0.0
  %2697 = vmatpush1.xpose.msra.mxu0 0.0
  %2698 = vmatprep.subr.mxu0 0.0
  %2699 = vmatpush1.xpose.msra.mxu0 0.0
  %2700 = vmatprep.subr.mxu0 0.0
  %2701 = vmatpush1.xpose.msra.mxu0 %v2670
  %2702 = vmatprep.subr.mxu0 0.0
  %2703 = vmatpush1.xpose.msra.mxu0 %v2667
  %2704 = vmatprep.subr.mxu0 0.0
  %2705 = vmatpush2.xpose.msra.mxu0 0.0
  %2706 = vmatprep.subr.mxu0 0.0
  %2707 = vmatpush2.xpose.msra.mxu0 0.0
  %2708 = vmatprep.subr.mxu0 0.0
  %2709 = vmatpush2.xpose.msra.mxu0 0.0
  %2710 = vmatprep.subr.mxu0 0.0
  %2711 = vmatpush2.xpose.msra.mxu0 0.0
  %2712 = vmatprep.subr.mxu0 0.0
  %2713 = vmatpush2.xpose.msra.mxu0 0.0
  %2714 = vmatprep.subr.mxu0 0.0
  %2715 = vmatpush2.xpose.msra.mxu0 0.0
  %2716 = vmatprep.subr.mxu0 0.0
  %2717 = vmatpush2.xpose.msra.mxu0 0.0
  %2718 = vmatprep.subr.mxu0 0.0
  %2719 = vmatpush2.xpose.msra.mxu0 0.0
  %2720 = vmatprep.subr.mxu0 0.0
  %2721 = vmatpush2.xpose.msra.mxu0 0.0
  %2722 = vmatprep.subr.mxu0 0.0
  %2723 = vmatpush2.xpose.msra.mxu0 0.0
  %2724 = vmatprep.subr.mxu0 0.0
  %2725 = vmatpush2.xpose.msra.mxu0 0.0
  %2726 = vmatprep.subr.mxu0 0.0
  %2727 = vmatpush2.xpose.msra.mxu0 0.0
  %2728 = vmatprep.subr.mxu0 0.0
  %2729 = vmatpush2.xpose.msra.mxu0 0.0
  %2730 = vmatprep.subr.mxu0 0.0
  %2731 = vmatpush2.xpose.msra.mxu0 0.0
  %2732 = vmatprep.subr.mxu0 0.0
  %2733 = vmatpush2.xpose.msra.mxu0 0.0
  %2734 = vmatprep.subr.mxu0 0.0
  %2735 = vmatpush2.xpose.msra.mxu0 0.0
  %2736 = vmatprep.mubr.f32.mxu0 0.0
  %2737 = vmatmul.mubr.f32.gmra.mxu0 %v2661
  %v2738 = vpop.f32.mrf.mxu0
  %v2739 = vadd.f32 0.0, %v2738
  %v2740 = vpop.f32.mrf.mxu0
  %2741 = vmatprep.mubr.f32.mxu0 0.0
  %2742 = vmatmul.mubr.f32.gmra.mxu0 %v2664
  %v2743 = vpop.f32.mrf.mxu0
  %v2744 = vadd.f32 0.0, %v2743
  %v2745 = vpop.f32.mrf.mxu0
  %2746 = vdwg.mxu0
  %vm2747 = vcmp.gt.f32.partialorder %v2739, 0.0
  %vm2748 = vcmp.gt.f32.partialorder %v2744, 0.0
  %v2749 = vmul.f32 %v2739, 0.2
  %v2750 = vmul.f32 %v2744, 0.2
  %v2751 = vsel %vm2747, %v2739, %v2749
  %v2752 = vsel %vm2748, %v2744, %v2750
  %v2753 = vsel %vm994, %v2751, -inf
  %2754 = vmax.xlane.f32.xlu0 %v2753
  %v2755 = vpop.xlane.xlu0 %2754
  %v2756 = vsel %vm994, %v2752, -inf
  %2757 = vmax.xlane.f32.xlu0 %v2756
  %v2758 = vpop.xlane.xlu0 %2757
  %v2759 = vsub.f32 %v2751, %v2755
  %v2760 = vsub.f32 %v2752, %v2758
  %v2761 = vmul.f32 %v2759, 1.442695
  %v2762 = vpow.pop %v2761
  %v2763 = vmul.f32 %v2760, 1.442695
  %v2764 = vpow.pop %v2763
  %v2765 = vsel %vm994, %v2762, 0.0
  %2766 = vadd.xlane.f32.xlu0 %v2765
  %v2767 = vpop.xlane.xlu0 %2766
  %v2768 = vsel %vm994, %v2764, 0.0
  %2769 = vadd.xlane.f32.xlu0 %v2768
  %v2770 = vpop.xlane.xlu0 %2769
  %v2771 = vrcp.pop %v2767
  %v2772 = vrcp.pop %v2770
  %v2773 = vmul.f32 %v2762, %v2771
  %v2774 = vmul.f32 %v2764, %v2772
  %2776 = vset.pattern.permute.xlu0 36
  %2777 = vperm.xlu0 %2776, %v2643
  %v2778 = vpop.permute.xlu0 %2777
  %2781 = vset.pattern.permute.xlu0 36
  %2782 = vperm.xlu0 %2781, %v2645
  %v2783 = vpop.permute.xlu0 %2782
  %v2785 = vmul.f32 %v2778, %v2589
  %v2786 = vmul.f32 %v2783, %v2594
  %2789 = vrot.lane.b32.xlu0 %v2785, 124
  %v2790 = vpop.permute.xlu0 %2789
  %2791 = vrot.lane.b32.xlu0 %v2786, 124
  %v2792 = vpop.permute.xlu0 %2791
  %2797 = vrot.lane.b32.xlu0 %v2589, 108
  %v2798 = vpop.permute.xlu0 %2797
  %2799 = vrot.lane.b32.xlu0 %v2594, 108
  %v2800 = vpop.permute.xlu0 %2799
  %v2804 = vsel %vm994, %v2773, 0
  %v2807 = vsel %vm994, %v2774, 0
  %2809 = vmatprep.subr.mxu0 0.0
  %2810 = vmatpush1.msra.mxu0 0.0
  %2811 = vmatprep.subr.mxu0 0.0
  %2812 = vmatpush1.msra.mxu0 0.0
  %2813 = vmatprep.subr.mxu0 0.0
  %2814 = vmatpush1.msra.mxu0 0.0
  %2815 = vmatprep.subr.mxu0 0.0
  %2816 = vmatpush1.msra.mxu0 0.0
  %2817 = vmatprep.subr.mxu0 0.0
  %2818 = vmatpush1.msra.mxu0 0.0
  %2819 = vmatprep.subr.mxu0 0.0
  %2820 = vmatpush1.msra.mxu0 0.0
  %2821 = vmatprep.subr.mxu0 0.0
  %2822 = vmatpush1.msra.mxu0 0.0
  %2823 = vmatprep.subr.mxu0 0.0
  %2824 = vmatpush1.msra.mxu0 0.0
  %2825 = vmatprep.subr.mxu0 0.0
  %2826 = vmatpush1.msra.mxu0 0.0
  %2827 = vmatprep.subr.mxu0 0.0
  %2828 = vmatpush1.msra.mxu0 0.0
  %2829 = vmatprep.subr.mxu0 0.0
  %2830 = vmatpush1.msra.mxu0 0.0
  %2831 = vmatprep.subr.mxu0 0.0
  %2832 = vmatpush1.msra.mxu0 0.0
  %2833 = vmatprep.subr.mxu0 0.0
  %2834 = vmatpush1.msra.mxu0 0.0
  %2835 = vmatprep.subr.mxu0 0.0
  %2836 = vmatpush1.msra.mxu0 0.0
  %2837 = vmatprep.subr.mxu0 0.0
  %2838 = vmatpush1.msra.mxu0 %v2792
  %2839 = vmatprep.subr.mxu0 0.0
  %2840 = vmatpush1.msra.mxu0 %v2790
  %2841 = vmatprep.subr.mxu0 0.0
  %2842 = vmatpush2.msra.mxu0 0.0
  %2843 = vmatprep.subr.mxu0 0.0
  %2844 = vmatpush2.msra.mxu0 0.0
  %2845 = vmatprep.subr.mxu0 0.0
  %2846 = vmatpush2.msra.mxu0 0.0
  %2847 = vmatprep.subr.mxu0 0.0
  %2848 = vmatpush2.msra.mxu0 0.0
  %2849 = vmatprep.subr.mxu0 0.0
  %2850 = vmatpush2.msra.mxu0 0.0
  %2851 = vmatprep.subr.mxu0 0.0
  %2852 = vmatpush2.msra.mxu0 0.0
  %2853 = vmatprep.subr.mxu0 0.0
  %2854 = vmatpush2.msra.mxu0 0.0
  %2855 = vmatprep.subr.mxu0 0.0
  %2856 = vmatpush2.msra.mxu0 0.0
  %2857 = vmatprep.subr.mxu0 0.0
  %2858 = vmatpush2.msra.mxu0 0.0
  %2859 = vmatprep.subr.mxu0 0.0
  %2860 = vmatpush2.msra.mxu0 0.0
  %2861 = vmatprep.subr.mxu0 0.0
  %2862 = vmatpush2.msra.mxu0 0.0
  %2863 = vmatprep.subr.mxu0 0.0
  %2864 = vmatpush2.msra.mxu0 0.0
  %2865 = vmatprep.subr.mxu0 0.0
  %2866 = vmatpush2.msra.mxu0 0.0
  %2867 = vmatprep.subr.mxu0 0.0
  %2868 = vmatpush2.msra.mxu0 0.0
  %2869 = vmatprep.subr.mxu0 0.0
  %2870 = vmatpush2.msra.mxu0 0.0
  %2871 = vmatprep.subr.mxu0 0.0
  %2872 = vmatpush2.msra.mxu0 0.0
  %2873 = vmatprep.mubr.f32.mxu0 0.0
  %2874 = vmatmul.mubr.f32.gmra.mxu0 %v2804
  %v2875 = vpop.f32.mrf.mxu0
  %v2876 = vadd.f32 %v2798, %v2875
  %v2877 = vpop.f32.mrf.mxu0
  %2878 = vmatprep.mubr.f32.mxu0 0.0
  %2879 = vmatmul.mubr.f32.gmra.mxu0 %v2807
  %v2880 = vpop.f32.mrf.mxu0
  %v2881 = vadd.f32 %v2800, %v2880
  %v2882 = vpop.f32.mrf.mxu0
  %2883 = vdwg.mxu0
  %vm2884 = vcmp.gt.f32.partialorder %v2876, 0.0
  %vm2885 = vcmp.gt.f32.partialorder %v2881, 0.0
  %v2886 = vmin.f32 %v2876, 0.0
  %v2887 = vmin.f32 %v2881, 0.0
  %v2888 = vmul.f32 %v2886, 1.442695
  %v2889 = vpow.pop %v2888
  %v2890 = vmul.f32 %v2887, 1.442695
  %v2891 = vpow.pop %v2890
  %v2892 = vsub.f32 %v2889, 1.0
  %v2893 = vsub.f32 %v2891, 1.0
  %v2894 = vsel %vm2884, %v2876, %v2892
  %v2895 = vsel %vm2885, %v2881, %v2893
  %v2896 = vsel %vm2646, %v2652, 1.0
  %v2897 = vsel %vm2646, %v2654, 1.0
  %2898 = vrot.lane.b32.xlu0 %v2603, 126
  %v2899 = vpop.permute.xlu0 %2898
  %2900 = vrot.lane.b32.xlu0 %v2604, 126
  %v2901 = vpop.permute.xlu0 %2900
  %v2904 = vsel %vm2646, 1.0, %v2899
  %v2905 = vsel %vm2646, 1.0, %v2901
  %v2907 = vsel %vm2659, %v2896, 0
  %v2910 = vsel %vm2659, %v2897, 0
  %v2913 = vsel %vm2659, %v2904, 0
  %v2916 = vsel %vm2659, %v2905, 0
  %2918 = vmatprep.subr.mxu0 0.0
  %2919 = vmatpush1.xpose.msra.mxu0 0.0
  %2920 = vmatprep.subr.mxu0 0.0
  %2921 = vmatpush1.xpose.msra.mxu0 0.0
  %2922 = vmatprep.subr.mxu0 0.0
  %2923 = vmatpush1.xpose.msra.mxu0 0.0
  %2924 = vmatprep.subr.mxu0 0.0
  %2925 = vmatpush1.xpose.msra.mxu0 0.0
  %2926 = vmatprep.subr.mxu0 0.0
  %2927 = vmatpush1.xpose.msra.mxu0 0.0
  %2928 = vmatprep.subr.mxu0 0.0
  %2929 = vmatpush1.xpose.msra.mxu0 0.0
  %2930 = vmatprep.subr.mxu0 0.0
  %2931 = vmatpush1.xpose.msra.mxu0 0.0
  %2932 = vmatprep.subr.mxu0 0.0
  %2933 = vmatpush1.xpose.msra.mxu0 0.0
  %2934 = vmatprep.subr.mxu0 0.0
  %2935 = vmatpush1.xpose.msra.mxu0 0.0
  %2936 = vmatprep.subr.mxu0 0.0
  %2937 = vmatpush1.xpose.msra.mxu0 0.0
  %2938 = vmatprep.subr.mxu0 0.0
  %2939 = vmatpush1.xpose.msra.mxu0 0.0
  %2940 = vmatprep.subr.mxu0 0.0
  %2941 = vmatpush1.xpose.msra.mxu0 0.0
  %2942 = vmatprep.subr.mxu0 0.0
  %2943 = vmatpush1.xpose.msra.mxu0 0.0
  %2944 = vmatprep.subr.mxu0 0.0
  %2945 = vmatpush1.xpose.msra.mxu0 0.0
  %2946 = vmatprep.subr.mxu0 0.0
  %2947 = vmatpush1.xpose.msra.mxu0 %v2916
  %2948 = vmatprep.subr.mxu0 0.0
  %2949 = vmatpush1.xpose.msra.mxu0 %v2913
  %2950 = vmatprep.subr.mxu0 0.0
  %2951 = vmatpush2.xpose.msra.mxu0 0.0
  %2952 = vmatprep.subr.mxu0 0.0
  %2953 = vmatpush2.xpose.msra.mxu0 0.0
  %2954 = vmatprep.subr.mxu0 0.0
  %2955 = vmatpush2.xpose.msra.mxu0 0.0
  %2956 = vmatprep.subr.mxu0 0.0
  %2957 = vmatpush2.xpose.msra.mxu0 0.0
  %2958 = vmatprep.subr.mxu0 0.0
  %2959 = vmatpush2.xpose.msra.mxu0 0.0
  %2960 = vmatprep.subr.mxu0 0.0
  %2961 = vmatpush2.xpose.msra.mxu0 0.0
  %2962 = vmatprep.subr.mxu0 0.0
  %2963 = vmatpush2.xpose.msra.mxu0 0.0
  %2964 = vmatprep.subr.mxu0 0.0
  %2965 = vmatpush2.xpose.msra.mxu0 0.0
  %2966 = vmatprep.subr.mxu0 0.0
  %2967 = vmatpush2.xpose.msra.mxu0 0.0
  %2968 = vmatprep.subr.mxu0 0.0
  %2969 = vmatpush2.xpose.msra.mxu0 0.0
  %2970 = vmatprep.subr.mxu0 0.0
  %2971 = vmatpush2.xpose.msra.mxu0 0.0
  %2972 = vmatprep.subr.mxu0 0.0
  %2973 = vmatpush2.xpose.msra.mxu0 0.0
  %2974 = vmatprep.subr.mxu0 0.0
  %2975 = vmatpush2.xpose.msra.mxu0 0.0
  %2976 = vmatprep.subr.mxu0 0.0
  %2977 = vmatpush2.xpose.msra.mxu0 0.0
  %2978 = vmatprep.subr.mxu0 0.0
  %2979 = vmatpush2.xpose.msra.mxu0 0.0
  %2980 = vmatprep.subr.mxu0 0.0
  %2981 = vmatpush2.xpose.msra.mxu0 0.0
  %2982 = vmatprep.mubr.f32.mxu0 0.0
  %2983 = vmatmul.mubr.f32.gmra.mxu0 %v2907
  %v2984 = vpop.f32.mrf.mxu0
  %v2985 = vadd.f32 0.0, %v2984
  %v2986 = vpop.f32.mrf.mxu0
  %2987 = vmatprep.mubr.f32.mxu0 0.0
  %2988 = vmatmul.mubr.f32.gmra.mxu0 %v2910
  %v2989 = vpop.f32.mrf.mxu0
  %v2990 = vadd.f32 0.0, %v2989
  %v2991 = vpop.f32.mrf.mxu0
  %2992 = vdwg.mxu0
  %vm2993 = vcmp.gt.f32.partialorder %v2985, 0.0
  %vm2994 = vcmp.gt.f32.partialorder %v2990, 0.0
  %v2995 = vmul.f32 %v2985, 0.2
  %v2996 = vmul.f32 %v2990, 0.2
  %v2997 = vsel %vm2993, %v2985, %v2995
  %v2998 = vsel %vm2994, %v2990, %v2996
  %v2999 = vsel %vm994, %v2997, -inf
  %3000 = vmax.xlane.f32.xlu0 %v2999
  %v3001 = vpop.xlane.xlu0 %3000
  %v3002 = vsel %vm994, %v2998, -inf
  %3003 = vmax.xlane.f32.xlu0 %v3002
  %v3004 = vpop.xlane.xlu0 %3003
  %v3005 = vsub.f32 %v2997, %v3001
  %v3006 = vsub.f32 %v2998, %v3004
  %v3007 = vmul.f32 %v3005, 1.442695
  %v3008 = vpow.pop %v3007
  %v3009 = vmul.f32 %v3006, 1.442695
  %v3010 = vpow.pop %v3009
  %v3011 = vsel %vm994, %v3008, 0.0
  %3012 = vadd.xlane.f32.xlu0 %v3011
  %v3013 = vpop.xlane.xlu0 %3012
  %v3014 = vsel %vm994, %v3010, 0.0
  %3015 = vadd.xlane.f32.xlu0 %v3014
  %v3016 = vpop.xlane.xlu0 %3015
  %v3017 = vrcp.pop %v3013
  %v3018 = vrcp.pop %v3016
  %v3019 = vmul.f32 %v3008, %v3017
  %v3020 = vmul.f32 %v3010, %v3018
  %3021 = vset.pattern.permute.xlu0 37
  %3022 = vperm.xlu0 %3021, %v2643
  %v3023 = vpop.permute.xlu0 %3022
  %3025 = vset.pattern.permute.xlu0 37
  %3026 = vperm.xlu0 %3025, %v2645
  %v3027 = vpop.permute.xlu0 %3026
  %v3029 = vmul.f32 %v3023, %v2589
  %v3030 = vmul.f32 %v3027, %v2594
  %3033 = vrot.lane.b32.xlu0 %v3029, 116
  %v3034 = vpop.permute.xlu0 %3033
  %3035 = vrot.lane.b32.xlu0 %v3030, 116
  %v3036 = vpop.permute.xlu0 %3035
  %3039 = vrot.lane.b32.xlu0 %v2589, 100
  %v3040 = vpop.permute.xlu0 %3039
  %3041 = vrot.lane.b32.xlu0 %v2594, 100
  %v3042 = vpop.permute.xlu0 %3041
  %v3046 = vsel %vm994, %v3019, 0
  %v3049 = vsel %vm994, %v3020, 0
  %3051 = vmatprep.subr.mxu0 0.0
  %3052 = vmatpush1.msra.mxu0 0.0
  %3053 = vmatprep.subr.mxu0 0.0
  %3054 = vmatpush1.msra.mxu0 0.0
  %3055 = vmatprep.subr.mxu0 0.0
  %3056 = vmatpush1.msra.mxu0 0.0
  %3057 = vmatprep.subr.mxu0 0.0
  %3058 = vmatpush1.msra.mxu0 0.0
  %3059 = vmatprep.subr.mxu0 0.0
  %3060 = vmatpush1.msra.mxu0 0.0
  %3061 = vmatprep.subr.mxu0 0.0
  %3062 = vmatpush1.msra.mxu0 0.0
  %3063 = vmatprep.subr.mxu0 0.0
  %3064 = vmatpush1.msra.mxu0 0.0
  %3065 = vmatprep.subr.mxu0 0.0
  %3066 = vmatpush1.msra.mxu0 0.0
  %3067 = vmatprep.subr.mxu0 0.0
  %3068 = vmatpush1.msra.mxu0 0.0
  %3069 = vmatprep.subr.mxu0 0.0
  %3070 = vmatpush1.msra.mxu0 0.0
  %3071 = vmatprep.subr.mxu0 0.0
  %3072 = vmatpush1.msra.mxu0 0.0
  %3073 = vmatprep.subr.mxu0 0.0
  %3074 = vmatpush1.msra.mxu0 0.0
  %3075 = vmatprep.subr.mxu0 0.0
  %3076 = vmatpush1.msra.mxu0 0.0
  %3077 = vmatprep.subr.mxu0 0.0
  %3078 = vmatpush1.msra.mxu0 0.0
  %3079 = vmatprep.subr.mxu0 0.0
  %3080 = vmatpush1.msra.mxu0 %v3036
  %3081 = vmatprep.subr.mxu0 0.0
  %3082 = vmatpush1.msra.mxu0 %v3034
  %3083 = vmatprep.subr.mxu0 0.0
  %3084 = vmatpush2.msra.mxu0 0.0
  %3085 = vmatprep.subr.mxu0 0.0
  %3086 = vmatpush2.msra.mxu0 0.0
  %3087 = vmatprep.subr.mxu0 0.0
  %3088 = vmatpush2.msra.mxu0 0.0
  %3089 = vmatprep.subr.mxu0 0.0
  %3090 = vmatpush2.msra.mxu0 0.0
  %3091 = vmatprep.subr.mxu0 0.0
  %3092 = vmatpush2.msra.mxu0 0.0
  %3093 = vmatprep.subr.mxu0 0.0
  %3094 = vmatpush2.msra.mxu0 0.0
  %3095 = vmatprep.subr.mxu0 0.0
  %3096 = vmatpush2.msra.mxu0 0.0
  %3097 = vmatprep.subr.mxu0 0.0
  %3098 = vmatpush2.msra.mxu0 0.0
  %3099 = vmatprep.subr.mxu0 0.0
  %3100 = vmatpush2.msra.mxu0 0.0
  %3101 = vmatprep.subr.mxu0 0.0
  %3102 = vmatpush2.msra.mxu0 0.0
  %3103 = vmatprep.subr.mxu0 0.0
  %3104 = vmatpush2.msra.mxu0 0.0
  %3105 = vmatprep.subr.mxu0 0.0
  %3106 = vmatpush2.msra.mxu0 0.0
  %3107 = vmatprep.subr.mxu0 0.0
  %3108 = vmatpush2.msra.mxu0 0.0
  %3109 = vmatprep.subr.mxu0 0.0
  %3110 = vmatpush2.msra.mxu0 0.0
  %3111 = vmatprep.subr.mxu0 0.0
  %3112 = vmatpush2.msra.mxu0 0.0
  %3113 = vmatprep.subr.mxu0 0.0
  %3114 = vmatpush2.msra.mxu0 0.0
  %3115 = vmatprep.mubr.f32.mxu0 0.0
  %3116 = vmatmul.mubr.f32.gmra.mxu0 %v3046
  %v3117 = vpop.f32.mrf.mxu0
  %v3118 = vadd.f32 %v3040, %v3117
  %v3119 = vpop.f32.mrf.mxu0
  %3120 = vmatprep.mubr.f32.mxu0 0.0
  %3121 = vmatmul.mubr.f32.gmra.mxu0 %v3049
  %v3122 = vpop.f32.mrf.mxu0
  %v3123 = vadd.f32 %v3042, %v3122
  %v3124 = vpop.f32.mrf.mxu0
  %3125 = vdwg.mxu0
  %vm3126 = vcmp.gt.f32.partialorder %v3118, 0.0
  %vm3127 = vcmp.gt.f32.partialorder %v3123, 0.0
  %v3128 = vmin.f32 %v3118, 0.0
  %v3129 = vmin.f32 %v3123, 0.0
  %v3130 = vmul.f32 %v3128, 1.442695
  %v3131 = vpow.pop %v3130
  %v3132 = vmul.f32 %v3129, 1.442695
  %v3133 = vpow.pop %v3132
  %v3134 = vsub.f32 %v3131, 1.0
  %v3135 = vsub.f32 %v3133, 1.0
  %v3136 = vsel %vm3126, %v3118, %v3134
  %v3137 = vsel %vm3127, %v3123, %v3135
  %3140 = vrot.lane.b32.xlu0 %v3136, 8
  %v3141 = vpop.permute.xlu0 %3140
  %3142 = vrot.lane.b32.xlu0 %v3137, 8
  %v3143 = vpop.permute.xlu0 %3142
  %v3146 = vsel %vm983, %v2894, %v3141
  %v3147 = vsel %vm983, %v2895, %v3143
  %v3148 = vld [vmem:[%s6] sm:$0xff]
  %v3149 = vld [vmem:[%s6 + $0x8] sm:$0xff]
  %v3152 = vsel %vm994, %v3146, %v2515
  %v3153 = vsel %vm994, %v3147, %v2517
  %v3154 = vmul.f32 %v3152, %v3148
  %v3155 = vmul.f32 %v3153, %v3149
  %v3156 = vsel %vm1016, %v3154, 0.0
  %3157 = vadd.xlane.f32.xlu0 %v3156
  %v3158 = vpop.xlane.xlu0 %3157
  %v3159 = vsel %vm1016, %v3155, 0.0
  %3160 = vadd.xlane.f32.xlu0 %v3159
  %v3161 = vpop.xlane.xlu0 %3160
  %3164 = vrot.lane.b32.xlu0 %v3148, 96
  %v3165 = vpop.permute.xlu0 %3164
  %3166 = vrot.lane.b32.xlu0 %v3149, 96
  %v3167 = vpop.permute.xlu0 %3166
  %v3170 = vmul.f32 %v3152, %v3165
  %v3171 = vmul.f32 %v3153, %v3167
  %v3172 = vsel %vm1016, %v3170, 0.0
  %3173 = vadd.xlane.f32.xlu0 %v3172
  %v3174 = vpop.xlane.xlu0 %3173
  %v3175 = vsel %vm1016, %v3171, 0.0
  %3176 = vadd.xlane.f32.xlu0 %v3175
  %v3177 = vpop.xlane.xlu0 %3176
  %v3178 = vsel %vm2646, %v3158, %v3174
  %v3179 = vsel %vm2646, %v3161, %v3177
  %3180 = vrot.lane.b32.xlu0 %v3148, 64
  %v3181 = vpop.permute.xlu0 %3180
  %3182 = vrot.lane.b32.xlu0 %v3149, 64
  %v3183 = vpop.permute.xlu0 %3182
  %v3186 = vadd.f32 %v3178, %v3181
  %v3187 = vadd.f32 %v3179, %v3183
  %vm3188 = vcmp.gt.f32.partialorder %v3186, 0.0
  %vm3189 = vcmp.gt.f32.partialorder %v3187, 0.0
  %v3190 = vmin.f32 %v3186, 0.0
  %v3191 = vmin.f32 %v3187, 0.0
  %v3192 = vmul.f32 %v3190, 1.442695
  %v3193 = vpow.pop %v3192
  %v3194 = vmul.f32 %v3191, 1.442695
  %v3195 = vpow.pop %v3194
  %v3196 = vsub.f32 %v3193, 1.0
  %v3197 = vsub.f32 %v3195, 1.0
  %v3198 = vsel %vm3188, %v3186, %v3196
  %v3199 = vsel %vm3189, %v3187, %v3197
  %v3200 = vsel %vm2659, %v3198, -inf
  %3201 = vmax.xlane.f32.xlu0 %v3200
  %v3202 = vpop.xlane.xlu0 %3201
  %v3203 = vsel %vm2659, %v3199, -inf
  %3204 = vmax.xlane.f32.xlu0 %v3203
  %v3205 = vpop.xlane.xlu0 %3204
  %v3206 = vsub.f32 %v3198, %v3202
  %v3207 = vsub.f32 %v3199, %v3205
  %v3208 = vmul.f32 %v3206, 1.442695
  %v3209 = vpow.pop %v3208
  %v3210 = vmul.f32 %v3207, 1.442695
  %v3211 = vpow.pop %v3210
  %v3212 = vsel %vm2659, %v3209, 0.0
  %3213 = vadd.xlane.f32.xlu0 %v3212
  %v3214 = vpop.xlane.xlu0 %3213
  %v3215 = vsel %vm2659, %v3211, 0.0
  %3216 = vadd.xlane.f32.xlu0 %v3215
  %v3217 = vpop.xlane.xlu0 %3216
  %v3218 = vrcp.pop %v3214
  %v3219 = vrcp.pop %v3217
  %v3220 = vmul.f32 %v3209, %v3218
  %v3221 = vmul.f32 %v3211, %v3219
  %3222 = vst.msk [vmem:[%s8] sm:$0xff] %vm2659, %v3220
  %3223 = vst.msk [vmem:[%s8 + $0x8] sm:$0xff] %vm2659, %v3221
  // Predicated region
  $region34: #{ad_gat_forward.1} parent=0 // pred_check
    _
  $region35: #{ad_gat_forward.1} parent=0 // pred_check_branch
    %3225 = sbr.rel (0) target = $region37
  $region36: #{ad_gat_forward.1} parent=0 // pred_region
    _
  $region37: #{ad_gat_forward.1} parent=0 // pred_fallthru
    _
  // Predicated region
  $region38: #{ad_gat_forward.1} parent=0 // pred_check
    _
  $region39: #{ad_gat_forward.1} parent=0 // pred_check_branch
    %3227 = sbr.rel (0) target = $region41
  $region40: #{ad_gat_forward.1} parent=0 // pred_region
    _
  $region41: #{ad_gat_forward.1} parent=0 // pred_fallthru
    _

</llo_original>
